<compile_context>
chip_gen: v7x
topology: tpu7x:2x2x1
jax: 0.10.0
libtpu: 0.0.40
codegen_flags: <defaults>
</compile_context>

<pallas_src>
import jax
import jax.numpy as jnp
from jax import lax
from jax.experimental import pallas as pl
from jax.experimental.pallas import tpu as pltpu

LANE = 128  # TPU lane width (used to make the final output store lane-dense)


# ---------------------------------------------------------------------------
# Kernels
# ---------------------------------------------------------------------------
def conv_relu_pool_kernel(p_ref, w_ref, b_ref, o_ref):
    """maxpool2x2(relu(conv2d + bias)) for one conv stage.

    p_ref: (4, R, K)  im2col patches; leading index a*2+b = pool-window member,
                      R = N*PH*PW pooled output positions, K = Cin*k*k features
                      in PyTorch (ci, dy, dx) order.
    w_ref: (K, Cout)  conv weights as a matmul matrix.
    b_ref: (1, Cout)  bias.
    o_ref: (R, Cout)  pooled activations, rows ordered (n, i, j).
    """
    # Hoist invariant loads: weights/bias are reused by all 4 window matmuls.
    w = w_ref[...]
    b = b_ref[...]

    def window(a):  # conv + bias for 2x2 pool-window member `a` (static unroll)
        return jnp.dot(p_ref[a], w, preferred_element_type=jnp.float32) + b

    y = jnp.maximum(jnp.maximum(window(0), window(1)),
                    jnp.maximum(window(2), window(3)))
    # relu(maxpool(z)) == maxpool(relu(z)) since ReLU is monotone -> single ReLU.
    o_ref[...] = jnp.maximum(y, 0.0).astype(o_ref.dtype)


def mlp_kernel(x_ref, w1_ref, b1_ref, w2_ref, b2_ref, w3_ref, b3_ref, o_ref):
    """Fused fc1+ReLU -> fc2+ReLU -> fc3 (weights pre-transposed to (in, out))."""
    h = jnp.dot(x_ref[...], w1_ref[...], preferred_element_type=jnp.float32) + b1_ref[...]
    h = jnp.maximum(h, 0.0)
    h = jnp.dot(h, w2_ref[...], preferred_element_type=jnp.float32) + b2_ref[...]
    h = jnp.maximum(h, 0.0)
    o_ref[...] = (jnp.dot(h, w3_ref[...], preferred_element_type=jnp.float32)
                  + b3_ref[...]).astype(o_ref.dtype)


# ---------------------------------------------------------------------------
# Wrappers (layout plumbing only -- jitted, fused by XLA)
# ---------------------------------------------------------------------------
def _pool_ordered_patches(x, k, pool):
    """x: (N, Cin, H, W) -> im2col patches (pool*pool, N*PH*PW, Cin*k*k).

    Block a*pool+b holds, for every pooled output (n, i, j), the k*k*Cin conv
    patch of input position (pool*i + a, pool*j + b).  Feature order (ci, dy,
    dx) matches PyTorch OIHW weights reshaped to (Cout, -1).
    """
    n, c, h, w = x.shape
    oh, ow = h - k + 1, w - k + 1
    ph, pw = oh // pool, ow // pool
    taps = [x[:, :, dy:dy + oh, dx:dx + ow] for dy in range(k) for dx in range(k)]
    t = jnp.stack(taps, axis=2)                      # (N, Cin, k*k, OH, OW)
    t = t.reshape(n, c, k * k, ph, pool, pw, pool)   # OH -> (PH, pool), OW -> (PW, pool)
    t = jnp.transpose(t, (4, 6, 0, 3, 5, 1, 2))      # (a, b, N, PH, PW, Cin, k*k)
    return t.reshape(pool * pool, n * ph * pw, c * k * k)


def _full_block(shape):
    # Whole-array VMEM block for a grid of (1,).
    return pl.BlockSpec(shape, lambda i: (0,) * len(shape))


def _conv_relu_pool(x, w, b, *, k=5, pool=2):
    """maxpool2d(relu(conv2d(x, w) + b)) with PyTorch-convention params.

    x: (N, Cin, H, W);  w: (Cout, Cin, k, k) (OIHW);  b: (Cout,).
    Returns (N, Cout, PH, PW).
    """
    n = x.shape[0]
    cout = w.shape[0]
    ph = (x.shape[2] - k + 1) // pool
    pw = (x.shape[3] - k + 1) // pool

    patches = _pool_ordered_patches(x, k, pool)      # (4, N*PH*PW, Cin*k*k)
    w_mat = w.reshape(cout, -1).T                    # (Cin*k*k, Cout)
    b_mat = b.reshape(1, cout)

    out = pl.pallas_call(
        conv_relu_pool_kernel,
        out_shape=jax.ShapeDtypeStruct((n * ph * pw, cout), jnp.float32),
        grid=(1,),
        in_specs=[_full_block(patches.shape),
                  _full_block(w_mat.shape),
                  _full_block(b_mat.shape)],
        out_specs=_full_block((n * ph * pw, cout)),
        compiler_params=pltpu.CompilerParams(dimension_semantics=("arbitrary",)),
    )(patches, w_mat, b_mat)                         # rows ordered (n, i, j)

    # NHWC rows -> NCHW so the final flatten matches torch's .view(-1, C*H*W).
    return jnp.transpose(out.reshape(n, ph, pw, cout), (0, 3, 1, 2))


def _mlp(x, params):
    """Fused fc1+ReLU -> fc2+ReLU -> fc3.  x: (N, 400) -> (N, 10)."""
    n = x.shape[0]
    w1 = params["fc1_w"].T              # PyTorch (out, in) -> (in, out); fused by jit
    w2 = params["fc2_w"].T
    w3 = params["fc3_w"].T
    b1 = params["fc1_b"].reshape(1, -1)
    b2 = params["fc2_b"].reshape(1, -1)
    b3 = params["fc3_b"].reshape(1, -1)

    # Lane-dense final store: zero-pad fc3 to 128 output lanes (unmasked vst),
    # then slice the 10 real logits back outside the kernel.
    d_out = w3.shape[1]
    w3p = jnp.pad(w3, ((0, 0), (0, LANE - d_out)))
    b3p = jnp.pad(b3, ((0, 0), (0, LANE - d_out)))

    out = pl.pallas_call(
        mlp_kernel,
        out_shape=jax.ShapeDtypeStruct((n, LANE), jnp.float32),
        grid=(1,),
        in_specs=[_full_block(x.shape),
                  _full_block(w1.shape), _full_block(b1.shape),
                  _full_block(w2.shape), _full_block(b2.shape),
                  _full_block(w3p.shape), _full_block(b3p.shape)],
        out_specs=_full_block((n, LANE)),
        compiler_params=pltpu.CompilerParams(dimension_semantics=("arbitrary",)),
    )(x, w1, b1, w2, b2, w3p, b3p)
    return out[:, :d_out]


@jax.jit
def lenet_forward(x, params):
    """PyTorch Net.forward semantics: x (N, 1, 32, 32) -> logits (N, 10)."""
    y = _conv_relu_pool(x, params["conv1_w"], params["conv1_b"])   # (N, 6, 14, 14)
    y = _conv_relu_pool(y, params["conv2_w"], params["conv2_b"])   # (N, 16, 5, 5)
    y = y.reshape(y.shape[0], -1)                                  # (N, 400) = x.view(-1, 16*5*5)
    return _mlp(y, params)                                         # (N, 10)


# ---------------------------------------------------------------------------
# Pure-JAX reference (same PyTorch semantics) for verification
# ---------------------------------------------------------------------------
def lenet_reference(x, params):
    dn = ("NCHW", "OIHW", "NCHW")
    y = lax.conv_general_dilated(x, params["conv1_w"], (1, 1), "VALID",
                                 dimension_numbers=dn)
    y = jnp.maximum(y + params["conv1_b"][None, :, None, None], 0.0)
    y = lax.reduce_window(y, -jnp.inf, lax.max, (1, 1, 2, 2), (1, 1, 2, 2), "VALID")
    y = lax.conv_general_dilated(y, params["conv2_w"], (1, 1), "VALID",
                                 dimension_numbers=dn)
    y = jnp.maximum(y + params["conv2_b"][None, :, None, None], 0.0)
    y = lax.reduce_window(y, -jnp.inf, lax.max, (1, 1, 2, 2), (1, 1, 2, 2), "VALID")
    y = y.reshape(y.shape[0], -1)
    y = jnp.maximum(y @ params["fc1_w"].T + params["fc1_b"], 0.0)
    y = jnp.maximum(y @ params["fc2_w"].T + params["fc2_b"], 0.0)
    return y @ params["fc3_w"].T + params["fc3_b"]


if __name__ == "__main__":
    N = 2
    key = jax.random.PRNGKey(0)
    (k_x, k_c1w, k_c1b, k_c2w, k_c2b,
     k_f1w, k_f1b, k_f2w, k_f2b, k_f3w, k_f3b) = jax.random.split(key, 11)

    # 32x32 single-channel input is what the module implies (16*5*5 = 400 flat features).
    x = jax.random.normal(k_x, (N, 1, 32, 32), dtype=jnp.float32)

    # Deterministic params in PyTorch conventions: conv OIHW, linear (out, in).
    params = {
        "conv1_w": jax.random.normal(k_c1w, (6, 1, 5, 5), jnp.float32) * 0.1,
        "conv1_b": jax.random.normal(k_c1b, (6,), jnp.float32) * 0.1,
        "conv2_w": jax.random.normal(k_c2w, (16, 6, 5, 5), jnp.float32) * 0.1,
        "conv2_b": jax.random.normal(k_c2b, (16,), jnp.float32) * 0.1,
        "fc1_w": jax.random.normal(k_f1w, (120, 400), jnp.float32) * 0.05,
        "fc1_b": jax.random.normal(k_f1b, (120,), jnp.float32) * 0.05,
        "fc2_w": jax.random.normal(k_f2w, (84, 120), jnp.float32) * 0.05,
        "fc2_b": jax.random.normal(k_f2b, (84,), jnp.float32) * 0.05,
        "fc3_w": jax.random.normal(k_f3w, (10, 84), jnp.float32) * 0.05,
        "fc3_b": jax.random.normal(k_f3b, (10,), jnp.float32) * 0.05,
    }

    y = lenet_forward(x, params)
    y = jax.block_until_ready(y)

    y_ref = lenet_reference(x, params)
    assert y.shape == (N, 10)
    assert jnp.allclose(y, y_ref, atol=1e-3, rtol=1e-3), \
        float(jnp.max(jnp.abs(y - y_ref)))

    print("KERNEL_OK")
</pallas_src>

<mosaic_0001>
module attributes {stable_mosaic.version = 11 : i64} {
  func.func @conv_relu_pool_kernel(%arg0: i32, %arg1: memref<4x392x25xf32, #tpu.memory_space<vmem>>, %arg2: memref<25x6xf32, #tpu.memory_space<vmem>>, %arg3: memref<1x6xf32, #tpu.memory_space<vmem>>, %arg4: memref<392x6xf32, #tpu.memory_space<vmem>>) attributes {dimension_semantics = [#tpu.dimension_semantics<arbitrary>], iteration_bounds = array<i64: 1>, scalar_prefetch = 0 : i64, scratch_operands = 0 : i64, tpu.core_type = #tpu.core_type<tc>, window_params = [{pipeline_mode = #tpu.pipeline_mode<synchronous>, transform_indices = @transform_0, window_bounds = array<i64: 4, 392, 25>}, {pipeline_mode = #tpu.pipeline_mode<synchronous>, transform_indices = @transform_1, window_bounds = array<i64: 25, 6>}, {pipeline_mode = #tpu.pipeline_mode<synchronous>, transform_indices = @transform_2, window_bounds = array<i64: 1, 6>}, {pipeline_mode = #tpu.pipeline_mode<synchronous>, transform_indices = @transform_3, window_bounds = array<i64: 392, 6>}]} {
    %c0 = arith.constant 0 : index
    %c0_0 = arith.constant 0 : index
    %0 = vector.load %arg2[%c0, %c0_0] : memref<25x6xf32, #tpu.memory_space<vmem>>, vector<25x6xf32>
    %c0_1 = arith.constant 0 : index
    %c0_2 = arith.constant 0 : index
    %1 = vector.load %arg3[%c0_1, %c0_2] : memref<1x6xf32, #tpu.memory_space<vmem>>, vector<1x6xf32>
    %c0_3 = arith.constant 0 : index
    %c0_4 = arith.constant 0 : index
    %c0_5 = arith.constant 0 : index
    %2 = vector.load %arg1[%c0_3, %c0_4, %c0_5] : memref<4x392x25xf32, #tpu.memory_space<vmem>>, vector<1x392x25xf32>
    %3 = vector.shape_cast %2 : vector<1x392x25xf32> to vector<392x25xf32>
    %cst = arith.constant dense<0.000000e+00> : vector<392x6xf32>
    %4 = tpu.matmul %3, %0, %cst {dimension_numbers = #tpu.dot_dimension_numbers<[1], [0], [0], [1], [0, 0, 1, 1], [], []>} : vector<392x25xf32>, vector<25x6xf32>, vector<392x6xf32> -> vector<392x6xf32>
    %5 = vector.broadcast %1 : vector<1x6xf32> to vector<392x6xf32>
    %6 = arith.addf %4, %5 : vector<392x6xf32>
    %c1 = arith.constant 1 : index
    %c0_6 = arith.constant 0 : index
    %c0_7 = arith.constant 0 : index
    %7 = vector.load %arg1[%c1, %c0_6, %c0_7] : memref<4x392x25xf32, #tpu.memory_space<vmem>>, vector<1x392x25xf32>
    %8 = vector.shape_cast %7 : vector<1x392x25xf32> to vector<392x25xf32>
    %cst_8 = arith.constant dense<0.000000e+00> : vector<392x6xf32>
    %9 = tpu.matmul %8, %0, %cst_8 {dimension_numbers = #tpu.dot_dimension_numbers<[1], [0], [0], [1], [0, 0, 1, 1], [], []>} : vector<392x25xf32>, vector<25x6xf32>, vector<392x6xf32> -> vector<392x6xf32>
    %10 = vector.broadcast %1 : vector<1x6xf32> to vector<392x6xf32>
    %11 = arith.addf %9, %10 : vector<392x6xf32>
    %12 = arith.maximumf %6, %11 : vector<392x6xf32>
    %c2 = arith.constant 2 : index
    %c0_9 = arith.constant 0 : index
    %c0_10 = arith.constant 0 : index
    %13 = vector.load %arg1[%c2, %c0_9, %c0_10] : memref<4x392x25xf32, #tpu.memory_space<vmem>>, vector<1x392x25xf32>
    %14 = vector.shape_cast %13 : vector<1x392x25xf32> to vector<392x25xf32>
    %cst_11 = arith.constant dense<0.000000e+00> : vector<392x6xf32>
    %15 = tpu.matmul %14, %0, %cst_11 {dimension_numbers = #tpu.dot_dimension_numbers<[1], [0], [0], [1], [0, 0, 1, 1], [], []>} : vector<392x25xf32>, vector<25x6xf32>, vector<392x6xf32> -> vector<392x6xf32>
    %16 = vector.broadcast %1 : vector<1x6xf32> to vector<392x6xf32>
    %17 = arith.addf %15, %16 : vector<392x6xf32>
    %c3 = arith.constant 3 : index
    %c0_12 = arith.constant 0 : index
    %c0_13 = arith.constant 0 : index
    %18 = vector.load %arg1[%c3, %c0_12, %c0_13] : memref<4x392x25xf32, #tpu.memory_space<vmem>>, vector<1x392x25xf32>
    %19 = vector.shape_cast %18 : vector<1x392x25xf32> to vector<392x25xf32>
    %cst_14 = arith.constant dense<0.000000e+00> : vector<392x6xf32>
    %20 = tpu.matmul %19, %0, %cst_14 {dimension_numbers = #tpu.dot_dimension_numbers<[1], [0], [0], [1], [0, 0, 1, 1], [], []>} : vector<392x25xf32>, vector<25x6xf32>, vector<392x6xf32> -> vector<392x6xf32>
    %21 = vector.broadcast %1 : vector<1x6xf32> to vector<392x6xf32>
    %22 = arith.addf %20, %21 : vector<392x6xf32>
    %23 = arith.maximumf %17, %22 : vector<392x6xf32>
    %24 = arith.maximumf %12, %23 : vector<392x6xf32>
    %cst_15 = arith.constant 0.000000e+00 : f32
    %25 = vector.broadcast %cst_15 : f32 to vector<392x6xf32>
    %26 = arith.maximumf %24, %25 : vector<392x6xf32>
    %c0_16 = arith.constant 0 : index
    %c0_17 = arith.constant 0 : index
    %27 = vector.load %arg4[%c0_16, %c0_17] : memref<392x6xf32, #tpu.memory_space<vmem>>, vector<392x6xf32>
    tpu.vector_store %arg4[%c0_16, %c0_17], %26 {strides = array<i32>} : memref<392x6xf32, #tpu.memory_space<vmem>>, vector<392x6xf32>,
    return
  }
  func.func @transform_0(%arg0: i32) -> (i32, i32, i32) {
    %c0_i32 = arith.constant 0 : i32
    %c0_i32_0 = arith.constant 0 : i32
    %c0_i32_1 = arith.constant 0 : i32
    %c0_i32_2 = arith.constant 0 : i32
    return %c0_i32, %c0_i32_0, %c0_i32_1 : i32, i32, i32
  }
  func.func @transform_1(%arg0: i32) -> (i32, i32) {
    %c0_i32 = arith.constant 0 : i32
    %c0_i32_0 = arith.constant 0 : i32
    %c0_i32_1 = arith.constant 0 : i32
    return %c0_i32, %c0_i32_0 : i32, i32
  }
  func.func @transform_2(%arg0: i32) -> (i32, i32) {
    %c0_i32 = arith.constant 0 : i32
    %c0_i32_0 = arith.constant 0 : i32
    %c0_i32_1 = arith.constant 0 : i32
    return %c0_i32, %c0_i32_0 : i32, i32
  }
  func.func @transform_3(%arg0: i32) -> (i32, i32) {
    %c0_i32 = arith.constant 0 : i32
    %c0_i32_0 = arith.constant 0 : i32
    %c0_i32_1 = arith.constant 0 : i32
    return %c0_i32, %c0_i32_0 : i32, i32
  }
}

module attributes {stable_mosaic.version = 11 : i64} {
  func.func @conv_relu_pool_kernel(%arg0: i32, %arg1: memref<4x50x150xf32, #tpu.memory_space<vmem>>, %arg2: memref<150x16xf32, #tpu.memory_space<vmem>>, %arg3: memref<1x16xf32, #tpu.memory_space<vmem>>, %arg4: memref<50x16xf32, #tpu.memory_space<vmem>>) attributes {dimension_semantics = [#tpu.dimension_semantics<arbitrary>], iteration_bounds = array<i64: 1>, scalar_prefetch = 0 : i64, scratch_operands = 0 : i64, tpu.core_type = #tpu.core_type<tc>, window_params = [{pipeline_mode = #tpu.pipeline_mode<synchronous>, transform_indices = @transform_0, window_bounds = array<i64: 4, 50, 150>}, {pipeline_mode = #tpu.pipeline_mode<synchronous>, transform_indices = @transform_1, window_bounds = array<i64: 150, 16>}, {pipeline_mode = #tpu.pipeline_mode<synchronous>, transform_indices = @transform_2, window_bounds = array<i64: 1, 16>}, {pipeline_mode = #tpu.pipeline_mode<synchronous>, transform_indices = @transform_3, window_bounds = array<i64: 50, 16>}]} {
    %c0 = arith.constant 0 : index
    %c0_0 = arith.constant 0 : index
    %0 = vector.load %arg2[%c0, %c0_0] : memref<150x16xf32, #tpu.memory_space<vmem>>, vector<150x16xf32>
    %c0_1 = arith.constant 0 : index
    %c0_2 = arith.constant 0 : index
    %1 = vector.load %arg3[%c0_1, %c0_2] : memref<1x16xf32, #tpu.memory_space<vmem>>, vector<1x16xf32>
    %c0_3 = arith.constant 0 : index
    %c0_4 = arith.constant 0 : index
    %c0_5 = arith.constant 0 : index
    %2 = vector.load %arg1[%c0_3, %c0_4, %c0_5] : memref<4x50x150xf32, #tpu.memory_space<vmem>>, vector<1x50x150xf32>
    %3 = vector.shape_cast %2 : vector<1x50x150xf32> to vector<50x150xf32>
    %cst = arith.constant dense<0.000000e+00> : vector<50x16xf32>
    %4 = tpu.matmul %3, %0, %cst {dimension_numbers = #tpu.dot_dimension_numbers<[1], [0], [0], [1], [0, 0, 1, 1], [], []>} : vector<50x150xf32>, vector<150x16xf32>, vector<50x16xf32> -> vector<50x16xf32>
    %5 = vector.broadcast %1 : vector<1x16xf32> to vector<50x16xf32>
    %6 = arith.addf %4, %5 : vector<50x16xf32>
    %c1 = arith.constant 1 : index
    %c0_6 = arith.constant 0 : index
    %c0_7 = arith.constant 0 : index
    %7 = vector.load %arg1[%c1, %c0_6, %c0_7] : memref<4x50x150xf32, #tpu.memory_space<vmem>>, vector<1x50x150xf32>
    %8 = vector.shape_cast %7 : vector<1x50x150xf32> to vector<50x150xf32>
    %cst_8 = arith.constant dense<0.000000e+00> : vector<50x16xf32>
    %9 = tpu.matmul %8, %0, %cst_8 {dimension_numbers = #tpu.dot_dimension_numbers<[1], [0], [0], [1], [0, 0, 1, 1], [], []>} : vector<50x150xf32>, vector<150x16xf32>, vector<50x16xf32> -> vector<50x16xf32>
    %10 = vector.broadcast %1 : vector<1x16xf32> to vector<50x16xf32>
    %11 = arith.addf %9, %10 : vector<50x16xf32>
    %12 = arith.maximumf %6, %11 : vector<50x16xf32>
    %c2 = arith.constant 2 : index
    %c0_9 = arith.constant 0 : index
    %c0_10 = arith.constant 0 : index
    %13 = vector.load %arg1[%c2, %c0_9, %c0_10] : memref<4x50x150xf32, #tpu.memory_space<vmem>>, vector<1x50x150xf32>
    %14 = vector.shape_cast %13 : vector<1x50x150xf32> to vector<50x150xf32>
    %cst_11 = arith.constant dense<0.000000e+00> : vector<50x16xf32>
    %15 = tpu.matmul %14, %0, %cst_11 {dimension_numbers = #tpu.dot_dimension_numbers<[1], [0], [0], [1], [0, 0, 1, 1], [], []>} : vector<50x150xf32>, vector<150x16xf32>, vector<50x16xf32> -> vector<50x16xf32>
    %16 = vector.broadcast %1 : vector<1x16xf32> to vector<50x16xf32>
    %17 = arith.addf %15, %16 : vector<50x16xf32>
    %c3 = arith.constant 3 : index
    %c0_12 = arith.constant 0 : index
    %c0_13 = arith.constant 0 : index
    %18 = vector.load %arg1[%c3, %c0_12, %c0_13] : memref<4x50x150xf32, #tpu.memory_space<vmem>>, vector<1x50x150xf32>
    %19 = vector.shape_cast %18 : vector<1x50x150xf32> to vector<50x150xf32>
    %cst_14 = arith.constant dense<0.000000e+00> : vector<50x16xf32>
    %20 = tpu.matmul %19, %0, %cst_14 {dimension_numbers = #tpu.dot_dimension_numbers<[1], [0], [0], [1], [0, 0, 1, 1], [], []>} : vector<50x150xf32>, vector<150x16xf32>, vector<50x16xf32> -> vector<50x16xf32>
    %21 = vector.broadcast %1 : vector<1x16xf32> to vector<50x16xf32>
    %22 = arith.addf %20, %21 : vector<50x16xf32>
    %23 = arith.maximumf %17, %22 : vector<50x16xf32>
    %24 = arith.maximumf %12, %23 : vector<50x16xf32>
    %cst_15 = arith.constant 0.000000e+00 : f32
    %25 = vector.broadcast %cst_15 : f32 to vector<50x16xf32>
    %26 = arith.maximumf %24, %25 : vector<50x16xf32>
    %c0_16 = arith.constant 0 : index
    %c0_17 = arith.constant 0 : index
    %27 = vector.load %arg4[%c0_16, %c0_17] : memref<50x16xf32, #tpu.memory_space<vmem>>, vector<50x16xf32>
    tpu.vector_store %arg4[%c0_16, %c0_17], %26 {strides = array<i32>} : memref<50x16xf32, #tpu.memory_space<vmem>>, vector<50x16xf32>,
    return
  }
  func.func @transform_0(%arg0: i32) -> (i32, i32, i32) {
    %c0_i32 = arith.constant 0 : i32
    %c0_i32_0 = arith.constant 0 : i32
    %c0_i32_1 = arith.constant 0 : i32
    %c0_i32_2 = arith.constant 0 : i32
    return %c0_i32, %c0_i32_0, %c0_i32_1 : i32, i32, i32
  }
  func.func @transform_1(%arg0: i32) -> (i32, i32) {
    %c0_i32 = arith.constant 0 : i32
    %c0_i32_0 = arith.constant 0 : i32
    %c0_i32_1 = arith.constant 0 : i32
    return %c0_i32, %c0_i32_0 : i32, i32
  }
  func.func @transform_2(%arg0: i32) -> (i32, i32) {
    %c0_i32 = arith.constant 0 : i32
    %c0_i32_0 = arith.constant 0 : i32
    %c0_i32_1 = arith.constant 0 : i32
    return %c0_i32, %c0_i32_0 : i32, i32
  }
  func.func @transform_3(%arg0: i32) -> (i32, i32) {
    %c0_i32 = arith.constant 0 : i32
    %c0_i32_0 = arith.constant 0 : i32
    %c0_i32_1 = arith.constant 0 : i32
    return %c0_i32, %c0_i32_0 : i32, i32
  }
}

module attributes {stable_mosaic.version = 11 : i64} {
  func.func @mlp_kernel(%arg0: i32, %arg1: memref<2x400xf32, #tpu.memory_space<vmem>>, %arg2: memref<400x120xf32, #tpu.memory_space<vmem>>, %arg3: memref<1x120xf32, #tpu.memory_space<vmem>>, %arg4: memref<120x84xf32, #tpu.memory_space<vmem>>, %arg5: memref<1x84xf32, #tpu.memory_space<vmem>>, %arg6: memref<84x128xf32, #tpu.memory_space<vmem>>, %arg7: memref<1x128xf32, #tpu.memory_space<vmem>>, %arg8: memref<2x128xf32, #tpu.memory_space<vmem>>) attributes {dimension_semantics = [#tpu.dimension_semantics<arbitrary>], iteration_bounds = array<i64: 1>, scalar_prefetch = 0 : i64, scratch_operands = 0 : i64, tpu.core_type = #tpu.core_type<tc>, window_params = [{pipeline_mode = #tpu.pipeline_mode<synchronous>, transform_indices = @transform_0, window_bounds = array<i64: 2, 400>}, {pipeline_mode = #tpu.pipeline_mode<synchronous>, transform_indices = @transform_1, window_bounds = array<i64: 400, 120>}, {pipeline_mode = #tpu.pipeline_mode<synchronous>, transform_indices = @transform_2, window_bounds = array<i64: 1, 120>}, {pipeline_mode = #tpu.pipeline_mode<synchronous>, transform_indices = @transform_3, window_bounds = array<i64: 120, 84>}, {pipeline_mode = #tpu.pipeline_mode<synchronous>, transform_indices = @transform_4, window_bounds = array<i64: 1, 84>}, {pipeline_mode = #tpu.pipeline_mode<synchronous>, transform_indices = @transform_5, window_bounds = array<i64: 84, 128>}, {pipeline_mode = #tpu.pipeline_mode<synchronous>, transform_indices = @transform_6, window_bounds = array<i64: 1, 128>}, {pipeline_mode = #tpu.pipeline_mode<synchronous>, transform_indices = @transform_7, window_bounds = array<i64: 2, 128>}]} {
    %c0 = arith.constant 0 : index
    %c0_0 = arith.constant 0 : index
    %0 = vector.load %arg1[%c0, %c0_0] : memref<2x400xf32, #tpu.memory_space<vmem>>, vector<2x400xf32>
    %c0_1 = arith.constant 0 : index
    %c0_2 = arith.constant 0 : index
    %1 = vector.load %arg2[%c0_1, %c0_2] : memref<400x120xf32, #tpu.memory_space<vmem>>, vector<400x120xf32>
    %cst = arith.constant dense<0.000000e+00> : vector<2x120xf32>
    %2 = tpu.matmul %0, %1, %cst {dimension_numbers = #tpu.dot_dimension_numbers<[1], [0], [0], [1], [0, 0, 1, 1], [], []>} : vector<2x400xf32>, vector<400x120xf32>, vector<2x120xf32> -> vector<2x120xf32>
    %c0_3 = arith.constant 0 : index
    %c0_4 = arith.constant 0 : index
    %3 = vector.load %arg3[%c0_3, %c0_4] : memref<1x120xf32, #tpu.memory_space<vmem>>, vector<1x120xf32>
    %4 = vector.broadcast %3 : vector<1x120xf32> to vector<2x120xf32>
    %5 = arith.addf %2, %4 : vector<2x120xf32>
    %cst_5 = arith.constant 0.000000e+00 : f32
    %6 = vector.broadcast %cst_5 : f32 to vector<2x120xf32>
    %7 = arith.maximumf %5, %6 : vector<2x120xf32>
    %c0_6 = arith.constant 0 : index
    %c0_7 = arith.constant 0 : index
    %8 = vector.load %arg4[%c0_6, %c0_7] : memref<120x84xf32, #tpu.memory_space<vmem>>, vector<120x84xf32>
    %cst_8 = arith.constant dense<0.000000e+00> : vector<2x84xf32>
    %9 = tpu.matmul %7, %8, %cst_8 {dimension_numbers = #tpu.dot_dimension_numbers<[1], [0], [0], [1], [0, 0, 1, 1], [], []>} : vector<2x120xf32>, vector<120x84xf32>, vector<2x84xf32> -> vector<2x84xf32>
    %c0_9 = arith.constant 0 : index
    %c0_10 = arith.constant 0 : index
    %10 = vector.load %arg5[%c0_9, %c0_10] : memref<1x84xf32, #tpu.memory_space<vmem>>, vector<1x84xf32>
    %11 = vector.broadcast %10 : vector<1x84xf32> to vector<2x84xf32>
    %12 = arith.addf %9, %11 : vector<2x84xf32>
    %cst_11 = arith.constant 0.000000e+00 : f32
    %13 = vector.broadcast %cst_11 : f32 to vector<2x84xf32>
    %14 = arith.maximumf %12, %13 : vector<2x84xf32>
    %c0_12 = arith.constant 0 : index
    %c0_13 = arith.constant 0 : index
    %15 = vector.load %arg6[%c0_12, %c0_13] : memref<84x128xf32, #tpu.memory_space<vmem>>, vector<84x128xf32>
    %cst_14 = arith.constant dense<0.000000e+00> : vector<2x128xf32>
    %16 = tpu.matmul %14, %15, %cst_14 {dimension_numbers = #tpu.dot_dimension_numbers<[1], [0], [0], [1], [0, 0, 1, 1], [], []>} : vector<2x84xf32>, vector<84x128xf32>, vector<2x128xf32> -> vector<2x128xf32>
    %c0_15 = arith.constant 0 : index
    %c0_16 = arith.constant 0 : index
    %17 = vector.load %arg7[%c0_15, %c0_16] : memref<1x128xf32, #tpu.memory_space<vmem>>, vector<1x128xf32>
    %18 = vector.broadcast %17 : vector<1x128xf32> to vector<2x128xf32>
    %19 = arith.addf %16, %18 : vector<2x128xf32>
    %c0_17 = arith.constant 0 : index
    %c0_18 = arith.constant 0 : index
    %20 = vector.load %arg8[%c0_17, %c0_18] : memref<2x128xf32, #tpu.memory_space<vmem>>, vector<2x128xf32>
    tpu.vector_store %arg8[%c0_17, %c0_18], %19 {strides = array<i32>} : memref<2x128xf32, #tpu.memory_space<vmem>>, vector<2x128xf32>,
    return
  }
  func.func @transform_0(%arg0: i32) -> (i32, i32) {
    %c0_i32 = arith.constant 0 : i32
    %c0_i32_0 = arith.constant 0 : i32
    %c0_i32_1 = arith.constant 0 : i32
    return %c0_i32, %c0_i32_0 : i32, i32
  }
  func.func @transform_1(%arg0: i32) -> (i32, i32) {
    %c0_i32 = arith.constant 0 : i32
    %c0_i32_0 = arith.constant 0 : i32
    %c0_i32_1 = arith.constant 0 : i32
    return %c0_i32, %c0_i32_0 : i32, i32
  }
  func.func @transform_2(%arg0: i32) -> (i32, i32) {
    %c0_i32 = arith.constant 0 : i32
    %c0_i32_0 = arith.constant 0 : i32
    %c0_i32_1 = arith.constant 0 : i32
    return %c0_i32, %c0_i32_0 : i32, i32
  }
  func.func @transform_3(%arg0: i32) -> (i32, i32) {
    %c0_i32 = arith.constant 0 : i32
    %c0_i32_0 = arith.constant 0 : i32
    %c0_i32_1 = arith.constant 0 : i32
    return %c0_i32, %c0_i32_0 : i32, i32
  }
  func.func @transform_4(%arg0: i32) -> (i32, i32) {
    %c0_i32 = arith.constant 0 : i32
    %c0_i32_0 = arith.constant 0 : i32
    %c0_i32_1 = arith.constant 0 : i32
    return %c0_i32, %c0_i32_0 : i32, i32
  }
  func.func @transform_5(%arg0: i32) -> (i32, i32) {
    %c0_i32 = arith.constant 0 : i32
    %c0_i32_0 = arith.constant 0 : i32
    %c0_i32_1 = arith.constant 0 : i32
    return %c0_i32, %c0_i32_0 : i32, i32
  }
  func.func @transform_6(%arg0: i32) -> (i32, i32) {
    %c0_i32 = arith.constant 0 : i32
    %c0_i32_0 = arith.constant 0 : i32
    %c0_i32_1 = arith.constant 0 : i32
    return %c0_i32, %c0_i32_0 : i32, i32
  }
  func.func @transform_7(%arg0: i32) -> (i32, i32) {
    %c0_i32 = arith.constant 0 : i32
    %c0_i32_0 = arith.constant 0 : i32
    %c0_i32_1 = arith.constant 0 : i32
    return %c0_i32, %c0_i32_0 : i32, i32
  }
}

</mosaic_0001>

<llo_original>
// kernel: lenet_forward.3
$region0: #{lenet_forward.3}
  #allocation0 [shape = 'u32[]', space=smem, size = 0x4, offset = 0x4, fixed_abs, tag = 'smem constant byte address 0x4 - core index']
  #allocation1 [shape = 'u32[144,128]{1,0:T(1,128)}', space=vmem, size = 0x12000, scoped, tag = 'internal scratch']
  %s0 = inlined_call_operand.vmem [shape: f32[4,392,25], index: 0, kind: input, shape index: {}]
  %s1 = inlined_call_operand.vmem [shape: f32[25,6], index: 1, kind: input, shape index: {}]
  %s2 = inlined_call_operand.vmem [shape: f32[1,6], index: 2, kind: input, shape index: {}]
  %s3 = inlined_call_operand.vmem [shape: f32[392,6], index: 3, kind: output, shape index: {}]
  %s4 = sld [smem:[#allocation0]]
  $region22: #{lenet_forward.3} parent=0
    _
  %s6 = ssub.s32 1, %s4
  %s7 = scalar_select 0, %s6, %s4
  // Predicated region
  $region2: #{lenet_forward.3} parent=0 // pred_check
    _
  $region3: #{lenet_forward.3} parent=0 // pred_check_branch
    %9 = sbr.rel (0) target = $region5
  $region4: #{lenet_forward.3} parent=0 // pred_region
    _
  $region5: #{lenet_forward.3} parent=0 // pred_fallthru
    _
  // Predicated region
  $region6: #{lenet_forward.3} parent=0 // pred_check
    _
  $region7: #{lenet_forward.3} parent=0 // pred_check_branch
    %11 = sbr.rel (0) target = $region9
  $region8: #{lenet_forward.3} parent=0 // pred_region
    _
  $region9: #{lenet_forward.3} parent=0 // pred_fallthru
    _
  // Predicated region
  $region10: #{lenet_forward.3} parent=0 // pred_check
    _
  $region11: #{lenet_forward.3} parent=0 // pred_check_branch
    %13 = sbr.rel (0) target = $region13
  $region12: #{lenet_forward.3} parent=0 // pred_region
    _
  $region13: #{lenet_forward.3} parent=0 // pred_fallthru
    _
  %v14 = vld [vmem:[%s1] sm:$0xff]
  %v15 = vld [vmem:[%s1 + $0x8] sm:$0xff]
  %v16 = vld [vmem:[%s1 + $0x10] sm:$0xff]
  %v17 = vld [vmem:[%s1 + $0x18] sm:$0x1]
  %v18 = vld [vmem:[%s2] sm:$0x1]
  %v19 = vld [vmem:[%s0] sm:$0xff]
  %v20 = vld [vmem:[%s0 + $0x8] sm:$0xff]
  %v21 = vld [vmem:[%s0 + $0x10] sm:$0xff]
  %v22 = vld [vmem:[%s0 + $0x18] sm:$0xff]
  %v23 = vld [vmem:[%s0 + $0x20] sm:$0xff]
  %v24 = vld [vmem:[%s0 + $0x28] sm:$0xff]
  %v25 = vld [vmem:[%s0 + $0x30] sm:$0xff]
  %v26 = vld [vmem:[%s0 + $0x38] sm:$0xff]
  %v27 = vld [vmem:[%s0 + $0x40] sm:$0xff]
  %v28 = vld [vmem:[%s0 + $0x48] sm:$0xff]
  %v29 = vld [vmem:[%s0 + $0x50] sm:$0xff]
  %v30 = vld [vmem:[%s0 + $0x58] sm:$0xff]
  %v31 = vld [vmem:[%s0 + $0x60] sm:$0xff]
  %v32 = vld [vmem:[%s0 + $0x68] sm:$0xff]
  %v33 = vld [vmem:[%s0 + $0x70] sm:$0xff]
  %v34 = vld [vmem:[%s0 + $0x78] sm:$0xff]
  %v35 = vld [vmem:[%s0 + $0x80] sm:$0xff]
  %v36 = vld [vmem:[%s0 + $0x88] sm:$0xff]
  %v37 = vld [vmem:[%s0 + $0x90] sm:$0xff]
  %v38 = vld [vmem:[%s0 + $0x98] sm:$0xff]
  %v39 = vld [vmem:[%s0 + $0xa0] sm:$0xff]
  %v40 = vld [vmem:[%s0 + $0xa8] sm:$0xff]
  %v41 = vld [vmem:[%s0 + $0xb0] sm:$0xff]
  %v42 = vld [vmem:[%s0 + $0xb8] sm:$0xff]
  %v43 = vld [vmem:[%s0 + $0xc0] sm:$0xff]
  %v44 = vld [vmem:[%s0 + $0xc8] sm:$0xff]
  %v45 = vld [vmem:[%s0 + $0xd0] sm:$0xff]
  %v46 = vld [vmem:[%s0 + $0xd8] sm:$0xff]
  %v47 = vld [vmem:[%s0 + $0xe0] sm:$0xff]
  %v48 = vld [vmem:[%s0 + $0xe8] sm:$0xff]
  %v49 = vld [vmem:[%s0 + $0xf0] sm:$0xff]
  %v50 = vld [vmem:[%s0 + $0xf8] sm:$0xff]
  %v51 = vld [vmem:[%s0 + $0x100] sm:$0xff]
  %v52 = vld [vmem:[%s0 + $0x108] sm:$0xff]
  %v53 = vld [vmem:[%s0 + $0x110] sm:$0xff]
  %v54 = vld [vmem:[%s0 + $0x118] sm:$0xff]
  %v55 = vld [vmem:[%s0 + $0x120] sm:$0xff]
  %v56 = vld [vmem:[%s0 + $0x128] sm:$0xff]
  %v57 = vld [vmem:[%s0 + $0x130] sm:$0xff]
  %v58 = vld [vmem:[%s0 + $0x138] sm:$0xff]
  %v59 = vld [vmem:[%s0 + $0x140] sm:$0xff]
  %v60 = vld [vmem:[%s0 + $0x148] sm:$0xff]
  %v61 = vld [vmem:[%s0 + $0x150] sm:$0xff]
  %v62 = vld [vmem:[%s0 + $0x158] sm:$0xff]
  %v63 = vld [vmem:[%s0 + $0x160] sm:$0xff]
  %v64 = vld [vmem:[%s0 + $0x168] sm:$0xff]
  %v65 = vld [vmem:[%s0 + $0x170] sm:$0xff]
  %v66 = vld [vmem:[%s0 + $0x178] sm:$0xff]
  %v67 = vld [vmem:[%s0 + $0x180] sm:$0xff]
  %v69 = vlaneseq
  %v70 = vshrl.u32 %v69, 7
  %v71 = vsub.s32 0, %v70
  %v72 = vrot.slane %v18, %v71
  %vm74 = vcmask 203776
  %v76 = vsel %vm74, %v19, 0
  %v79 = vsel %vm74, %v20, 0
  %v82 = vsel %vm74, %v21, 0
  %v85 = vsel %vm74, %v22, 0
  %v88 = vsel %vm74, %v23, 0
  %v91 = vsel %vm74, %v24, 0
  %v94 = vsel %vm74, %v25, 0
  %v97 = vsel %vm74, %v26, 0
  %v100 = vsel %vm74, %v27, 0
  %v103 = vsel %vm74, %v28, 0
  %v106 = vsel %vm74, %v29, 0
  %v109 = vsel %vm74, %v30, 0
  %v112 = vsel %vm74, %v31, 0
  %v115 = vsel %vm74, %v32, 0
  %v118 = vsel %vm74, %v33, 0
  %v121 = vsel %vm74, %v34, 0
  %v124 = vsel %vm74, %v35, 0
  %v127 = vsel %vm74, %v36, 0
  %v130 = vsel %vm74, %v37, 0
  %v133 = vsel %vm74, %v38, 0
  %v136 = vsel %vm74, %v39, 0
  %v139 = vsel %vm74, %v40, 0
  %v142 = vsel %vm74, %v41, 0
  %v145 = vsel %vm74, %v42, 0
  %v148 = vsel %vm74, %v43, 0
  %v151 = vsel %vm74, %v44, 0
  %v154 = vsel %vm74, %v45, 0
  %v157 = vsel %vm74, %v46, 0
  %v160 = vsel %vm74, %v47, 0
  %v163 = vsel %vm74, %v48, 0
  %v166 = vsel %vm74, %v49, 0
  %v169 = vsel %vm74, %v50, 0
  %v172 = vsel %vm74, %v51, 0
  %v175 = vsel %vm74, %v52, 0
  %v178 = vsel %vm74, %v53, 0
  %v181 = vsel %vm74, %v54, 0
  %v184 = vsel %vm74, %v55, 0
  %v187 = vsel %vm74, %v56, 0
  %v190 = vsel %vm74, %v57, 0
  %v193 = vsel %vm74, %v58, 0
  %v196 = vsel %vm74, %v59, 0
  %v199 = vsel %vm74, %v60, 0
  %v202 = vsel %vm74, %v61, 0
  %v205 = vsel %vm74, %v62, 0
  %v208 = vsel %vm74, %v63, 0
  %v211 = vsel %vm74, %v64, 0
  %v214 = vsel %vm74, %v65, 0
  %v217 = vsel %vm74, %v66, 0
  %v220 = vsel %vm74, %v67, 0
  %vm222 = vcmask 1040384
  %v224 = vsel %vm222, %v17, 0
  %226 = vmatprep.subr.mxu0 0.0
  %227 = vmatpush1.msra.mxu0 %v14
  %228 = vmatprep.subr.mxu0 0.0
  %229 = vmatpush1.msra.mxu0 %v15
  %230 = vmatprep.subr.mxu0 0.0
  %231 = vmatpush1.msra.mxu0 %v16
  %232 = vmatprep.subr.mxu0 0.0
  %233 = vmatpush1.msra.mxu0 %v224
  %234 = vmatprep.subr.mxu0 0.0
  %235 = vmatpush1.msra.mxu0 0.0
  %236 = vmatprep.subr.mxu0 0.0
  %237 = vmatpush1.msra.mxu0 0.0
  %238 = vmatprep.subr.mxu0 0.0
  %239 = vmatpush1.msra.mxu0 0.0
  %240 = vmatprep.subr.mxu0 0.0
  %241 = vmatpush1.msra.mxu0 0.0
  %242 = vmatprep.subr.mxu0 0.0
  %243 = vmatpush1.msra.mxu0 0.0
  %244 = vmatprep.subr.mxu0 0.0
  %245 = vmatpush1.msra.mxu0 0.0
  %246 = vmatprep.subr.mxu0 0.0
  %247 = vmatpush1.msra.mxu0 0.0
  %248 = vmatprep.subr.mxu0 0.0
  %249 = vmatpush1.msra.mxu0 0.0
  %250 = vmatprep.subr.mxu0 0.0
  %251 = vmatpush1.msra.mxu0 0.0
  %252 = vmatprep.subr.mxu0 0.0
  %253 = vmatpush1.msra.mxu0 0.0
  %254 = vmatprep.subr.mxu0 0.0
  %255 = vmatpush1.msra.mxu0 0.0
  %256 = vmatprep.subr.mxu0 0.0
  %257 = vmatpush1.msra.mxu0 0.0
  %258 = vmatprep.subr.mxu0 0.0
  %259 = vmatpush1.msra.mxu0 0.0
  %260 = vmatprep.subr.mxu0 0.0
  %261 = vmatpush1.msra.mxu0 0.0
  %262 = vmatprep.subr.mxu0 0.0
  %263 = vmatpush1.msra.mxu0 0.0
  %264 = vmatprep.subr.mxu0 0.0
  %265 = vmatpush1.msra.mxu0 0.0
  %266 = vmatprep.subr.mxu0 0.0
  %267 = vmatpush1.msra.mxu0 0.0
  %268 = vmatprep.subr.mxu0 0.0
  %269 = vmatpush1.msra.mxu0 0.0
  %270 = vmatprep.subr.mxu0 0.0
  %271 = vmatpush1.msra.mxu0 0.0
  %272 = vmatprep.subr.mxu0 0.0
  %273 = vmatpush1.msra.mxu0 0.0
  %274 = vmatprep.subr.mxu0 0.0
  %275 = vmatpush1.msra.mxu0 0.0
  %276 = vmatprep.subr.mxu0 0.0
  %277 = vmatpush1.msra.mxu0 0.0
  %278 = vmatprep.subr.mxu0 0.0
  %279 = vmatpush1.msra.mxu0 0.0
  %280 = vmatprep.subr.mxu0 0.0
  %281 = vmatpush1.msra.mxu0 0.0
  %282 = vmatprep.subr.mxu0 0.0
  %283 = vmatpush1.msra.mxu0 0.0
  %284 = vmatprep.subr.mxu0 0.0
  %285 = vmatpush1.msra.mxu0 0.0
  %286 = vmatprep.subr.mxu0 0.0
  %287 = vmatpush1.msra.mxu0 0.0
  %288 = vmatprep.subr.mxu0 0.0
  %289 = vmatpush1.msra.mxu0 0.0
  %290 = vmatprep.mubr.f32.mxu0 0.0
  %291 = vmatmul.mubr.f32.gmra.mrb[0].mxu0 %v76
  %v292 = vpop.f32.mrb[0].mxu0
  %v293 = vadd.f32 %v72, %v292
  %v294 = vpop.f32.mrb[0].mxu0
  %295 = vmatprep.mubr.f32.mxu0 0.0
  %296 = vmatmul.mubr.f32.gmra.mrb[0].mxu0 %v79
  %v297 = vpop.f32.mrb[0].mxu0
  %v298 = vadd.f32 %v72, %v297
  %v299 = vpop.f32.mrb[0].mxu0
  %300 = vmatprep.mubr.f32.mxu0 0.0
  %301 = vmatmul.mubr.f32.gmra.mrb[0].mxu0 %v82
  %v302 = vpop.f32.mrb[0].mxu0
  %v303 = vadd.f32 %v72, %v302
  %v304 = vpop.f32.mrb[0].mxu0
  %305 = vmatprep.mubr.f32.mxu0 0.0
  %306 = vmatmul.mubr.f32.gmra.mrb[0].mxu0 %v85
  %v307 = vpop.f32.mrb[0].mxu0
  %v308 = vadd.f32 %v72, %v307
  %v309 = vpop.f32.mrb[0].mxu0
  %310 = vmatprep.mubr.f32.mxu0 0.0
  %311 = vmatmul.mubr.f32.gmra.mrb[0].mxu0 %v88
  %v312 = vpop.f32.mrb[0].mxu0
  %v313 = vadd.f32 %v72, %v312
  %v314 = vpop.f32.mrb[0].mxu0
  %315 = vmatprep.mubr.f32.mxu0 0.0
  %316 = vmatmul.mubr.f32.gmra.mrb[0].mxu0 %v91
  %v317 = vpop.f32.mrb[0].mxu0
  %v318 = vadd.f32 %v72, %v317
  %v319 = vpop.f32.mrb[0].mxu0
  %320 = vmatprep.mubr.f32.mxu0 0.0
  %321 = vmatmul.mubr.f32.gmra.mrb[0].mxu0 %v94
  %v322 = vpop.f32.mrb[0].mxu0
  %v323 = vadd.f32 %v72, %v322
  %v324 = vpop.f32.mrb[0].mxu0
  %325 = vmatprep.mubr.f32.mxu0 0.0
  %326 = vmatmul.mubr.f32.gmra.mrb[0].mxu0 %v97
  %v327 = vpop.f32.mrb[0].mxu0
  %v328 = vadd.f32 %v72, %v327
  %v329 = vpop.f32.mrb[0].mxu0
  %330 = vmatprep.mubr.f32.mxu0 0.0
  %331 = vmatmul.mubr.f32.gmra.mrb[0].mxu0 %v100
  %v332 = vpop.f32.mrb[0].mxu0
  %v333 = vadd.f32 %v72, %v332
  %v334 = vpop.f32.mrb[0].mxu0
  %335 = vmatprep.mubr.f32.mxu0 0.0
  %336 = vmatmul.mubr.f32.gmra.mrb[0].mxu0 %v103
  %v337 = vpop.f32.mrb[0].mxu0
  %v338 = vadd.f32 %v72, %v337
  %v339 = vpop.f32.mrb[0].mxu0
  %340 = vmatprep.mubr.f32.mxu0 0.0
  %341 = vmatmul.mubr.f32.gmra.mrb[0].mxu0 %v106
  %v342 = vpop.f32.mrb[0].mxu0
  %v343 = vadd.f32 %v72, %v342
  %v344 = vpop.f32.mrb[0].mxu0
  %345 = vmatprep.mubr.f32.mxu0 0.0
  %346 = vmatmul.mubr.f32.gmra.mrb[0].mxu0 %v109
  %v347 = vpop.f32.mrb[0].mxu0
  %v348 = vadd.f32 %v72, %v347
  %v349 = vpop.f32.mrb[0].mxu0
  %350 = vmatprep.mubr.f32.mxu0 0.0
  %351 = vmatmul.mubr.f32.gmra.mrb[0].mxu0 %v112
  %v352 = vpop.f32.mrb[0].mxu0
  %v353 = vadd.f32 %v72, %v352
  %v354 = vpop.f32.mrb[0].mxu0
  %355 = vmatprep.mubr.f32.mxu0 0.0
  %356 = vmatmul.mubr.f32.gmra.mrb[0].mxu0 %v115
  %v357 = vpop.f32.mrb[0].mxu0
  %v358 = vadd.f32 %v72, %v357
  %v359 = vpop.f32.mrb[0].mxu0
  %360 = vmatprep.mubr.f32.mxu0 0.0
  %361 = vmatmul.mubr.f32.gmra.mrb[0].mxu0 %v118
  %v362 = vpop.f32.mrb[0].mxu0
  %v363 = vadd.f32 %v72, %v362
  %v364 = vpop.f32.mrb[0].mxu0
  %365 = vmatprep.mubr.f32.mxu0 0.0
  %366 = vmatmul.mubr.f32.gmra.mrb[0].mxu0 %v121
  %v367 = vpop.f32.mrb[0].mxu0
  %v368 = vadd.f32 %v72, %v367
  %v369 = vpop.f32.mrb[0].mxu0
  %370 = vmatprep.mubr.f32.mxu0 0.0
  %371 = vmatmul.mubr.f32.gmra.mrb[0].mxu0 %v124
  %v372 = vpop.f32.mrb[0].mxu0
  %v373 = vadd.f32 %v72, %v372
  %v374 = vpop.f32.mrb[0].mxu0
  %375 = vmatprep.mubr.f32.mxu0 0.0
  %376 = vmatmul.mubr.f32.gmra.mrb[0].mxu0 %v127
  %v377 = vpop.f32.mrb[0].mxu0
  %v378 = vadd.f32 %v72, %v377
  %v379 = vpop.f32.mrb[0].mxu0
  %380 = vmatprep.mubr.f32.mxu0 0.0
  %381 = vmatmul.mubr.f32.gmra.mrb[0].mxu0 %v130
  %v382 = vpop.f32.mrb[0].mxu0
  %v383 = vadd.f32 %v72, %v382
  %v384 = vpop.f32.mrb[0].mxu0
  %385 = vmatprep.mubr.f32.mxu0 0.0
  %386 = vmatmul.mubr.f32.gmra.mrb[0].mxu0 %v133
  %v387 = vpop.f32.mrb[0].mxu0
  %v388 = vadd.f32 %v72, %v387
  %v389 = vpop.f32.mrb[0].mxu0
  %390 = vmatprep.mubr.f32.mxu0 0.0
  %391 = vmatmul.mubr.f32.gmra.mrb[0].mxu0 %v136
  %v392 = vpop.f32.mrb[0].mxu0
  %v393 = vadd.f32 %v72, %v392
  %v394 = vpop.f32.mrb[0].mxu0
  %395 = vmatprep.mubr.f32.mxu0 0.0
  %396 = vmatmul.mubr.f32.gmra.mrb[0].mxu0 %v139
  %v397 = vpop.f32.mrb[0].mxu0
  %v398 = vadd.f32 %v72, %v397
  %v399 = vpop.f32.mrb[0].mxu0
  %400 = vmatprep.mubr.f32.mxu0 0.0
  %401 = vmatmul.mubr.f32.gmra.mrb[0].mxu0 %v142
  %v402 = vpop.f32.mrb[0].mxu0
  %v403 = vadd.f32 %v72, %v402
  %v404 = vpop.f32.mrb[0].mxu0
  %405 = vmatprep.mubr.f32.mxu0 0.0
  %406 = vmatmul.mubr.f32.gmra.mrb[0].mxu0 %v145
  %v407 = vpop.f32.mrb[0].mxu0
  %v408 = vadd.f32 %v72, %v407
  %v409 = vpop.f32.mrb[0].mxu0
  %410 = vmatprep.mubr.f32.mxu0 0.0
  %411 = vmatmul.mubr.f32.gmra.mrb[0].mxu0 %v148
  %v412 = vpop.f32.mrb[0].mxu0
  %v413 = vadd.f32 %v72, %v412
  %v414 = vpop.f32.mrb[0].mxu0
  %415 = vmatprep.mubr.f32.mxu0 0.0
  %416 = vmatmul.mubr.f32.gmra.mrb[0].mxu0 %v151
  %v417 = vpop.f32.mrb[0].mxu0
  %v418 = vadd.f32 %v72, %v417
  %v419 = vpop.f32.mrb[0].mxu0
  %420 = vmatprep.mubr.f32.mxu0 0.0
  %421 = vmatmul.mubr.f32.gmra.mrb[0].mxu0 %v154
  %v422 = vpop.f32.mrb[0].mxu0
  %v423 = vadd.f32 %v72, %v422
  %v424 = vpop.f32.mrb[0].mxu0
  %425 = vmatprep.mubr.f32.mxu0 0.0
  %426 = vmatmul.mubr.f32.gmra.mrb[0].mxu0 %v157
  %v427 = vpop.f32.mrb[0].mxu0
  %v428 = vadd.f32 %v72, %v427
  %v429 = vpop.f32.mrb[0].mxu0
  %430 = vmatprep.mubr.f32.mxu0 0.0
  %431 = vmatmul.mubr.f32.gmra.mrb[0].mxu0 %v160
  %v432 = vpop.f32.mrb[0].mxu0
  %v433 = vadd.f32 %v72, %v432
  %v434 = vpop.f32.mrb[0].mxu0
  %435 = vmatprep.mubr.f32.mxu0 0.0
  %436 = vmatmul.mubr.f32.gmra.mrb[0].mxu0 %v163
  %v437 = vpop.f32.mrb[0].mxu0
  %v438 = vadd.f32 %v72, %v437
  %v439 = vpop.f32.mrb[0].mxu0
  %440 = vmatprep.mubr.f32.mxu0 0.0
  %441 = vmatmul.mubr.f32.gmra.mrb[0].mxu0 %v166
  %v442 = vpop.f32.mrb[0].mxu0
  %v443 = vadd.f32 %v72, %v442
  %v444 = vpop.f32.mrb[0].mxu0
  %445 = vmatprep.mubr.f32.mxu0 0.0
  %446 = vmatmul.mubr.f32.gmra.mrb[0].mxu0 %v169
  %v447 = vpop.f32.mrb[0].mxu0
  %v448 = vadd.f32 %v72, %v447
  %v449 = vpop.f32.mrb[0].mxu0
  %450 = vmatprep.mubr.f32.mxu0 0.0
  %451 = vmatmul.mubr.f32.gmra.mrb[0].mxu0 %v172
  %v452 = vpop.f32.mrb[0].mxu0
  %v453 = vadd.f32 %v72, %v452
  %v454 = vpop.f32.mrb[0].mxu0
  %455 = vmatprep.mubr.f32.mxu0 0.0
  %456 = vmatmul.mubr.f32.gmra.mrb[0].mxu0 %v175
  %v457 = vpop.f32.mrb[0].mxu0
  %v458 = vadd.f32 %v72, %v457
  %v459 = vpop.f32.mrb[0].mxu0
  %460 = vmatprep.mubr.f32.mxu0 0.0
  %461 = vmatmul.mubr.f32.gmra.mrb[0].mxu0 %v178
  %v462 = vpop.f32.mrb[0].mxu0
  %v463 = vadd.f32 %v72, %v462
  %v464 = vpop.f32.mrb[0].mxu0
  %465 = vmatprep.mubr.f32.mxu0 0.0
  %466 = vmatmul.mubr.f32.gmra.mrb[0].mxu0 %v181
  %v467 = vpop.f32.mrb[0].mxu0
  %v468 = vadd.f32 %v72, %v467
  %v469 = vpop.f32.mrb[0].mxu0
  %470 = vmatprep.mubr.f32.mxu0 0.0
  %471 = vmatmul.mubr.f32.gmra.mrb[0].mxu0 %v184
  %v472 = vpop.f32.mrb[0].mxu0
  %v473 = vadd.f32 %v72, %v472
  %v474 = vpop.f32.mrb[0].mxu0
  %475 = vmatprep.mubr.f32.mxu0 0.0
  %476 = vmatmul.mubr.f32.gmra.mrb[0].mxu0 %v187
  %v477 = vpop.f32.mrb[0].mxu0
  %v478 = vadd.f32 %v72, %v477
  %v479 = vpop.f32.mrb[0].mxu0
  %480 = vmatprep.mubr.f32.mxu0 0.0
  %481 = vmatmul.mubr.f32.gmra.mrb[0].mxu0 %v190
  %v482 = vpop.f32.mrb[0].mxu0
  %v483 = vadd.f32 %v72, %v482
  %v484 = vpop.f32.mrb[0].mxu0
  %485 = vmatprep.mubr.f32.mxu0 0.0
  %486 = vmatmul.mubr.f32.gmra.mrb[0].mxu0 %v193
  %v487 = vpop.f32.mrb[0].mxu0
  %v488 = vadd.f32 %v72, %v487
  %v489 = vpop.f32.mrb[0].mxu0
  %490 = vmatprep.mubr.f32.mxu0 0.0
  %491 = vmatmul.mubr.f32.gmra.mrb[0].mxu0 %v196
  %v492 = vpop.f32.mrb[0].mxu0
  %v493 = vadd.f32 %v72, %v492
  %v494 = vpop.f32.mrb[0].mxu0
  %495 = vmatprep.mubr.f32.mxu0 0.0
  %496 = vmatmul.mubr.f32.gmra.mrb[0].mxu0 %v199
  %v497 = vpop.f32.mrb[0].mxu0
  %v498 = vadd.f32 %v72, %v497
  %v499 = vpop.f32.mrb[0].mxu0
  %500 = vmatprep.mubr.f32.mxu0 0.0
  %501 = vmatmul.mubr.f32.gmra.mrb[0].mxu0 %v202
  %v502 = vpop.f32.mrb[0].mxu0
  %v503 = vadd.f32 %v72, %v502
  %v504 = vpop.f32.mrb[0].mxu0
  %505 = vmatprep.mubr.f32.mxu0 0.0
  %506 = vmatmul.mubr.f32.gmra.mrb[0].mxu0 %v205
  %v507 = vpop.f32.mrb[0].mxu0
  %v508 = vadd.f32 %v72, %v507
  %v509 = vpop.f32.mrb[0].mxu0
  %510 = vmatprep.mubr.f32.mxu0 0.0
  %511 = vmatmul.mubr.f32.gmra.mrb[0].mxu0 %v208
  %v512 = vpop.f32.mrb[0].mxu0
  %v513 = vadd.f32 %v72, %v512
  %v514 = vpop.f32.mrb[0].mxu0
  %515 = vmatprep.mubr.f32.mxu0 0.0
  %516 = vmatmul.mubr.f32.gmra.mrb[0].mxu0 %v211
  %v517 = vpop.f32.mrb[0].mxu0
  %v518 = vadd.f32 %v72, %v517
  %v519 = vpop.f32.mrb[0].mxu0
  %520 = vmatprep.mubr.f32.mxu0 0.0
  %521 = vmatmul.mubr.f32.gmra.mrb[0].mxu0 %v214
  %v522 = vpop.f32.mrb[0].mxu0
  %v523 = vadd.f32 %v72, %v522
  %v524 = vpop.f32.mrb[0].mxu0
  %525 = vmatprep.mubr.f32.mxu0 0.0
  %526 = vmatmul.mubr.f32.gmra.mrb[0].mxu0 %v217
  %v527 = vpop.f32.mrb[0].mxu0
  %v528 = vadd.f32 %v72, %v527
  %v529 = vpop.f32.mrb[0].mxu0
  %530 = vmatprep.mubr.f32.mxu0 0.0
  %531 = vmatmul.mubr.f32.gmra.mrb[0].mxu0 %v220
  %v532 = vpop.f32.mrb[0].mxu0
  %v533 = vadd.f32 %v72, %v532
  %v534 = vpop.f32.mrb[0].mxu0
  %535 = vdwg.mxu0
  %s536 = scalar_lea.vmem %s0, 392
  %v537 = vld [vmem:[%s536] sm:$0xff]
  %v538 = vld [vmem:[%s536 + $0x8] sm:$0xff]
  %v539 = vld [vmem:[%s536 + $0x10] sm:$0xff]
  %v540 = vld [vmem:[%s536 + $0x18] sm:$0xff]
  %v541 = vld [vmem:[%s536 + $0x20] sm:$0xff]
  %v542 = vld [vmem:[%s536 + $0x28] sm:$0xff]
  %v543 = vld [vmem:[%s536 + $0x30] sm:$0xff]
  %v544 = vld [vmem:[%s536 + $0x38] sm:$0xff]
  %v545 = vld [vmem:[%s536 + $0x40] sm:$0xff]
  %v546 = vld [vmem:[%s536 + $0x48] sm:$0xff]
  %v547 = vld [vmem:[%s536 + $0x50] sm:$0xff]
  %v548 = vld [vmem:[%s536 + $0x58] sm:$0xff]
  %v549 = vld [vmem:[%s536 + $0x60] sm:$0xff]
  %v550 = vld [vmem:[%s536 + $0x68] sm:$0xff]
  %v551 = vld [vmem:[%s536 + $0x70] sm:$0xff]
  %v552 = vld [vmem:[%s536 + $0x78] sm:$0xff]
  %v553 = vld [vmem:[%s536 + $0x80] sm:$0xff]
  %v554 = vld [vmem:[%s536 + $0x88] sm:$0xff]
  %v555 = vld [vmem:[%s536 + $0x90] sm:$0xff]
  %v556 = vld [vmem:[%s536 + $0x98] sm:$0xff]
  %v557 = vld [vmem:[%s536 + $0xa0] sm:$0xff]
  %v558 = vld [vmem:[%s536 + $0xa8] sm:$0xff]
  %v559 = vld [vmem:[%s536 + $0xb0] sm:$0xff]
  %v560 = vld [vmem:[%s536 + $0xb8] sm:$0xff]
  %v561 = vld [vmem:[%s536 + $0xc0] sm:$0xff]
  %v562 = vld [vmem:[%s536 + $0xc8] sm:$0xff]
  %v563 = vld [vmem:[%s536 + $0xd0] sm:$0xff]
  %v564 = vld [vmem:[%s536 + $0xd8] sm:$0xff]
  %v565 = vld [vmem:[%s536 + $0xe0] sm:$0xff]
  %v566 = vld [vmem:[%s536 + $0xe8] sm:$0xff]
  %v567 = vld [vmem:[%s536 + $0xf0] sm:$0xff]
  %v568 = vld [vmem:[%s536 + $0xf8] sm:$0xff]
  %v569 = vld [vmem:[%s536 + $0x100] sm:$0xff]
  %v570 = vld [vmem:[%s536 + $0x108] sm:$0xff]
  %v571 = vld [vmem:[%s536 + $0x110] sm:$0xff]
  %v572 = vld [vmem:[%s536 + $0x118] sm:$0xff]
  %v573 = vld [vmem:[%s536 + $0x120] sm:$0xff]
  %v574 = vld [vmem:[%s536 + $0x128] sm:$0xff]
  %v575 = vld [vmem:[%s536 + $0x130] sm:$0xff]
  %v576 = vld [vmem:[%s536 + $0x138] sm:$0xff]
  %v577 = vld [vmem:[%s536 + $0x140] sm:$0xff]
  %v578 = vld [vmem:[%s536 + $0x148] sm:$0xff]
  %v579 = vld [vmem:[%s536 + $0x150] sm:$0xff]
  %v580 = vld [vmem:[%s536 + $0x158] sm:$0xff]
  %v581 = vld [vmem:[%s536 + $0x160] sm:$0xff]
  %v582 = vld [vmem:[%s536 + $0x168] sm:$0xff]
  %v583 = vld [vmem:[%s536 + $0x170] sm:$0xff]
  %v584 = vld [vmem:[%s536 + $0x178] sm:$0xff]
  %v585 = vld [vmem:[%s536 + $0x180] sm:$0xff]
  %v587 = vsel %vm74, %v537, 0
  %v590 = vsel %vm74, %v538, 0
  %v593 = vsel %vm74, %v539, 0
  %v596 = vsel %vm74, %v540, 0
  %v599 = vsel %vm74, %v541, 0
  %v602 = vsel %vm74, %v542, 0
  %v605 = vsel %vm74, %v543, 0
  %v608 = vsel %vm74, %v544, 0
  %v611 = vsel %vm74, %v545, 0
  %v614 = vsel %vm74, %v546, 0
  %v617 = vsel %vm74, %v547, 0
  %v620 = vsel %vm74, %v548, 0
  %v623 = vsel %vm74, %v549, 0
  %v626 = vsel %vm74, %v550, 0
  %v629 = vsel %vm74, %v551, 0
  %v632 = vsel %vm74, %v552, 0
  %v635 = vsel %vm74, %v553, 0
  %v638 = vsel %vm74, %v554, 0
  %v641 = vsel %vm74, %v555, 0
  %v644 = vsel %vm74, %v556, 0
  %v647 = vsel %vm74, %v557, 0
  %v650 = vsel %vm74, %v558, 0
  %v653 = vsel %vm74, %v559, 0
  %v656 = vsel %vm74, %v560, 0
  %v659 = vsel %vm74, %v561, 0
  %v662 = vsel %vm74, %v562, 0
  %v665 = vsel %vm74, %v563, 0
  %v668 = vsel %vm74, %v564, 0
  %v671 = vsel %vm74, %v565, 0
  %v674 = vsel %vm74, %v566, 0
  %v677 = vsel %vm74, %v567, 0
  %v680 = vsel %vm74, %v568, 0
  %v683 = vsel %vm74, %v569, 0
  %v686 = vsel %vm74, %v570, 0
  %v689 = vsel %vm74, %v571, 0
  %v692 = vsel %vm74, %v572, 0
  %v695 = vsel %vm74, %v573, 0
  %v698 = vsel %vm74, %v574, 0
  %v701 = vsel %vm74, %v575, 0
  %v704 = vsel %vm74, %v576, 0
  %v707 = vsel %vm74, %v577, 0
  %v710 = vsel %vm74, %v578, 0
  %v713 = vsel %vm74, %v579, 0
  %v716 = vsel %vm74, %v580, 0
  %v719 = vsel %vm74, %v581, 0
  %v722 = vsel %vm74, %v582, 0
  %v725 = vsel %vm74, %v583, 0
  %v728 = vsel %vm74, %v584, 0
  %v731 = vsel %vm74, %v585, 0
  %733 = vmatprep.subr.mxu0 0.0
  %734 = vmatpush1.msra.mxu0 %v14
  %735 = vmatprep.subr.mxu0 0.0
  %736 = vmatpush1.msra.mxu0 %v15
  %737 = vmatprep.subr.mxu0 0.0
  %738 = vmatpush1.msra.mxu0 %v16
  %739 = vmatprep.subr.mxu0 0.0
  %740 = vmatpush1.msra.mxu0 %v224
  %741 = vmatprep.subr.mxu0 0.0
  %742 = vmatpush1.msra.mxu0 0.0
  %743 = vmatprep.subr.mxu0 0.0
  %744 = vmatpush1.msra.mxu0 0.0
  %745 = vmatprep.subr.mxu0 0.0
  %746 = vmatpush1.msra.mxu0 0.0
  %747 = vmatprep.subr.mxu0 0.0
  %748 = vmatpush1.msra.mxu0 0.0
  %749 = vmatprep.subr.mxu0 0.0
  %750 = vmatpush1.msra.mxu0 0.0
  %751 = vmatprep.subr.mxu0 0.0
  %752 = vmatpush1.msra.mxu0 0.0
  %753 = vmatprep.subr.mxu0 0.0
  %754 = vmatpush1.msra.mxu0 0.0
  %755 = vmatprep.subr.mxu0 0.0
  %756 = vmatpush1.msra.mxu0 0.0
  %757 = vmatprep.subr.mxu0 0.0
  %758 = vmatpush1.msra.mxu0 0.0
  %759 = vmatprep.subr.mxu0 0.0
  %760 = vmatpush1.msra.mxu0 0.0
  %761 = vmatprep.subr.mxu0 0.0
  %762 = vmatpush1.msra.mxu0 0.0
  %763 = vmatprep.subr.mxu0 0.0
  %764 = vmatpush1.msra.mxu0 0.0
  %765 = vmatprep.subr.mxu0 0.0
  %766 = vmatpush1.msra.mxu0 0.0
  %767 = vmatprep.subr.mxu0 0.0
  %768 = vmatpush1.msra.mxu0 0.0
  %769 = vmatprep.subr.mxu0 0.0
  %770 = vmatpush1.msra.mxu0 0.0
  %771 = vmatprep.subr.mxu0 0.0
  %772 = vmatpush1.msra.mxu0 0.0
  %773 = vmatprep.subr.mxu0 0.0
  %774 = vmatpush1.msra.mxu0 0.0
  %775 = vmatprep.subr.mxu0 0.0
  %776 = vmatpush1.msra.mxu0 0.0
  %777 = vmatprep.subr.mxu0 0.0
  %778 = vmatpush1.msra.mxu0 0.0
  %779 = vmatprep.subr.mxu0 0.0
  %780 = vmatpush1.msra.mxu0 0.0
  %781 = vmatprep.subr.mxu0 0.0
  %782 = vmatpush1.msra.mxu0 0.0
  %783 = vmatprep.subr.mxu0 0.0
  %784 = vmatpush1.msra.mxu0 0.0
  %785 = vmatprep.subr.mxu0 0.0
  %786 = vmatpush1.msra.mxu0 0.0
  %787 = vmatprep.subr.mxu0 0.0
  %788 = vmatpush1.msra.mxu0 0.0
  %789 = vmatprep.subr.mxu0 0.0
  %790 = vmatpush1.msra.mxu0 0.0
  %791 = vmatprep.subr.mxu0 0.0
  %792 = vmatpush1.msra.mxu0 0.0
  %793 = vmatprep.subr.mxu0 0.0
  %794 = vmatpush1.msra.mxu0 0.0
  %795 = vmatprep.subr.mxu0 0.0
  %796 = vmatpush1.msra.mxu0 0.0
  %797 = vmatprep.mubr.f32.mxu0 0.0
  %798 = vmatmul.mubr.f32.gmra.mrb[0].mxu0 %v587
  %v799 = vpop.f32.mrb[0].mxu0
  %v800 = vadd.f32 %v72, %v799
  %v801 = vpop.f32.mrb[0].mxu0
  %802 = vmatprep.mubr.f32.mxu0 0.0
  %803 = vmatmul.mubr.f32.gmra.mrb[0].mxu0 %v590
  %v804 = vpop.f32.mrb[0].mxu0
  %v805 = vadd.f32 %v72, %v804
  %v806 = vpop.f32.mrb[0].mxu0
  %807 = vmatprep.mubr.f32.mxu0 0.0
  %808 = vmatmul.mubr.f32.gmra.mrb[0].mxu0 %v593
  %v809 = vpop.f32.mrb[0].mxu0
  %v810 = vadd.f32 %v72, %v809
  %v811 = vpop.f32.mrb[0].mxu0
  %812 = vmatprep.mubr.f32.mxu0 0.0
  %813 = vmatmul.mubr.f32.gmra.mrb[0].mxu0 %v596
  %v814 = vpop.f32.mrb[0].mxu0
  %v815 = vadd.f32 %v72, %v814
  %v816 = vpop.f32.mrb[0].mxu0
  %817 = vmatprep.mubr.f32.mxu0 0.0
  %818 = vmatmul.mubr.f32.gmra.mrb[0].mxu0 %v599
  %v819 = vpop.f32.mrb[0].mxu0
  %v820 = vadd.f32 %v72, %v819
  %v821 = vpop.f32.mrb[0].mxu0
  %822 = vmatprep.mubr.f32.mxu0 0.0
  %823 = vmatmul.mubr.f32.gmra.mrb[0].mxu0 %v602
  %v824 = vpop.f32.mrb[0].mxu0
  %v825 = vadd.f32 %v72, %v824
  %v826 = vpop.f32.mrb[0].mxu0
  %827 = vmatprep.mubr.f32.mxu0 0.0
  %828 = vmatmul.mubr.f32.gmra.mrb[0].mxu0 %v605
  %v829 = vpop.f32.mrb[0].mxu0
  %v830 = vadd.f32 %v72, %v829
  %v831 = vpop.f32.mrb[0].mxu0
  %832 = vmatprep.mubr.f32.mxu0 0.0
  %833 = vmatmul.mubr.f32.gmra.mrb[0].mxu0 %v608
  %v834 = vpop.f32.mrb[0].mxu0
  %v835 = vadd.f32 %v72, %v834
  %v836 = vpop.f32.mrb[0].mxu0
  %837 = vmatprep.mubr.f32.mxu0 0.0
  %838 = vmatmul.mubr.f32.gmra.mrb[0].mxu0 %v611
  %v839 = vpop.f32.mrb[0].mxu0
  %v840 = vadd.f32 %v72, %v839
  %v841 = vpop.f32.mrb[0].mxu0
  %842 = vmatprep.mubr.f32.mxu0 0.0
  %843 = vmatmul.mubr.f32.gmra.mrb[0].mxu0 %v614
  %v844 = vpop.f32.mrb[0].mxu0
  %v845 = vadd.f32 %v72, %v844
  %v846 = vpop.f32.mrb[0].mxu0
  %847 = vmatprep.mubr.f32.mxu0 0.0
  %848 = vmatmul.mubr.f32.gmra.mrb[0].mxu0 %v617
  %v849 = vpop.f32.mrb[0].mxu0
  %v850 = vadd.f32 %v72, %v849
  %v851 = vpop.f32.mrb[0].mxu0
  %852 = vmatprep.mubr.f32.mxu0 0.0
  %853 = vmatmul.mubr.f32.gmra.mrb[0].mxu0 %v620
  %v854 = vpop.f32.mrb[0].mxu0
  %v855 = vadd.f32 %v72, %v854
  %v856 = vpop.f32.mrb[0].mxu0
  %857 = vmatprep.mubr.f32.mxu0 0.0
  %858 = vmatmul.mubr.f32.gmra.mrb[0].mxu0 %v623
  %v859 = vpop.f32.mrb[0].mxu0
  %v860 = vadd.f32 %v72, %v859
  %v861 = vpop.f32.mrb[0].mxu0
  %862 = vmatprep.mubr.f32.mxu0 0.0
  %863 = vmatmul.mubr.f32.gmra.mrb[0].mxu0 %v626
  %v864 = vpop.f32.mrb[0].mxu0
  %v865 = vadd.f32 %v72, %v864
  %v866 = vpop.f32.mrb[0].mxu0
  %867 = vmatprep.mubr.f32.mxu0 0.0
  %868 = vmatmul.mubr.f32.gmra.mrb[0].mxu0 %v629
  %v869 = vpop.f32.mrb[0].mxu0
  %v870 = vadd.f32 %v72, %v869
  %v871 = vpop.f32.mrb[0].mxu0
  %872 = vmatprep.mubr.f32.mxu0 0.0
  %873 = vmatmul.mubr.f32.gmra.mrb[0].mxu0 %v632
  %v874 = vpop.f32.mrb[0].mxu0
  %v875 = vadd.f32 %v72, %v874
  %v876 = vpop.f32.mrb[0].mxu0
  %877 = vmatprep.mubr.f32.mxu0 0.0
  %878 = vmatmul.mubr.f32.gmra.mrb[0].mxu0 %v635
  %v879 = vpop.f32.mrb[0].mxu0
  %v880 = vadd.f32 %v72, %v879
  %v881 = vpop.f32.mrb[0].mxu0
  %882 = vmatprep.mubr.f32.mxu0 0.0
  %883 = vmatmul.mubr.f32.gmra.mrb[0].mxu0 %v638
  %v884 = vpop.f32.mrb[0].mxu0
  %v885 = vadd.f32 %v72, %v884
  %v886 = vpop.f32.mrb[0].mxu0
  %887 = vmatprep.mubr.f32.mxu0 0.0
  %888 = vmatmul.mubr.f32.gmra.mrb[0].mxu0 %v641
  %v889 = vpop.f32.mrb[0].mxu0
  %v890 = vadd.f32 %v72, %v889
  %v891 = vpop.f32.mrb[0].mxu0
  %892 = vmatprep.mubr.f32.mxu0 0.0
  %893 = vmatmul.mubr.f32.gmra.mrb[0].mxu0 %v644
  %v894 = vpop.f32.mrb[0].mxu0
  %v895 = vadd.f32 %v72, %v894
  %v896 = vpop.f32.mrb[0].mxu0
  %897 = vmatprep.mubr.f32.mxu0 0.0
  %898 = vmatmul.mubr.f32.gmra.mrb[0].mxu0 %v647
  %v899 = vpop.f32.mrb[0].mxu0
  %v900 = vadd.f32 %v72, %v899
  %v901 = vpop.f32.mrb[0].mxu0
  %902 = vmatprep.mubr.f32.mxu0 0.0
  %903 = vmatmul.mubr.f32.gmra.mrb[0].mxu0 %v650
  %v904 = vpop.f32.mrb[0].mxu0
  %v905 = vadd.f32 %v72, %v904
  %v906 = vpop.f32.mrb[0].mxu0
  %907 = vmatprep.mubr.f32.mxu0 0.0
  %908 = vmatmul.mubr.f32.gmra.mrb[0].mxu0 %v653
  %v909 = vpop.f32.mrb[0].mxu0
  %v910 = vadd.f32 %v72, %v909
  %v911 = vpop.f32.mrb[0].mxu0
  %912 = vmatprep.mubr.f32.mxu0 0.0
  %913 = vmatmul.mubr.f32.gmra.mrb[0].mxu0 %v656
  %v914 = vpop.f32.mrb[0].mxu0
  %v915 = vadd.f32 %v72, %v914
  %v916 = vpop.f32.mrb[0].mxu0
  %917 = vmatprep.mubr.f32.mxu0 0.0
  %918 = vmatmul.mubr.f32.gmra.mrb[0].mxu0 %v659
  %v919 = vpop.f32.mrb[0].mxu0
  %v920 = vadd.f32 %v72, %v919
  %v921 = vpop.f32.mrb[0].mxu0
  %922 = vmatprep.mubr.f32.mxu0 0.0
  %923 = vmatmul.mubr.f32.gmra.mrb[0].mxu0 %v662
  %v924 = vpop.f32.mrb[0].mxu0
  %v925 = vadd.f32 %v72, %v924
  %v926 = vpop.f32.mrb[0].mxu0
  %927 = vmatprep.mubr.f32.mxu0 0.0
  %928 = vmatmul.mubr.f32.gmra.mrb[0].mxu0 %v665
  %v929 = vpop.f32.mrb[0].mxu0
  %v930 = vadd.f32 %v72, %v929
  %v931 = vpop.f32.mrb[0].mxu0
  %932 = vmatprep.mubr.f32.mxu0 0.0
  %933 = vmatmul.mubr.f32.gmra.mrb[0].mxu0 %v668
  %v934 = vpop.f32.mrb[0].mxu0
  %v935 = vadd.f32 %v72, %v934
  %v936 = vpop.f32.mrb[0].mxu0
  %937 = vmatprep.mubr.f32.mxu0 0.0
  %938 = vmatmul.mubr.f32.gmra.mrb[0].mxu0 %v671
  %v939 = vpop.f32.mrb[0].mxu0
  %v940 = vadd.f32 %v72, %v939
  %v941 = vpop.f32.mrb[0].mxu0
  %942 = vmatprep.mubr.f32.mxu0 0.0
  %943 = vmatmul.mubr.f32.gmra.mrb[0].mxu0 %v674
  %v944 = vpop.f32.mrb[0].mxu0
  %v945 = vadd.f32 %v72, %v944
  %v946 = vpop.f32.mrb[0].mxu0
  %947 = vmatprep.mubr.f32.mxu0 0.0
  %948 = vmatmul.mubr.f32.gmra.mrb[0].mxu0 %v677
  %v949 = vpop.f32.mrb[0].mxu0
  %v950 = vadd.f32 %v72, %v949
  %v951 = vpop.f32.mrb[0].mxu0
  %952 = vmatprep.mubr.f32.mxu0 0.0
  %953 = vmatmul.mubr.f32.gmra.mrb[0].mxu0 %v680
  %v954 = vpop.f32.mrb[0].mxu0
  %v955 = vadd.f32 %v72, %v954
  %v956 = vpop.f32.mrb[0].mxu0
  %957 = vmatprep.mubr.f32.mxu0 0.0
  %958 = vmatmul.mubr.f32.gmra.mrb[0].mxu0 %v683
  %v959 = vpop.f32.mrb[0].mxu0
  %v960 = vadd.f32 %v72, %v959
  %v961 = vpop.f32.mrb[0].mxu0
  %962 = vmatprep.mubr.f32.mxu0 0.0
  %963 = vmatmul.mubr.f32.gmra.mrb[0].mxu0 %v686
  %v964 = vpop.f32.mrb[0].mxu0
  %v965 = vadd.f32 %v72, %v964
  %v966 = vpop.f32.mrb[0].mxu0
  %967 = vmatprep.mubr.f32.mxu0 0.0
  %968 = vmatmul.mubr.f32.gmra.mrb[0].mxu0 %v689
  %v969 = vpop.f32.mrb[0].mxu0
  %v970 = vadd.f32 %v72, %v969
  %v971 = vpop.f32.mrb[0].mxu0
  %972 = vmatprep.mubr.f32.mxu0 0.0
  %973 = vmatmul.mubr.f32.gmra.mrb[0].mxu0 %v692
  %v974 = vpop.f32.mrb[0].mxu0
  %v975 = vadd.f32 %v72, %v974
  %v976 = vpop.f32.mrb[0].mxu0
  %977 = vmatprep.mubr.f32.mxu0 0.0
  %978 = vmatmul.mubr.f32.gmra.mrb[0].mxu0 %v695
  %v979 = vpop.f32.mrb[0].mxu0
  %v980 = vadd.f32 %v72, %v979
  %v981 = vpop.f32.mrb[0].mxu0
  %982 = vmatprep.mubr.f32.mxu0 0.0
  %983 = vmatmul.mubr.f32.gmra.mrb[0].mxu0 %v698
  %v984 = vpop.f32.mrb[0].mxu0
  %v985 = vadd.f32 %v72, %v984
  %v986 = vpop.f32.mrb[0].mxu0
  %987 = vmatprep.mubr.f32.mxu0 0.0
  %988 = vmatmul.mubr.f32.gmra.mrb[0].mxu0 %v701
  %v989 = vpop.f32.mrb[0].mxu0
  %v990 = vadd.f32 %v72, %v989
  %v991 = vpop.f32.mrb[0].mxu0
  %992 = vmatprep.mubr.f32.mxu0 0.0
  %993 = vmatmul.mubr.f32.gmra.mrb[0].mxu0 %v704
  %v994 = vpop.f32.mrb[0].mxu0
  %v995 = vadd.f32 %v72, %v994
  %v996 = vpop.f32.mrb[0].mxu0
  %997 = vmatprep.mubr.f32.mxu0 0.0
  %998 = vmatmul.mubr.f32.gmra.mrb[0].mxu0 %v707
  %v999 = vpop.f32.mrb[0].mxu0
  %v1000 = vadd.f32 %v72, %v999
  %v1001 = vpop.f32.mrb[0].mxu0
  %1002 = vmatprep.mubr.f32.mxu0 0.0
  %1003 = vmatmul.mubr.f32.gmra.mrb[0].mxu0 %v710
  %v1004 = vpop.f32.mrb[0].mxu0
  %v1005 = vadd.f32 %v72, %v1004
  %v1006 = vpop.f32.mrb[0].mxu0
  %1007 = vmatprep.mubr.f32.mxu0 0.0
  %1008 = vmatmul.mubr.f32.gmra.mrb[0].mxu0 %v713
  %v1009 = vpop.f32.mrb[0].mxu0
  %v1010 = vadd.f32 %v72, %v1009
  %v1011 = vpop.f32.mrb[0].mxu0
  %1012 = vmatprep.mubr.f32.mxu0 0.0
  %1013 = vmatmul.mubr.f32.gmra.mrb[0].mxu0 %v716
  %v1014 = vpop.f32.mrb[0].mxu0
  %v1015 = vadd.f32 %v72, %v1014
  %v1016 = vpop.f32.mrb[0].mxu0
  %1017 = vmatprep.mubr.f32.mxu0 0.0
  %1018 = vmatmul.mubr.f32.gmra.mrb[0].mxu0 %v719
  %v1019 = vpop.f32.mrb[0].mxu0
  %v1020 = vadd.f32 %v72, %v1019
  %v1021 = vpop.f32.mrb[0].mxu0
  %1022 = vmatprep.mubr.f32.mxu0 0.0
  %1023 = vmatmul.mubr.f32.gmra.mrb[0].mxu0 %v722
  %v1024 = vpop.f32.mrb[0].mxu0
  %v1025 = vadd.f32 %v72, %v1024
  %v1026 = vpop.f32.mrb[0].mxu0
  %1027 = vmatprep.mubr.f32.mxu0 0.0
  %1028 = vmatmul.mubr.f32.gmra.mrb[0].mxu0 %v725
  %v1029 = vpop.f32.mrb[0].mxu0
  %v1030 = vadd.f32 %v72, %v1029
  %v1031 = vpop.f32.mrb[0].mxu0
  %1032 = vmatprep.mubr.f32.mxu0 0.0
  %1033 = vmatmul.mubr.f32.gmra.mrb[0].mxu0 %v728
  %v1034 = vpop.f32.mrb[0].mxu0
  %v1035 = vadd.f32 %v72, %v1034
  %v1036 = vpop.f32.mrb[0].mxu0
  %1037 = vmatprep.mubr.f32.mxu0 0.0
  %1038 = vmatmul.mubr.f32.gmra.mrb[0].mxu0 %v731
  %v1039 = vpop.f32.mrb[0].mxu0
  %v1040 = vadd.f32 %v72, %v1039
  %v1041 = vpop.f32.mrb[0].mxu0
  %1042 = vdwg.mxu0
  %v1043 = vmax.f32 %v293, %v800
  %v1044 = vmax.f32 %v298, %v805
  %v1045 = vmax.f32 %v303, %v810
  %v1046 = vmax.f32 %v308, %v815
  %v1047 = vmax.f32 %v313, %v820
  %v1048 = vmax.f32 %v318, %v825
  %v1049 = vmax.f32 %v323, %v830
  %v1050 = vmax.f32 %v328, %v835
  %v1051 = vmax.f32 %v333, %v840
  %v1052 = vmax.f32 %v338, %v845
  %v1053 = vmax.f32 %v343, %v850
  %v1054 = vmax.f32 %v348, %v855
  %v1055 = vmax.f32 %v353, %v860
  %v1056 = vmax.f32 %v358, %v865
  %v1057 = vmax.f32 %v363, %v870
  %v1058 = vmax.f32 %v368, %v875
  %v1059 = vmax.f32 %v373, %v880
  %v1060 = vmax.f32 %v378, %v885
  %v1061 = vmax.f32 %v383, %v890
  %v1062 = vmax.f32 %v388, %v895
  %v1063 = vmax.f32 %v393, %v900
  %v1064 = vmax.f32 %v398, %v905
  %v1065 = vmax.f32 %v403, %v910
  %v1066 = vmax.f32 %v408, %v915
  %v1067 = vmax.f32 %v413, %v920
  %v1068 = vmax.f32 %v418, %v925
  %v1069 = vmax.f32 %v423, %v930
  %v1070 = vmax.f32 %v428, %v935
  %v1071 = vmax.f32 %v433, %v940
  %v1072 = vmax.f32 %v438, %v945
  %v1073 = vmax.f32 %v443, %v950
  %v1074 = vmax.f32 %v448, %v955
  %v1075 = vmax.f32 %v453, %v960
  %v1076 = vmax.f32 %v458, %v965
  %v1077 = vmax.f32 %v463, %v970
  %v1078 = vmax.f32 %v468, %v975
  %v1079 = vmax.f32 %v473, %v980
  %v1080 = vmax.f32 %v478, %v985
  %v1081 = vmax.f32 %v483, %v990
  %v1082 = vmax.f32 %v488, %v995
  %v1083 = vmax.f32 %v493, %v1000
  %v1084 = vmax.f32 %v498, %v1005
  %v1085 = vmax.f32 %v503, %v1010
  %v1086 = vmax.f32 %v508, %v1015
  %v1087 = vmax.f32 %v513, %v1020
  %v1088 = vmax.f32 %v518, %v1025
  %v1089 = vmax.f32 %v523, %v1030
  %v1090 = vmax.f32 %v528, %v1035
  %v1091 = vmax.f32 %v533, %v1040
  %s1092 = scalar_lea.vmem %s0, 784
  %v1093 = vld [vmem:[%s1092] sm:$0xff]
  %v1094 = vld [vmem:[%s1092 + $0x8] sm:$0xff]
  %v1095 = vld [vmem:[%s1092 + $0x10] sm:$0xff]
  %v1096 = vld [vmem:[%s1092 + $0x18] sm:$0xff]
  %v1097 = vld [vmem:[%s1092 + $0x20] sm:$0xff]
  %v1098 = vld [vmem:[%s1092 + $0x28] sm:$0xff]
  %v1099 = vld [vmem:[%s1092 + $0x30] sm:$0xff]
  %v1100 = vld [vmem:[%s1092 + $0x38] sm:$0xff]
  %v1101 = vld [vmem:[%s1092 + $0x40] sm:$0xff]
  %v1102 = vld [vmem:[%s1092 + $0x48] sm:$0xff]
  %v1103 = vld [vmem:[%s1092 + $0x50] sm:$0xff]
  %v1104 = vld [vmem:[%s1092 + $0x58] sm:$0xff]
  %v1105 = vld [vmem:[%s1092 + $0x60] sm:$0xff]
  %v1106 = vld [vmem:[%s1092 + $0x68] sm:$0xff]
  %v1107 = vld [vmem:[%s1092 + $0x70] sm:$0xff]
  %v1108 = vld [vmem:[%s1092 + $0x78] sm:$0xff]
  %v1109 = vld [vmem:[%s1092 + $0x80] sm:$0xff]
  %v1110 = vld [vmem:[%s1092 + $0x88] sm:$0xff]
  %v1111 = vld [vmem:[%s1092 + $0x90] sm:$0xff]
  %v1112 = vld [vmem:[%s1092 + $0x98] sm:$0xff]
  %v1113 = vld [vmem:[%s1092 + $0xa0] sm:$0xff]
  %v1114 = vld [vmem:[%s1092 + $0xa8] sm:$0xff]
  %v1115 = vld [vmem:[%s1092 + $0xb0] sm:$0xff]
  %v1116 = vld [vmem:[%s1092 + $0xb8] sm:$0xff]
  %v1117 = vld [vmem:[%s1092 + $0xc0] sm:$0xff]
  %v1118 = vld [vmem:[%s1092 + $0xc8] sm:$0xff]
  %v1119 = vld [vmem:[%s1092 + $0xd0] sm:$0xff]
  %v1120 = vld [vmem:[%s1092 + $0xd8] sm:$0xff]
  %v1121 = vld [vmem:[%s1092 + $0xe0] sm:$0xff]
  %v1122 = vld [vmem:[%s1092 + $0xe8] sm:$0xff]
  %v1123 = vld [vmem:[%s1092 + $0xf0] sm:$0xff]
  %v1124 = vld [vmem:[%s1092 + $0xf8] sm:$0xff]
  %v1125 = vld [vmem:[%s1092 + $0x100] sm:$0xff]
  %v1126 = vld [vmem:[%s1092 + $0x108] sm:$0xff]
  %v1127 = vld [vmem:[%s1092 + $0x110] sm:$0xff]
  %v1128 = vld [vmem:[%s1092 + $0x118] sm:$0xff]
  %v1129 = vld [vmem:[%s1092 + $0x120] sm:$0xff]
  %v1130 = vld [vmem:[%s1092 + $0x128] sm:$0xff]
  %v1131 = vld [vmem:[%s1092 + $0x130] sm:$0xff]
  %v1132 = vld [vmem:[%s1092 + $0x138] sm:$0xff]
  %v1133 = vld [vmem:[%s1092 + $0x140] sm:$0xff]
  %v1134 = vld [vmem:[%s1092 + $0x148] sm:$0xff]
  %v1135 = vld [vmem:[%s1092 + $0x150] sm:$0xff]
  %v1136 = vld [vmem:[%s1092 + $0x158] sm:$0xff]
  %v1137 = vld [vmem:[%s1092 + $0x160] sm:$0xff]
  %v1138 = vld [vmem:[%s1092 + $0x168] sm:$0xff]
  %v1139 = vld [vmem:[%s1092 + $0x170] sm:$0xff]
  %v1140 = vld [vmem:[%s1092 + $0x178] sm:$0xff]
  %v1141 = vld [vmem:[%s1092 + $0x180] sm:$0xff]
  %v1143 = vsel %vm74, %v1093, 0
  %v1146 = vsel %vm74, %v1094, 0
  %v1149 = vsel %vm74, %v1095, 0
  %v1152 = vsel %vm74, %v1096, 0
  %v1155 = vsel %vm74, %v1097, 0
  %v1158 = vsel %vm74, %v1098, 0
  %v1161 = vsel %vm74, %v1099, 0
  %v1164 = vsel %vm74, %v1100, 0
  %v1167 = vsel %vm74, %v1101, 0
  %v1170 = vsel %vm74, %v1102, 0
  %v1173 = vsel %vm74, %v1103, 0
  %v1176 = vsel %vm74, %v1104, 0
  %v1179 = vsel %vm74, %v1105, 0
  %v1182 = vsel %vm74, %v1106, 0
  %v1185 = vsel %vm74, %v1107, 0
  %v1188 = vsel %vm74, %v1108, 0
  %v1191 = vsel %vm74, %v1109, 0
  %v1194 = vsel %vm74, %v1110, 0
  %v1197 = vsel %vm74, %v1111, 0
  %v1200 = vsel %vm74, %v1112, 0
  %v1203 = vsel %vm74, %v1113, 0
  %v1206 = vsel %vm74, %v1114, 0
  %v1209 = vsel %vm74, %v1115, 0
  %v1212 = vsel %vm74, %v1116, 0
  %v1215 = vsel %vm74, %v1117, 0
  %v1218 = vsel %vm74, %v1118, 0
  %v1221 = vsel %vm74, %v1119, 0
  %v1224 = vsel %vm74, %v1120, 0
  %v1227 = vsel %vm74, %v1121, 0
  %v1230 = vsel %vm74, %v1122, 0
  %v1233 = vsel %vm74, %v1123, 0
  %v1236 = vsel %vm74, %v1124, 0
  %v1239 = vsel %vm74, %v1125, 0
  %v1242 = vsel %vm74, %v1126, 0
  %v1245 = vsel %vm74, %v1127, 0
  %v1248 = vsel %vm74, %v1128, 0
  %v1251 = vsel %vm74, %v1129, 0
  %v1254 = vsel %vm74, %v1130, 0
  %v1257 = vsel %vm74, %v1131, 0
  %v1260 = vsel %vm74, %v1132, 0
  %v1263 = vsel %vm74, %v1133, 0
  %v1266 = vsel %vm74, %v1134, 0
  %v1269 = vsel %vm74, %v1135, 0
  %v1272 = vsel %vm74, %v1136, 0
  %v1275 = vsel %vm74, %v1137, 0
  %v1278 = vsel %vm74, %v1138, 0
  %v1281 = vsel %vm74, %v1139, 0
  %v1284 = vsel %vm74, %v1140, 0
  %v1287 = vsel %vm74, %v1141, 0
  %1289 = vmatprep.subr.mxu0 0.0
  %1290 = vmatpush1.msra.mxu0 %v14
  %1291 = vmatprep.subr.mxu0 0.0
  %1292 = vmatpush1.msra.mxu0 %v15
  %1293 = vmatprep.subr.mxu0 0.0
  %1294 = vmatpush1.msra.mxu0 %v16
  %1295 = vmatprep.subr.mxu0 0.0
  %1296 = vmatpush1.msra.mxu0 %v224
  %1297 = vmatprep.subr.mxu0 0.0
  %1298 = vmatpush1.msra.mxu0 0.0
  %1299 = vmatprep.subr.mxu0 0.0
  %1300 = vmatpush1.msra.mxu0 0.0
  %1301 = vmatprep.subr.mxu0 0.0
  %1302 = vmatpush1.msra.mxu0 0.0
  %1303 = vmatprep.subr.mxu0 0.0
  %1304 = vmatpush1.msra.mxu0 0.0
  %1305 = vmatprep.subr.mxu0 0.0
  %1306 = vmatpush1.msra.mxu0 0.0
  %1307 = vmatprep.subr.mxu0 0.0
  %1308 = vmatpush1.msra.mxu0 0.0
  %1309 = vmatprep.subr.mxu0 0.0
  %1310 = vmatpush1.msra.mxu0 0.0
  %1311 = vmatprep.subr.mxu0 0.0
  %1312 = vmatpush1.msra.mxu0 0.0
  %1313 = vmatprep.subr.mxu0 0.0
  %1314 = vmatpush1.msra.mxu0 0.0
  %1315 = vmatprep.subr.mxu0 0.0
  %1316 = vmatpush1.msra.mxu0 0.0
  %1317 = vmatprep.subr.mxu0 0.0
  %1318 = vmatpush1.msra.mxu0 0.0
  %1319 = vmatprep.subr.mxu0 0.0
  %1320 = vmatpush1.msra.mxu0 0.0
  %1321 = vmatprep.subr.mxu0 0.0
  %1322 = vmatpush1.msra.mxu0 0.0
  %1323 = vmatprep.subr.mxu0 0.0
  %1324 = vmatpush1.msra.mxu0 0.0
  %1325 = vmatprep.subr.mxu0 0.0
  %1326 = vmatpush1.msra.mxu0 0.0
  %1327 = vmatprep.subr.mxu0 0.0
  %1328 = vmatpush1.msra.mxu0 0.0
  %1329 = vmatprep.subr.mxu0 0.0
  %1330 = vmatpush1.msra.mxu0 0.0
  %1331 = vmatprep.subr.mxu0 0.0
  %1332 = vmatpush1.msra.mxu0 0.0
  %1333 = vmatprep.subr.mxu0 0.0
  %1334 = vmatpush1.msra.mxu0 0.0
  %1335 = vmatprep.subr.mxu0 0.0
  %1336 = vmatpush1.msra.mxu0 0.0
  %1337 = vmatprep.subr.mxu0 0.0
  %1338 = vmatpush1.msra.mxu0 0.0
  %1339 = vmatprep.subr.mxu0 0.0
  %1340 = vmatpush1.msra.mxu0 0.0
  %1341 = vmatprep.subr.mxu0 0.0
  %1342 = vmatpush1.msra.mxu0 0.0
  %1343 = vmatprep.subr.mxu0 0.0
  %1344 = vmatpush1.msra.mxu0 0.0
  %1345 = vmatprep.subr.mxu0 0.0
  %1346 = vmatpush1.msra.mxu0 0.0
  %1347 = vmatprep.subr.mxu0 0.0
  %1348 = vmatpush1.msra.mxu0 0.0
  %1349 = vmatprep.subr.mxu0 0.0
  %1350 = vmatpush1.msra.mxu0 0.0
  %1351 = vmatprep.subr.mxu0 0.0
  %1352 = vmatpush1.msra.mxu0 0.0
  %1353 = vmatprep.mubr.f32.mxu0 0.0
  %1354 = vmatmul.mubr.f32.gmra.mrb[0].mxu0 %v1143
  %v1355 = vpop.f32.mrb[0].mxu0
  %v1356 = vadd.f32 %v72, %v1355
  %v1357 = vpop.f32.mrb[0].mxu0
  %1358 = vmatprep.mubr.f32.mxu0 0.0
  %1359 = vmatmul.mubr.f32.gmra.mrb[0].mxu0 %v1146
  %v1360 = vpop.f32.mrb[0].mxu0
  %v1361 = vadd.f32 %v72, %v1360
  %v1362 = vpop.f32.mrb[0].mxu0
  %1363 = vmatprep.mubr.f32.mxu0 0.0
  %1364 = vmatmul.mubr.f32.gmra.mrb[0].mxu0 %v1149
  %v1365 = vpop.f32.mrb[0].mxu0
  %v1366 = vadd.f32 %v72, %v1365
  %v1367 = vpop.f32.mrb[0].mxu0
  %1368 = vmatprep.mubr.f32.mxu0 0.0
  %1369 = vmatmul.mubr.f32.gmra.mrb[0].mxu0 %v1152
  %v1370 = vpop.f32.mrb[0].mxu0
  %v1371 = vadd.f32 %v72, %v1370
  %v1372 = vpop.f32.mrb[0].mxu0
  %1373 = vmatprep.mubr.f32.mxu0 0.0
  %1374 = vmatmul.mubr.f32.gmra.mrb[0].mxu0 %v1155
  %v1375 = vpop.f32.mrb[0].mxu0
  %v1376 = vadd.f32 %v72, %v1375
  %v1377 = vpop.f32.mrb[0].mxu0
  %1378 = vmatprep.mubr.f32.mxu0 0.0
  %1379 = vmatmul.mubr.f32.gmra.mrb[0].mxu0 %v1158
  %v1380 = vpop.f32.mrb[0].mxu0
  %v1381 = vadd.f32 %v72, %v1380
  %v1382 = vpop.f32.mrb[0].mxu0
  %1383 = vmatprep.mubr.f32.mxu0 0.0
  %1384 = vmatmul.mubr.f32.gmra.mrb[0].mxu0 %v1161
  %v1385 = vpop.f32.mrb[0].mxu0
  %v1386 = vadd.f32 %v72, %v1385
  %v1387 = vpop.f32.mrb[0].mxu0
  %1388 = vmatprep.mubr.f32.mxu0 0.0
  %1389 = vmatmul.mubr.f32.gmra.mrb[0].mxu0 %v1164
  %v1390 = vpop.f32.mrb[0].mxu0
  %v1391 = vadd.f32 %v72, %v1390
  %v1392 = vpop.f32.mrb[0].mxu0
  %1393 = vmatprep.mubr.f32.mxu0 0.0
  %1394 = vmatmul.mubr.f32.gmra.mrb[0].mxu0 %v1167
  %v1395 = vpop.f32.mrb[0].mxu0
  %v1396 = vadd.f32 %v72, %v1395
  %v1397 = vpop.f32.mrb[0].mxu0
  %1398 = vmatprep.mubr.f32.mxu0 0.0
  %1399 = vmatmul.mubr.f32.gmra.mrb[0].mxu0 %v1170
  %v1400 = vpop.f32.mrb[0].mxu0
  %v1401 = vadd.f32 %v72, %v1400
  %v1402 = vpop.f32.mrb[0].mxu0
  %1403 = vmatprep.mubr.f32.mxu0 0.0
  %1404 = vmatmul.mubr.f32.gmra.mrb[0].mxu0 %v1173
  %v1405 = vpop.f32.mrb[0].mxu0
  %v1406 = vadd.f32 %v72, %v1405
  %v1407 = vpop.f32.mrb[0].mxu0
  %1408 = vmatprep.mubr.f32.mxu0 0.0
  %1409 = vmatmul.mubr.f32.gmra.mrb[0].mxu0 %v1176
  %v1410 = vpop.f32.mrb[0].mxu0
  %v1411 = vadd.f32 %v72, %v1410
  %v1412 = vpop.f32.mrb[0].mxu0
  %1413 = vmatprep.mubr.f32.mxu0 0.0
  %1414 = vmatmul.mubr.f32.gmra.mrb[0].mxu0 %v1179
  %v1415 = vpop.f32.mrb[0].mxu0
  %v1416 = vadd.f32 %v72, %v1415
  %v1417 = vpop.f32.mrb[0].mxu0
  %1418 = vmatprep.mubr.f32.mxu0 0.0
  %1419 = vmatmul.mubr.f32.gmra.mrb[0].mxu0 %v1182
  %v1420 = vpop.f32.mrb[0].mxu0
  %v1421 = vadd.f32 %v72, %v1420
  %v1422 = vpop.f32.mrb[0].mxu0
  %1423 = vmatprep.mubr.f32.mxu0 0.0
  %1424 = vmatmul.mubr.f32.gmra.mrb[0].mxu0 %v1185
  %v1425 = vpop.f32.mrb[0].mxu0
  %v1426 = vadd.f32 %v72, %v1425
  %v1427 = vpop.f32.mrb[0].mxu0
  %1428 = vmatprep.mubr.f32.mxu0 0.0
  %1429 = vmatmul.mubr.f32.gmra.mrb[0].mxu0 %v1188
  %v1430 = vpop.f32.mrb[0].mxu0
  %v1431 = vadd.f32 %v72, %v1430
  %v1432 = vpop.f32.mrb[0].mxu0
  %1433 = vmatprep.mubr.f32.mxu0 0.0
  %1434 = vmatmul.mubr.f32.gmra.mrb[0].mxu0 %v1191
  %v1435 = vpop.f32.mrb[0].mxu0
  %v1436 = vadd.f32 %v72, %v1435
  %v1437 = vpop.f32.mrb[0].mxu0
  %1438 = vmatprep.mubr.f32.mxu0 0.0
  %1439 = vmatmul.mubr.f32.gmra.mrb[0].mxu0 %v1194
  %v1440 = vpop.f32.mrb[0].mxu0
  %v1441 = vadd.f32 %v72, %v1440
  %v1442 = vpop.f32.mrb[0].mxu0
  %1443 = vmatprep.mubr.f32.mxu0 0.0
  %1444 = vmatmul.mubr.f32.gmra.mrb[0].mxu0 %v1197
  %v1445 = vpop.f32.mrb[0].mxu0
  %v1446 = vadd.f32 %v72, %v1445
  %v1447 = vpop.f32.mrb[0].mxu0
  %1448 = vmatprep.mubr.f32.mxu0 0.0
  %1449 = vmatmul.mubr.f32.gmra.mrb[0].mxu0 %v1200
  %v1450 = vpop.f32.mrb[0].mxu0
  %v1451 = vadd.f32 %v72, %v1450
  %v1452 = vpop.f32.mrb[0].mxu0
  %1453 = vmatprep.mubr.f32.mxu0 0.0
  %1454 = vmatmul.mubr.f32.gmra.mrb[0].mxu0 %v1203
  %v1455 = vpop.f32.mrb[0].mxu0
  %v1456 = vadd.f32 %v72, %v1455
  %v1457 = vpop.f32.mrb[0].mxu0
  %1458 = vmatprep.mubr.f32.mxu0 0.0
  %1459 = vmatmul.mubr.f32.gmra.mrb[0].mxu0 %v1206
  %v1460 = vpop.f32.mrb[0].mxu0
  %v1461 = vadd.f32 %v72, %v1460
  %v1462 = vpop.f32.mrb[0].mxu0
  %1463 = vmatprep.mubr.f32.mxu0 0.0
  %1464 = vmatmul.mubr.f32.gmra.mrb[0].mxu0 %v1209
  %v1465 = vpop.f32.mrb[0].mxu0
  %v1466 = vadd.f32 %v72, %v1465
  %v1467 = vpop.f32.mrb[0].mxu0
  %1468 = vmatprep.mubr.f32.mxu0 0.0
  %1469 = vmatmul.mubr.f32.gmra.mrb[0].mxu0 %v1212
  %v1470 = vpop.f32.mrb[0].mxu0
  %v1471 = vadd.f32 %v72, %v1470
  %v1472 = vpop.f32.mrb[0].mxu0
  %1473 = vmatprep.mubr.f32.mxu0 0.0
  %1474 = vmatmul.mubr.f32.gmra.mrb[0].mxu0 %v1215
  %v1475 = vpop.f32.mrb[0].mxu0
  %v1476 = vadd.f32 %v72, %v1475
  %v1477 = vpop.f32.mrb[0].mxu0
  %1478 = vmatprep.mubr.f32.mxu0 0.0
  %1479 = vmatmul.mubr.f32.gmra.mrb[0].mxu0 %v1218
  %v1480 = vpop.f32.mrb[0].mxu0
  %v1481 = vadd.f32 %v72, %v1480
  %v1482 = vpop.f32.mrb[0].mxu0
  %1483 = vmatprep.mubr.f32.mxu0 0.0
  %1484 = vmatmul.mubr.f32.gmra.mrb[0].mxu0 %v1221
  %v1485 = vpop.f32.mrb[0].mxu0
  %v1486 = vadd.f32 %v72, %v1485
  %v1487 = vpop.f32.mrb[0].mxu0
  %1488 = vmatprep.mubr.f32.mxu0 0.0
  %1489 = vmatmul.mubr.f32.gmra.mrb[0].mxu0 %v1224
  %v1490 = vpop.f32.mrb[0].mxu0
  %v1491 = vadd.f32 %v72, %v1490
  %v1492 = vpop.f32.mrb[0].mxu0
  %1493 = vmatprep.mubr.f32.mxu0 0.0
  %1494 = vmatmul.mubr.f32.gmra.mrb[0].mxu0 %v1227
  %v1495 = vpop.f32.mrb[0].mxu0
  %v1496 = vadd.f32 %v72, %v1495
  %v1497 = vpop.f32.mrb[0].mxu0
  %1498 = vmatprep.mubr.f32.mxu0 0.0
  %1499 = vmatmul.mubr.f32.gmra.mrb[0].mxu0 %v1230
  %v1500 = vpop.f32.mrb[0].mxu0
  %v1501 = vadd.f32 %v72, %v1500
  %v1502 = vpop.f32.mrb[0].mxu0
  %1503 = vmatprep.mubr.f32.mxu0 0.0
  %1504 = vmatmul.mubr.f32.gmra.mrb[0].mxu0 %v1233
  %v1505 = vpop.f32.mrb[0].mxu0
  %v1506 = vadd.f32 %v72, %v1505
  %v1507 = vpop.f32.mrb[0].mxu0
  %1508 = vmatprep.mubr.f32.mxu0 0.0
  %1509 = vmatmul.mubr.f32.gmra.mrb[0].mxu0 %v1236
  %v1510 = vpop.f32.mrb[0].mxu0
  %v1511 = vadd.f32 %v72, %v1510
  %v1512 = vpop.f32.mrb[0].mxu0
  %1513 = vmatprep.mubr.f32.mxu0 0.0
  %1514 = vmatmul.mubr.f32.gmra.mrb[0].mxu0 %v1239
  %v1515 = vpop.f32.mrb[0].mxu0
  %v1516 = vadd.f32 %v72, %v1515
  %v1517 = vpop.f32.mrb[0].mxu0
  %1518 = vmatprep.mubr.f32.mxu0 0.0
  %1519 = vmatmul.mubr.f32.gmra.mrb[0].mxu0 %v1242
  %v1520 = vpop.f32.mrb[0].mxu0
  %v1521 = vadd.f32 %v72, %v1520
  %v1522 = vpop.f32.mrb[0].mxu0
  %1523 = vmatprep.mubr.f32.mxu0 0.0
  %1524 = vmatmul.mubr.f32.gmra.mrb[0].mxu0 %v1245
  %v1525 = vpop.f32.mrb[0].mxu0
  %v1526 = vadd.f32 %v72, %v1525
  %v1527 = vpop.f32.mrb[0].mxu0
  %1528 = vmatprep.mubr.f32.mxu0 0.0
  %1529 = vmatmul.mubr.f32.gmra.mrb[0].mxu0 %v1248
  %v1530 = vpop.f32.mrb[0].mxu0
  %v1531 = vadd.f32 %v72, %v1530
  %v1532 = vpop.f32.mrb[0].mxu0
  %1533 = vmatprep.mubr.f32.mxu0 0.0
  %1534 = vmatmul.mubr.f32.gmra.mrb[0].mxu0 %v1251
  %v1535 = vpop.f32.mrb[0].mxu0
  %v1536 = vadd.f32 %v72, %v1535
  %v1537 = vpop.f32.mrb[0].mxu0
  %1538 = vmatprep.mubr.f32.mxu0 0.0
  %1539 = vmatmul.mubr.f32.gmra.mrb[0].mxu0 %v1254
  %v1540 = vpop.f32.mrb[0].mxu0
  %v1541 = vadd.f32 %v72, %v1540
  %v1542 = vpop.f32.mrb[0].mxu0
  %1543 = vmatprep.mubr.f32.mxu0 0.0
  %1544 = vmatmul.mubr.f32.gmra.mrb[0].mxu0 %v1257
  %v1545 = vpop.f32.mrb[0].mxu0
  %v1546 = vadd.f32 %v72, %v1545
  %v1547 = vpop.f32.mrb[0].mxu0
  %1548 = vmatprep.mubr.f32.mxu0 0.0
  %1549 = vmatmul.mubr.f32.gmra.mrb[0].mxu0 %v1260
  %v1550 = vpop.f32.mrb[0].mxu0
  %v1551 = vadd.f32 %v72, %v1550
  %v1552 = vpop.f32.mrb[0].mxu0
  %1553 = vmatprep.mubr.f32.mxu0 0.0
  %1554 = vmatmul.mubr.f32.gmra.mrb[0].mxu0 %v1263
  %v1555 = vpop.f32.mrb[0].mxu0
  %v1556 = vadd.f32 %v72, %v1555
  %v1557 = vpop.f32.mrb[0].mxu0
  %1558 = vmatprep.mubr.f32.mxu0 0.0
  %1559 = vmatmul.mubr.f32.gmra.mrb[0].mxu0 %v1266
  %v1560 = vpop.f32.mrb[0].mxu0
  %v1561 = vadd.f32 %v72, %v1560
  %v1562 = vpop.f32.mrb[0].mxu0
  %1563 = vmatprep.mubr.f32.mxu0 0.0
  %1564 = vmatmul.mubr.f32.gmra.mrb[0].mxu0 %v1269
  %v1565 = vpop.f32.mrb[0].mxu0
  %v1566 = vadd.f32 %v72, %v1565
  %v1567 = vpop.f32.mrb[0].mxu0
  %1568 = vmatprep.mubr.f32.mxu0 0.0
  %1569 = vmatmul.mubr.f32.gmra.mrb[0].mxu0 %v1272
  %v1570 = vpop.f32.mrb[0].mxu0
  %v1571 = vadd.f32 %v72, %v1570
  %v1572 = vpop.f32.mrb[0].mxu0
  %1573 = vmatprep.mubr.f32.mxu0 0.0
  %1574 = vmatmul.mubr.f32.gmra.mrb[0].mxu0 %v1275
  %v1575 = vpop.f32.mrb[0].mxu0
  %v1576 = vadd.f32 %v72, %v1575
  %v1577 = vpop.f32.mrb[0].mxu0
  %1578 = vmatprep.mubr.f32.mxu0 0.0
  %1579 = vmatmul.mubr.f32.gmra.mrb[0].mxu0 %v1278
  %v1580 = vpop.f32.mrb[0].mxu0
  %v1581 = vadd.f32 %v72, %v1580
  %v1582 = vpop.f32.mrb[0].mxu0
  %1583 = vmatprep.mubr.f32.mxu0 0.0
  %1584 = vmatmul.mubr.f32.gmra.mrb[0].mxu0 %v1281
  %v1585 = vpop.f32.mrb[0].mxu0
  %v1586 = vadd.f32 %v72, %v1585
  %v1587 = vpop.f32.mrb[0].mxu0
  %1588 = vmatprep.mubr.f32.mxu0 0.0
  %1589 = vmatmul.mubr.f32.gmra.mrb[0].mxu0 %v1284
  %v1590 = vpop.f32.mrb[0].mxu0
  %v1591 = vadd.f32 %v72, %v1590
  %v1592 = vpop.f32.mrb[0].mxu0
  %1593 = vmatprep.mubr.f32.mxu0 0.0
  %1594 = vmatmul.mubr.f32.gmra.mrb[0].mxu0 %v1287
  %v1595 = vpop.f32.mrb[0].mxu0
  %v1596 = vadd.f32 %v72, %v1595
  %v1597 = vpop.f32.mrb[0].mxu0
  %1598 = vdwg.mxu0
  %s1599 = scalar_lea.vmem %s0, 1176
  %v1600 = vld [vmem:[%s1599] sm:$0xff]
  %v1601 = vld [vmem:[%s1599 + $0x8] sm:$0xff]
  %v1602 = vld [vmem:[%s1599 + $0x10] sm:$0xff]
  %v1603 = vld [vmem:[%s1599 + $0x18] sm:$0xff]
  %v1604 = vld [vmem:[%s1599 + $0x20] sm:$0xff]
  %v1605 = vld [vmem:[%s1599 + $0x28] sm:$0xff]
  %v1606 = vld [vmem:[%s1599 + $0x30] sm:$0xff]
  %v1607 = vld [vmem:[%s1599 + $0x38] sm:$0xff]
  %v1608 = vld [vmem:[%s1599 + $0x40] sm:$0xff]
  %v1609 = vld [vmem:[%s1599 + $0x48] sm:$0xff]
  %v1610 = vld [vmem:[%s1599 + $0x50] sm:$0xff]
  %v1611 = vld [vmem:[%s1599 + $0x58] sm:$0xff]
  %v1612 = vld [vmem:[%s1599 + $0x60] sm:$0xff]
  %v1613 = vld [vmem:[%s1599 + $0x68] sm:$0xff]
  %v1614 = vld [vmem:[%s1599 + $0x70] sm:$0xff]
  %v1615 = vld [vmem:[%s1599 + $0x78] sm:$0xff]
  %v1616 = vld [vmem:[%s1599 + $0x80] sm:$0xff]
  %v1617 = vld [vmem:[%s1599 + $0x88] sm:$0xff]
  %v1618 = vld [vmem:[%s1599 + $0x90] sm:$0xff]
  %v1619 = vld [vmem:[%s1599 + $0x98] sm:$0xff]
  %v1620 = vld [vmem:[%s1599 + $0xa0] sm:$0xff]
  %v1621 = vld [vmem:[%s1599 + $0xa8] sm:$0xff]
  %v1622 = vld [vmem:[%s1599 + $0xb0] sm:$0xff]
  %v1623 = vld [vmem:[%s1599 + $0xb8] sm:$0xff]
  %v1624 = vld [vmem:[%s1599 + $0xc0] sm:$0xff]
  %v1625 = vld [vmem:[%s1599 + $0xc8] sm:$0xff]
  %v1626 = vld [vmem:[%s1599 + $0xd0] sm:$0xff]
  %v1627 = vld [vmem:[%s1599 + $0xd8] sm:$0xff]
  %v1628 = vld [vmem:[%s1599 + $0xe0] sm:$0xff]
  %v1629 = vld [vmem:[%s1599 + $0xe8] sm:$0xff]
  %v1630 = vld [vmem:[%s1599 + $0xf0] sm:$0xff]
  %v1631 = vld [vmem:[%s1599 + $0xf8] sm:$0xff]
  %v1632 = vld [vmem:[%s1599 + $0x100] sm:$0xff]
  %v1633 = vld [vmem:[%s1599 + $0x108] sm:$0xff]
  %v1634 = vld [vmem:[%s1599 + $0x110] sm:$0xff]
  %v1635 = vld [vmem:[%s1599 + $0x118] sm:$0xff]
  %v1636 = vld [vmem:[%s1599 + $0x120] sm:$0xff]
  %v1637 = vld [vmem:[%s1599 + $0x128] sm:$0xff]
  %v1638 = vld [vmem:[%s1599 + $0x130] sm:$0xff]
  %v1639 = vld [vmem:[%s1599 + $0x138] sm:$0xff]
  %v1640 = vld [vmem:[%s1599 + $0x140] sm:$0xff]
  %v1641 = vld [vmem:[%s1599 + $0x148] sm:$0xff]
  %v1642 = vld [vmem:[%s1599 + $0x150] sm:$0xff]
  %v1643 = vld [vmem:[%s1599 + $0x158] sm:$0xff]
  %v1644 = vld [vmem:[%s1599 + $0x160] sm:$0xff]
  %v1645 = vld [vmem:[%s1599 + $0x168] sm:$0xff]
  %v1646 = vld [vmem:[%s1599 + $0x170] sm:$0xff]
  %v1647 = vld [vmem:[%s1599 + $0x178] sm:$0xff]
  %v1648 = vld [vmem:[%s1599 + $0x180] sm:$0xff]
  %v1650 = vsel %vm74, %v1600, 0
  %v1653 = vsel %vm74, %v1601, 0
  %v1656 = vsel %vm74, %v1602, 0
  %v1659 = vsel %vm74, %v1603, 0
  %v1662 = vsel %vm74, %v1604, 0
  %v1665 = vsel %vm74, %v1605, 0
  %v1668 = vsel %vm74, %v1606, 0
  %v1671 = vsel %vm74, %v1607, 0
  %v1674 = vsel %vm74, %v1608, 0
  %v1677 = vsel %vm74, %v1609, 0
  %v1680 = vsel %vm74, %v1610, 0
  %v1683 = vsel %vm74, %v1611, 0
  %v1686 = vsel %vm74, %v1612, 0
  %v1689 = vsel %vm74, %v1613, 0
  %v1692 = vsel %vm74, %v1614, 0
  %v1695 = vsel %vm74, %v1615, 0
  %v1698 = vsel %vm74, %v1616, 0
  %v1701 = vsel %vm74, %v1617, 0
  %v1704 = vsel %vm74, %v1618, 0
  %v1707 = vsel %vm74, %v1619, 0
  %v1710 = vsel %vm74, %v1620, 0
  %v1713 = vsel %vm74, %v1621, 0
  %v1716 = vsel %vm74, %v1622, 0
  %v1719 = vsel %vm74, %v1623, 0
  %v1722 = vsel %vm74, %v1624, 0
  %v1725 = vsel %vm74, %v1625, 0
  %v1728 = vsel %vm74, %v1626, 0
  %v1731 = vsel %vm74, %v1627, 0
  %v1734 = vsel %vm74, %v1628, 0
  %v1737 = vsel %vm74, %v1629, 0
  %v1740 = vsel %vm74, %v1630, 0
  %v1743 = vsel %vm74, %v1631, 0
  %v1746 = vsel %vm74, %v1632, 0
  %v1749 = vsel %vm74, %v1633, 0
  %v1752 = vsel %vm74, %v1634, 0
  %v1755 = vsel %vm74, %v1635, 0
  %v1758 = vsel %vm74, %v1636, 0
  %v1761 = vsel %vm74, %v1637, 0
  %v1764 = vsel %vm74, %v1638, 0
  %v1767 = vsel %vm74, %v1639, 0
  %v1770 = vsel %vm74, %v1640, 0
  %v1773 = vsel %vm74, %v1641, 0
  %v1776 = vsel %vm74, %v1642, 0
  %v1779 = vsel %vm74, %v1643, 0
  %v1782 = vsel %vm74, %v1644, 0
  %v1785 = vsel %vm74, %v1645, 0
  %v1788 = vsel %vm74, %v1646, 0
  %v1791 = vsel %vm74, %v1647, 0
  %v1794 = vsel %vm74, %v1648, 0
  %1796 = vmatprep.subr.mxu0 0.0
  %1797 = vmatpush1.msra.mxu0 %v14
  %1798 = vmatprep.subr.mxu0 0.0
  %1799 = vmatpush1.msra.mxu0 %v15
  %1800 = vmatprep.subr.mxu0 0.0
  %1801 = vmatpush1.msra.mxu0 %v16
  %1802 = vmatprep.subr.mxu0 0.0
  %1803 = vmatpush1.msra.mxu0 %v224
  %1804 = vmatprep.subr.mxu0 0.0
  %1805 = vmatpush1.msra.mxu0 0.0
  %1806 = vmatprep.subr.mxu0 0.0
  %1807 = vmatpush1.msra.mxu0 0.0
  %1808 = vmatprep.subr.mxu0 0.0
  %1809 = vmatpush1.msra.mxu0 0.0
  %1810 = vmatprep.subr.mxu0 0.0
  %1811 = vmatpush1.msra.mxu0 0.0
  %1812 = vmatprep.subr.mxu0 0.0
  %1813 = vmatpush1.msra.mxu0 0.0
  %1814 = vmatprep.subr.mxu0 0.0
  %1815 = vmatpush1.msra.mxu0 0.0
  %1816 = vmatprep.subr.mxu0 0.0
  %1817 = vmatpush1.msra.mxu0 0.0
  %1818 = vmatprep.subr.mxu0 0.0
  %1819 = vmatpush1.msra.mxu0 0.0
  %1820 = vmatprep.subr.mxu0 0.0
  %1821 = vmatpush1.msra.mxu0 0.0
  %1822 = vmatprep.subr.mxu0 0.0
  %1823 = vmatpush1.msra.mxu0 0.0
  %1824 = vmatprep.subr.mxu0 0.0
  %1825 = vmatpush1.msra.mxu0 0.0
  %1826 = vmatprep.subr.mxu0 0.0
  %1827 = vmatpush1.msra.mxu0 0.0
  %1828 = vmatprep.subr.mxu0 0.0
  %1829 = vmatpush1.msra.mxu0 0.0
  %1830 = vmatprep.subr.mxu0 0.0
  %1831 = vmatpush1.msra.mxu0 0.0
  %1832 = vmatprep.subr.mxu0 0.0
  %1833 = vmatpush1.msra.mxu0 0.0
  %1834 = vmatprep.subr.mxu0 0.0
  %1835 = vmatpush1.msra.mxu0 0.0
  %1836 = vmatprep.subr.mxu0 0.0
  %1837 = vmatpush1.msra.mxu0 0.0
  %1838 = vmatprep.subr.mxu0 0.0
  %1839 = vmatpush1.msra.mxu0 0.0
  %1840 = vmatprep.subr.mxu0 0.0
  %1841 = vmatpush1.msra.mxu0 0.0
  %1842 = vmatprep.subr.mxu0 0.0
  %1843 = vmatpush1.msra.mxu0 0.0
  %1844 = vmatprep.subr.mxu0 0.0
  %1845 = vmatpush1.msra.mxu0 0.0
  %1846 = vmatprep.subr.mxu0 0.0
  %1847 = vmatpush1.msra.mxu0 0.0
  %1848 = vmatprep.subr.mxu0 0.0
  %1849 = vmatpush1.msra.mxu0 0.0
  %1850 = vmatprep.subr.mxu0 0.0
  %1851 = vmatpush1.msra.mxu0 0.0
  %1852 = vmatprep.subr.mxu0 0.0
  %1853 = vmatpush1.msra.mxu0 0.0
  %1854 = vmatprep.subr.mxu0 0.0
  %1855 = vmatpush1.msra.mxu0 0.0
  %1856 = vmatprep.subr.mxu0 0.0
  %1857 = vmatpush1.msra.mxu0 0.0
  %1858 = vmatprep.subr.mxu0 0.0
  %1859 = vmatpush1.msra.mxu0 0.0
  %1860 = vmatprep.mubr.f32.mxu0 0.0
  %1861 = vmatmul.mubr.f32.gmra.mrb[0].mxu0 %v1650
  %v1862 = vpop.f32.mrb[0].mxu0
  %v1863 = vadd.f32 %v72, %v1862
  %v1864 = vpop.f32.mrb[0].mxu0
  %1865 = vmatprep.mubr.f32.mxu0 0.0
  %1866 = vmatmul.mubr.f32.gmra.mrb[0].mxu0 %v1653
  %v1867 = vpop.f32.mrb[0].mxu0
  %v1868 = vadd.f32 %v72, %v1867
  %v1869 = vpop.f32.mrb[0].mxu0
  %1870 = vmatprep.mubr.f32.mxu0 0.0
  %1871 = vmatmul.mubr.f32.gmra.mrb[0].mxu0 %v1656
  %v1872 = vpop.f32.mrb[0].mxu0
  %v1873 = vadd.f32 %v72, %v1872
  %v1874 = vpop.f32.mrb[0].mxu0
  %1875 = vmatprep.mubr.f32.mxu0 0.0
  %1876 = vmatmul.mubr.f32.gmra.mrb[0].mxu0 %v1659
  %v1877 = vpop.f32.mrb[0].mxu0
  %v1878 = vadd.f32 %v72, %v1877
  %v1879 = vpop.f32.mrb[0].mxu0
  %1880 = vmatprep.mubr.f32.mxu0 0.0
  %1881 = vmatmul.mubr.f32.gmra.mrb[0].mxu0 %v1662
  %v1882 = vpop.f32.mrb[0].mxu0
  %v1883 = vadd.f32 %v72, %v1882
  %v1884 = vpop.f32.mrb[0].mxu0
  %1885 = vmatprep.mubr.f32.mxu0 0.0
  %1886 = vmatmul.mubr.f32.gmra.mrb[0].mxu0 %v1665
  %v1887 = vpop.f32.mrb[0].mxu0
  %v1888 = vadd.f32 %v72, %v1887
  %v1889 = vpop.f32.mrb[0].mxu0
  %1890 = vmatprep.mubr.f32.mxu0 0.0
  %1891 = vmatmul.mubr.f32.gmra.mrb[0].mxu0 %v1668
  %v1892 = vpop.f32.mrb[0].mxu0
  %v1893 = vadd.f32 %v72, %v1892
  %v1894 = vpop.f32.mrb[0].mxu0
  %1895 = vmatprep.mubr.f32.mxu0 0.0
  %1896 = vmatmul.mubr.f32.gmra.mrb[0].mxu0 %v1671
  %v1897 = vpop.f32.mrb[0].mxu0
  %v1898 = vadd.f32 %v72, %v1897
  %v1899 = vpop.f32.mrb[0].mxu0
  %1900 = vmatprep.mubr.f32.mxu0 0.0
  %1901 = vmatmul.mubr.f32.gmra.mrb[0].mxu0 %v1674
  %v1902 = vpop.f32.mrb[0].mxu0
  %v1903 = vadd.f32 %v72, %v1902
  %v1904 = vpop.f32.mrb[0].mxu0
  %1905 = vmatprep.mubr.f32.mxu0 0.0
  %1906 = vmatmul.mubr.f32.gmra.mrb[0].mxu0 %v1677
  %v1907 = vpop.f32.mrb[0].mxu0
  %v1908 = vadd.f32 %v72, %v1907
  %v1909 = vpop.f32.mrb[0].mxu0
  %1910 = vmatprep.mubr.f32.mxu0 0.0
  %1911 = vmatmul.mubr.f32.gmra.mrb[0].mxu0 %v1680
  %v1912 = vpop.f32.mrb[0].mxu0
  %v1913 = vadd.f32 %v72, %v1912
  %v1914 = vpop.f32.mrb[0].mxu0
  %1915 = vmatprep.mubr.f32.mxu0 0.0
  %1916 = vmatmul.mubr.f32.gmra.mrb[0].mxu0 %v1683
  %v1917 = vpop.f32.mrb[0].mxu0
  %v1918 = vadd.f32 %v72, %v1917
  %v1919 = vpop.f32.mrb[0].mxu0
  %1920 = vmatprep.mubr.f32.mxu0 0.0
  %1921 = vmatmul.mubr.f32.gmra.mrb[0].mxu0 %v1686
  %v1922 = vpop.f32.mrb[0].mxu0
  %v1923 = vadd.f32 %v72, %v1922
  %v1924 = vpop.f32.mrb[0].mxu0
  %1925 = vmatprep.mubr.f32.mxu0 0.0
  %1926 = vmatmul.mubr.f32.gmra.mrb[0].mxu0 %v1689
  %v1927 = vpop.f32.mrb[0].mxu0
  %v1928 = vadd.f32 %v72, %v1927
  %v1929 = vpop.f32.mrb[0].mxu0
  %1930 = vmatprep.mubr.f32.mxu0 0.0
  %1931 = vmatmul.mubr.f32.gmra.mrb[0].mxu0 %v1692
  %v1932 = vpop.f32.mrb[0].mxu0
  %v1933 = vadd.f32 %v72, %v1932
  %v1934 = vpop.f32.mrb[0].mxu0
  %1935 = vmatprep.mubr.f32.mxu0 0.0
  %1936 = vmatmul.mubr.f32.gmra.mrb[0].mxu0 %v1695
  %v1937 = vpop.f32.mrb[0].mxu0
  %v1938 = vadd.f32 %v72, %v1937
  %v1939 = vpop.f32.mrb[0].mxu0
  %1940 = vmatprep.mubr.f32.mxu0 0.0
  %1941 = vmatmul.mubr.f32.gmra.mrb[0].mxu0 %v1698
  %v1942 = vpop.f32.mrb[0].mxu0
  %v1943 = vadd.f32 %v72, %v1942
  %v1944 = vpop.f32.mrb[0].mxu0
  %1945 = vmatprep.mubr.f32.mxu0 0.0
  %1946 = vmatmul.mubr.f32.gmra.mrb[0].mxu0 %v1701
  %v1947 = vpop.f32.mrb[0].mxu0
  %v1948 = vadd.f32 %v72, %v1947
  %v1949 = vpop.f32.mrb[0].mxu0
  %1950 = vmatprep.mubr.f32.mxu0 0.0
  %1951 = vmatmul.mubr.f32.gmra.mrb[0].mxu0 %v1704
  %v1952 = vpop.f32.mrb[0].mxu0
  %v1953 = vadd.f32 %v72, %v1952
  %v1954 = vpop.f32.mrb[0].mxu0
  %1955 = vmatprep.mubr.f32.mxu0 0.0
  %1956 = vmatmul.mubr.f32.gmra.mrb[0].mxu0 %v1707
  %v1957 = vpop.f32.mrb[0].mxu0
  %v1958 = vadd.f32 %v72, %v1957
  %v1959 = vpop.f32.mrb[0].mxu0
  %1960 = vmatprep.mubr.f32.mxu0 0.0
  %1961 = vmatmul.mubr.f32.gmra.mrb[0].mxu0 %v1710
  %v1962 = vpop.f32.mrb[0].mxu0
  %v1963 = vadd.f32 %v72, %v1962
  %v1964 = vpop.f32.mrb[0].mxu0
  %1965 = vmatprep.mubr.f32.mxu0 0.0
  %1966 = vmatmul.mubr.f32.gmra.mrb[0].mxu0 %v1713
  %v1967 = vpop.f32.mrb[0].mxu0
  %v1968 = vadd.f32 %v72, %v1967
  %v1969 = vpop.f32.mrb[0].mxu0
  %1970 = vmatprep.mubr.f32.mxu0 0.0
  %1971 = vmatmul.mubr.f32.gmra.mrb[0].mxu0 %v1716
  %v1972 = vpop.f32.mrb[0].mxu0
  %v1973 = vadd.f32 %v72, %v1972
  %v1974 = vpop.f32.mrb[0].mxu0
  %1975 = vmatprep.mubr.f32.mxu0 0.0
  %1976 = vmatmul.mubr.f32.gmra.mrb[0].mxu0 %v1719
  %v1977 = vpop.f32.mrb[0].mxu0
  %v1978 = vadd.f32 %v72, %v1977
  %v1979 = vpop.f32.mrb[0].mxu0
  %1980 = vmatprep.mubr.f32.mxu0 0.0
  %1981 = vmatmul.mubr.f32.gmra.mrb[0].mxu0 %v1722
  %v1982 = vpop.f32.mrb[0].mxu0
  %v1983 = vadd.f32 %v72, %v1982
  %v1984 = vpop.f32.mrb[0].mxu0
  %1985 = vmatprep.mubr.f32.mxu0 0.0
  %1986 = vmatmul.mubr.f32.gmra.mrb[0].mxu0 %v1725
  %v1987 = vpop.f32.mrb[0].mxu0
  %v1988 = vadd.f32 %v72, %v1987
  %v1989 = vpop.f32.mrb[0].mxu0
  %1990 = vmatprep.mubr.f32.mxu0 0.0
  %1991 = vmatmul.mubr.f32.gmra.mrb[0].mxu0 %v1728
  %v1992 = vpop.f32.mrb[0].mxu0
  %v1993 = vadd.f32 %v72, %v1992
  %v1994 = vpop.f32.mrb[0].mxu0
  %1995 = vmatprep.mubr.f32.mxu0 0.0
  %1996 = vmatmul.mubr.f32.gmra.mrb[0].mxu0 %v1731
  %v1997 = vpop.f32.mrb[0].mxu0
  %v1998 = vadd.f32 %v72, %v1997
  %v1999 = vpop.f32.mrb[0].mxu0
  %2000 = vmatprep.mubr.f32.mxu0 0.0
  %2001 = vmatmul.mubr.f32.gmra.mrb[0].mxu0 %v1734
  %v2002 = vpop.f32.mrb[0].mxu0
  %v2003 = vadd.f32 %v72, %v2002
  %v2004 = vpop.f32.mrb[0].mxu0
  %2005 = vmatprep.mubr.f32.mxu0 0.0
  %2006 = vmatmul.mubr.f32.gmra.mrb[0].mxu0 %v1737
  %v2007 = vpop.f32.mrb[0].mxu0
  %v2008 = vadd.f32 %v72, %v2007
  %v2009 = vpop.f32.mrb[0].mxu0
  %2010 = vmatprep.mubr.f32.mxu0 0.0
  %2011 = vmatmul.mubr.f32.gmra.mrb[0].mxu0 %v1740
  %v2012 = vpop.f32.mrb[0].mxu0
  %v2013 = vadd.f32 %v72, %v2012
  %v2014 = vpop.f32.mrb[0].mxu0
  %2015 = vmatprep.mubr.f32.mxu0 0.0
  %2016 = vmatmul.mubr.f32.gmra.mrb[0].mxu0 %v1743
  %v2017 = vpop.f32.mrb[0].mxu0
  %v2018 = vadd.f32 %v72, %v2017
  %v2019 = vpop.f32.mrb[0].mxu0
  %2020 = vmatprep.mubr.f32.mxu0 0.0
  %2021 = vmatmul.mubr.f32.gmra.mrb[0].mxu0 %v1746
  %v2022 = vpop.f32.mrb[0].mxu0
  %v2023 = vadd.f32 %v72, %v2022
  %v2024 = vpop.f32.mrb[0].mxu0
  %2025 = vmatprep.mubr.f32.mxu0 0.0
  %2026 = vmatmul.mubr.f32.gmra.mrb[0].mxu0 %v1749
  %v2027 = vpop.f32.mrb[0].mxu0
  %v2028 = vadd.f32 %v72, %v2027
  %v2029 = vpop.f32.mrb[0].mxu0
  %2030 = vmatprep.mubr.f32.mxu0 0.0
  %2031 = vmatmul.mubr.f32.gmra.mrb[0].mxu0 %v1752
  %v2032 = vpop.f32.mrb[0].mxu0
  %v2033 = vadd.f32 %v72, %v2032
  %v2034 = vpop.f32.mrb[0].mxu0
  %2035 = vmatprep.mubr.f32.mxu0 0.0
  %2036 = vmatmul.mubr.f32.gmra.mrb[0].mxu0 %v1755
  %v2037 = vpop.f32.mrb[0].mxu0
  %v2038 = vadd.f32 %v72, %v2037
  %v2039 = vpop.f32.mrb[0].mxu0
  %2040 = vmatprep.mubr.f32.mxu0 0.0
  %2041 = vmatmul.mubr.f32.gmra.mrb[0].mxu0 %v1758
  %v2042 = vpop.f32.mrb[0].mxu0
  %v2043 = vadd.f32 %v72, %v2042
  %v2044 = vpop.f32.mrb[0].mxu0
  %2045 = vmatprep.mubr.f32.mxu0 0.0
  %2046 = vmatmul.mubr.f32.gmra.mrb[0].mxu0 %v1761
  %v2047 = vpop.f32.mrb[0].mxu0
  %v2048 = vadd.f32 %v72, %v2047
  %v2049 = vpop.f32.mrb[0].mxu0
  %2050 = vmatprep.mubr.f32.mxu0 0.0
  %2051 = vmatmul.mubr.f32.gmra.mrb[0].mxu0 %v1764
  %v2052 = vpop.f32.mrb[0].mxu0
  %v2053 = vadd.f32 %v72, %v2052
  %v2054 = vpop.f32.mrb[0].mxu0
  %2055 = vmatprep.mubr.f32.mxu0 0.0
  %2056 = vmatmul.mubr.f32.gmra.mrb[0].mxu0 %v1767
  %v2057 = vpop.f32.mrb[0].mxu0
  %v2058 = vadd.f32 %v72, %v2057
  %v2059 = vpop.f32.mrb[0].mxu0
  %2060 = vmatprep.mubr.f32.mxu0 0.0
  %2061 = vmatmul.mubr.f32.gmra.mrb[0].mxu0 %v1770
  %v2062 = vpop.f32.mrb[0].mxu0
  %v2063 = vadd.f32 %v72, %v2062
  %v2064 = vpop.f32.mrb[0].mxu0
  %2065 = vmatprep.mubr.f32.mxu0 0.0
  %2066 = vmatmul.mubr.f32.gmra.mrb[0].mxu0 %v1773
  %v2067 = vpop.f32.mrb[0].mxu0
  %v2068 = vadd.f32 %v72, %v2067
  %v2069 = vpop.f32.mrb[0].mxu0
  %2070 = vmatprep.mubr.f32.mxu0 0.0
  %2071 = vmatmul.mubr.f32.gmra.mrb[0].mxu0 %v1776
  %v2072 = vpop.f32.mrb[0].mxu0
  %v2073 = vadd.f32 %v72, %v2072
  %v2074 = vpop.f32.mrb[0].mxu0
  %2075 = vmatprep.mubr.f32.mxu0 0.0
  %2076 = vmatmul.mubr.f32.gmra.mrb[0].mxu0 %v1779
  %v2077 = vpop.f32.mrb[0].mxu0
  %v2078 = vadd.f32 %v72, %v2077
  %v2079 = vpop.f32.mrb[0].mxu0
  %2080 = vmatprep.mubr.f32.mxu0 0.0
  %2081 = vmatmul.mubr.f32.gmra.mrb[0].mxu0 %v1782
  %v2082 = vpop.f32.mrb[0].mxu0
  %v2083 = vadd.f32 %v72, %v2082
  %v2084 = vpop.f32.mrb[0].mxu0
  %2085 = vmatprep.mubr.f32.mxu0 0.0
  %2086 = vmatmul.mubr.f32.gmra.mrb[0].mxu0 %v1785
  %v2087 = vpop.f32.mrb[0].mxu0
  %v2088 = vadd.f32 %v72, %v2087
  %v2089 = vpop.f32.mrb[0].mxu0
  %2090 = vmatprep.mubr.f32.mxu0 0.0
  %2091 = vmatmul.mubr.f32.gmra.mrb[0].mxu0 %v1788
  %v2092 = vpop.f32.mrb[0].mxu0
  %v2093 = vadd.f32 %v72, %v2092
  %v2094 = vpop.f32.mrb[0].mxu0
  %2095 = vmatprep.mubr.f32.mxu0 0.0
  %2096 = vmatmul.mubr.f32.gmra.mrb[0].mxu0 %v1791
  %v2097 = vpop.f32.mrb[0].mxu0
  %v2098 = vadd.f32 %v72, %v2097
  %v2099 = vpop.f32.mrb[0].mxu0
  %2100 = vmatprep.mubr.f32.mxu0 0.0
  %2101 = vmatmul.mubr.f32.gmra.mrb[0].mxu0 %v1794
  %v2102 = vpop.f32.mrb[0].mxu0
  %v2103 = vadd.f32 %v72, %v2102
  %v2104 = vpop.f32.mrb[0].mxu0
  %2105 = vdwg.mxu0
  %v2106 = vmax.f32 %v1356, %v1863
  %v2107 = vmax.f32 %v1361, %v1868
  %v2108 = vmax.f32 %v1366, %v1873
  %v2109 = vmax.f32 %v1371, %v1878
  %v2110 = vmax.f32 %v1376, %v1883
  %v2111 = vmax.f32 %v1381, %v1888
  %v2112 = vmax.f32 %v1386, %v1893
  %v2113 = vmax.f32 %v1391, %v1898
  %v2114 = vmax.f32 %v1396, %v1903
  %v2115 = vmax.f32 %v1401, %v1908
  %v2116 = vmax.f32 %v1406, %v1913
  %v2117 = vmax.f32 %v1411, %v1918
  %v2118 = vmax.f32 %v1416, %v1923
  %v2119 = vmax.f32 %v1421, %v1928
  %v2120 = vmax.f32 %v1426, %v1933
  %v2121 = vmax.f32 %v1431, %v1938
  %v2122 = vmax.f32 %v1436, %v1943
  %v2123 = vmax.f32 %v1441, %v1948
  %v2124 = vmax.f32 %v1446, %v1953
  %v2125 = vmax.f32 %v1451, %v1958
  %v2126 = vmax.f32 %v1456, %v1963
  %v2127 = vmax.f32 %v1461, %v1968
  %v2128 = vmax.f32 %v1466, %v1973
  %v2129 = vmax.f32 %v1471, %v1978
  %v2130 = vmax.f32 %v1476, %v1983
  %v2131 = vmax.f32 %v1481, %v1988
  %v2132 = vmax.f32 %v1486, %v1993
  %v2133 = vmax.f32 %v1491, %v1998
  %v2134 = vmax.f32 %v1496, %v2003
  %v2135 = vmax.f32 %v1501, %v2008
  %v2136 = vmax.f32 %v1506, %v2013
  %v2137 = vmax.f32 %v1511, %v2018
  %v2138 = vmax.f32 %v1516, %v2023
  %v2139 = vmax.f32 %v1521, %v2028
  %v2140 = vmax.f32 %v1526, %v2033
  %v2141 = vmax.f32 %v1531, %v2038
  %v2142 = vmax.f32 %v1536, %v2043
  %v2143 = vmax.f32 %v1541, %v2048
  %v2144 = vmax.f32 %v1546, %v2053
  %v2145 = vmax.f32 %v1551, %v2058
  %v2146 = vmax.f32 %v1556, %v2063
  %v2147 = vmax.f32 %v1561, %v2068
  %v2148 = vmax.f32 %v1566, %v2073
  %v2149 = vmax.f32 %v1571, %v2078
  %v2150 = vmax.f32 %v1576, %v2083
  %v2151 = vmax.f32 %v1581, %v2088
  %v2152 = vmax.f32 %v1586, %v2093
  %v2153 = vmax.f32 %v1591, %v2098
  %v2154 = vmax.f32 %v1596, %v2103
  %v2155 = vmax.f32 %v1043, %v2106
  %v2156 = vmax.f32 %v1044, %v2107
  %v2157 = vmax.f32 %v1045, %v2108
  %v2158 = vmax.f32 %v1046, %v2109
  %v2159 = vmax.f32 %v1047, %v2110
  %v2160 = vmax.f32 %v1048, %v2111
  %v2161 = vmax.f32 %v1049, %v2112
  %v2162 = vmax.f32 %v1050, %v2113
  %v2163 = vmax.f32 %v1051, %v2114
  %v2164 = vmax.f32 %v1052, %v2115
  %v2165 = vmax.f32 %v1053, %v2116
  %v2166 = vmax.f32 %v1054, %v2117
  %v2167 = vmax.f32 %v1055, %v2118
  %v2168 = vmax.f32 %v1056, %v2119
  %v2169 = vmax.f32 %v1057, %v2120
  %v2170 = vmax.f32 %v1058, %v2121
  %v2171 = vmax.f32 %v1059, %v2122
  %v2172 = vmax.f32 %v1060, %v2123
  %v2173 = vmax.f32 %v1061, %v2124
  %v2174 = vmax.f32 %v1062, %v2125
  %v2175 = vmax.f32 %v1063, %v2126
  %v2176 = vmax.f32 %v1064, %v2127
  %v2177 = vmax.f32 %v1065, %v2128
  %v2178 = vmax.f32 %v1066, %v2129
  %v2179 = vmax.f32 %v1067, %v2130
  %v2180 = vmax.f32 %v1068, %v2131
  %v2181 = vmax.f32 %v1069, %v2132
  %v2182 = vmax.f32 %v1070, %v2133
  %v2183 = vmax.f32 %v1071, %v2134
  %v2184 = vmax.f32 %v1072, %v2135
  %v2185 = vmax.f32 %v1073, %v2136
  %v2186 = vmax.f32 %v1074, %v2137
  %v2187 = vmax.f32 %v1075, %v2138
  %v2188 = vmax.f32 %v1076, %v2139
  %v2189 = vmax.f32 %v1077, %v2140
  %v2190 = vmax.f32 %v1078, %v2141
  %v2191 = vmax.f32 %v1079, %v2142
  %v2192 = vmax.f32 %v1080, %v2143
  %v2193 = vmax.f32 %v1081, %v2144
  %v2194 = vmax.f32 %v1082, %v2145
  %v2195 = vmax.f32 %v1083, %v2146
  %v2196 = vmax.f32 %v1084, %v2147
  %v2197 = vmax.f32 %v1085, %v2148
  %v2198 = vmax.f32 %v1086, %v2149
  %v2199 = vmax.f32 %v1087, %v2150
  %v2200 = vmax.f32 %v1088, %v2151
  %v2201 = vmax.f32 %v1089, %v2152
  %v2202 = vmax.f32 %v1090, %v2153
  %v2203 = vmax.f32 %v1091, %v2154
  %v2204 = vmax.f32 %v2155, 0.0
  %v2205 = vmax.f32 %v2156, 0.0
  %v2206 = vmax.f32 %v2157, 0.0
  %v2207 = vmax.f32 %v2158, 0.0
  %v2208 = vmax.f32 %v2159, 0.0
  %v2209 = vmax.f32 %v2160, 0.0
  %v2210 = vmax.f32 %v2161, 0.0
  %v2211 = vmax.f32 %v2162, 0.0
  %v2212 = vmax.f32 %v2163, 0.0
  %v2213 = vmax.f32 %v2164, 0.0
  %v2214 = vmax.f32 %v2165, 0.0
  %v2215 = vmax.f32 %v2166, 0.0
  %v2216 = vmax.f32 %v2167, 0.0
  %v2217 = vmax.f32 %v2168, 0.0
  %v2218 = vmax.f32 %v2169, 0.0
  %v2219 = vmax.f32 %v2170, 0.0
  %v2220 = vmax.f32 %v2171, 0.0
  %v2221 = vmax.f32 %v2172, 0.0
  %v2222 = vmax.f32 %v2173, 0.0
  %v2223 = vmax.f32 %v2174, 0.0
  %v2224 = vmax.f32 %v2175, 0.0
  %v2225 = vmax.f32 %v2176, 0.0
  %v2226 = vmax.f32 %v2177, 0.0
  %v2227 = vmax.f32 %v2178, 0.0
  %v2228 = vmax.f32 %v2179, 0.0
  %v2229 = vmax.f32 %v2180, 0.0
  %v2230 = vmax.f32 %v2181, 0.0
  %v2231 = vmax.f32 %v2182, 0.0
  %v2232 = vmax.f32 %v2183, 0.0
  %v2233 = vmax.f32 %v2184, 0.0
  %v2234 = vmax.f32 %v2185, 0.0
  %v2235 = vmax.f32 %v2186, 0.0
  %v2236 = vmax.f32 %v2187, 0.0
  %v2237 = vmax.f32 %v2188, 0.0
  %v2238 = vmax.f32 %v2189, 0.0
  %v2239 = vmax.f32 %v2190, 0.0
  %v2240 = vmax.f32 %v2191, 0.0
  %v2241 = vmax.f32 %v2192, 0.0
  %v2242 = vmax.f32 %v2193, 0.0
  %v2243 = vmax.f32 %v2194, 0.0
  %v2244 = vmax.f32 %v2195, 0.0
  %v2245 = vmax.f32 %v2196, 0.0
  %v2246 = vmax.f32 %v2197, 0.0
  %v2247 = vmax.f32 %v2198, 0.0
  %v2248 = vmax.f32 %v2199, 0.0
  %v2249 = vmax.f32 %v2200, 0.0
  %v2250 = vmax.f32 %v2201, 0.0
  %v2251 = vmax.f32 %v2202, 0.0
  %v2252 = vmax.f32 %v2203, 0.0
  %vm2253 = vcmask 48128
  %2254 = vst.msk [vmem:[%s3] sm:$0xff] %vm2253, %v2204
  %2255 = vst.msk [vmem:[%s3 + $0x8] sm:$0xff] %vm2253, %v2205
  %2256 = vst.msk [vmem:[%s3 + $0x10] sm:$0xff] %vm2253, %v2206
  %2257 = vst.msk [vmem:[%s3 + $0x18] sm:$0xff] %vm2253, %v2207
  %2258 = vst.msk [vmem:[%s3 + $0x20] sm:$0xff] %vm2253, %v2208
  %2259 = vst.msk [vmem:[%s3 + $0x28] sm:$0xff] %vm2253, %v2209
  %2260 = vst.msk [vmem:[%s3 + $0x30] sm:$0xff] %vm2253, %v2210
  %2261 = vst.msk [vmem:[%s3 + $0x38] sm:$0xff] %vm2253, %v2211
  %2262 = vst.msk [vmem:[%s3 + $0x40] sm:$0xff] %vm2253, %v2212
  %2263 = vst.msk [vmem:[%s3 + $0x48] sm:$0xff] %vm2253, %v2213
  %2264 = vst.msk [vmem:[%s3 + $0x50] sm:$0xff] %vm2253, %v2214
  %2265 = vst.msk [vmem:[%s3 + $0x58] sm:$0xff] %vm2253, %v2215
  %2266 = vst.msk [vmem:[%s3 + $0x60] sm:$0xff] %vm2253, %v2216
  %2267 = vst.msk [vmem:[%s3 + $0x68] sm:$0xff] %vm2253, %v2217
  %2268 = vst.msk [vmem:[%s3 + $0x70] sm:$0xff] %vm2253, %v2218
  %2269 = vst.msk [vmem:[%s3 + $0x78] sm:$0xff] %vm2253, %v2219
  %2270 = vst.msk [vmem:[%s3 + $0x80] sm:$0xff] %vm2253, %v2220
  %2271 = vst.msk [vmem:[%s3 + $0x88] sm:$0xff] %vm2253, %v2221
  %2272 = vst.msk [vmem:[%s3 + $0x90] sm:$0xff] %vm2253, %v2222
  %2273 = vst.msk [vmem:[%s3 + $0x98] sm:$0xff] %vm2253, %v2223
  %2274 = vst.msk [vmem:[%s3 + $0xa0] sm:$0xff] %vm2253, %v2224
  %2275 = vst.msk [vmem:[%s3 + $0xa8] sm:$0xff] %vm2253, %v2225
  %2276 = vst.msk [vmem:[%s3 + $0xb0] sm:$0xff] %vm2253, %v2226
  %2277 = vst.msk [vmem:[%s3 + $0xb8] sm:$0xff] %vm2253, %v2227
  %2278 = vst.msk [vmem:[%s3 + $0xc0] sm:$0xff] %vm2253, %v2228
  %2279 = vst.msk [vmem:[%s3 + $0xc8] sm:$0xff] %vm2253, %v2229
  %2280 = vst.msk [vmem:[%s3 + $0xd0] sm:$0xff] %vm2253, %v2230
  %2281 = vst.msk [vmem:[%s3 + $0xd8] sm:$0xff] %vm2253, %v2231
  %2282 = vst.msk [vmem:[%s3 + $0xe0] sm:$0xff] %vm2253, %v2232
  %2283 = vst.msk [vmem:[%s3 + $0xe8] sm:$0xff] %vm2253, %v2233
  %2284 = vst.msk [vmem:[%s3 + $0xf0] sm:$0xff] %vm2253, %v2234
  %2285 = vst.msk [vmem:[%s3 + $0xf8] sm:$0xff] %vm2253, %v2235
  %2286 = vst.msk [vmem:[%s3 + $0x100] sm:$0xff] %vm2253, %v2236
  %2287 = vst.msk [vmem:[%s3 + $0x108] sm:$0xff] %vm2253, %v2237
  %2288 = vst.msk [vmem:[%s3 + $0x110] sm:$0xff] %vm2253, %v2238
  %2289 = vst.msk [vmem:[%s3 + $0x118] sm:$0xff] %vm2253, %v2239
  %2290 = vst.msk [vmem:[%s3 + $0x120] sm:$0xff] %vm2253, %v2240
  %2291 = vst.msk [vmem:[%s3 + $0x128] sm:$0xff] %vm2253, %v2241
  %2292 = vst.msk [vmem:[%s3 + $0x130] sm:$0xff] %vm2253, %v2242
  %2293 = vst.msk [vmem:[%s3 + $0x138] sm:$0xff] %vm2253, %v2243
  %2294 = vst.msk [vmem:[%s3 + $0x140] sm:$0xff] %vm2253, %v2244
  %2295 = vst.msk [vmem:[%s3 + $0x148] sm:$0xff] %vm2253, %v2245
  %2296 = vst.msk [vmem:[%s3 + $0x150] sm:$0xff] %vm2253, %v2246
  %2297 = vst.msk [vmem:[%s3 + $0x158] sm:$0xff] %vm2253, %v2247
  %2298 = vst.msk [vmem:[%s3 + $0x160] sm:$0xff] %vm2253, %v2248
  %2299 = vst.msk [vmem:[%s3 + $0x168] sm:$0xff] %vm2253, %v2249
  %2300 = vst.msk [vmem:[%s3 + $0x170] sm:$0xff] %vm2253, %v2250
  %2301 = vst.msk [vmem:[%s3 + $0x178] sm:$0xff] %vm2253, %v2251
  %2302 = vst.msk [vmem:[%s3 + $0x180] sm:$0xff] %vm2253, %v2252
  // Predicated region
  $region14: #{lenet_forward.3} parent=0 // pred_check
    _
  $region15: #{lenet_forward.3} parent=0 // pred_check_branch
    %2304 = sbr.rel (0) target = $region17
  $region16: #{lenet_forward.3} parent=0 // pred_region
    _
  $region17: #{lenet_forward.3} parent=0 // pred_fallthru
    _
  // Predicated region
  $region18: #{lenet_forward.3} parent=0 // pred_check
    _
  $region19: #{lenet_forward.3} parent=0 // pred_check_branch
    %2306 = sbr.rel (0) target = $region21
  $region20: #{lenet_forward.3} parent=0 // pred_region
    _
  $region21: #{lenet_forward.3} parent=0 // pred_fallthru
    _

// kernel: lenet_forward.4
$region0: #{lenet_forward.4}
  #allocation0 [shape = 'u32[]', space=smem, size = 0x4, offset = 0x4, fixed_abs, tag = 'smem constant byte address 0x4 - core index']
  #allocation1 [shape = 'u32[144,128]{1,0:T(1,128)}', space=vmem, size = 0x12000, scoped, tag = 'internal scratch']
  %s0 = inlined_call_operand.vmem [shape: f32[4,50,150], index: 0, kind: input, shape index: {}]
  %s1 = inlined_call_operand.vmem [shape: f32[150,16], index: 1, kind: input, shape index: {}]
  %s2 = inlined_call_operand.vmem [shape: f32[1,16], index: 2, kind: input, shape index: {}]
  %s3 = inlined_call_operand.vmem [shape: f32[50,16], index: 3, kind: output, shape index: {}]
  %s4 = sld [smem:[#allocation0]]
  $region22: #{lenet_forward.4} parent=0
    _
  %s6 = ssub.s32 1, %s4
  %s7 = scalar_select 0, %s6, %s4
  // Predicated region
  $region2: #{lenet_forward.4} parent=0 // pred_check
    _
  $region3: #{lenet_forward.4} parent=0 // pred_check_branch
    %9 = sbr.rel (0) target = $region5
  $region4: #{lenet_forward.4} parent=0 // pred_region
    _
  $region5: #{lenet_forward.4} parent=0 // pred_fallthru
    _
  // Predicated region
  $region6: #{lenet_forward.4} parent=0 // pred_check
    _
  $region7: #{lenet_forward.4} parent=0 // pred_check_branch
    %11 = sbr.rel (0) target = $region9
  $region8: #{lenet_forward.4} parent=0 // pred_region
    _
  $region9: #{lenet_forward.4} parent=0 // pred_fallthru
    _
  // Predicated region
  $region10: #{lenet_forward.4} parent=0 // pred_check
    _
  $region11: #{lenet_forward.4} parent=0 // pred_check_branch
    %13 = sbr.rel (0) target = $region13
  $region12: #{lenet_forward.4} parent=0 // pred_region
    _
  $region13: #{lenet_forward.4} parent=0 // pred_fallthru
    _
  %v14 = vld [vmem:[%s1] sm:$0xff]
  %v15 = vld [vmem:[%s1 + $0x8] sm:$0xff]
  %v16 = vld [vmem:[%s1 + $0x10] sm:$0xff]
  %v17 = vld [vmem:[%s1 + $0x18] sm:$0xff]
  %v18 = vld [vmem:[%s1 + $0x20] sm:$0xff]
  %v19 = vld [vmem:[%s1 + $0x28] sm:$0xff]
  %v20 = vld [vmem:[%s1 + $0x30] sm:$0xff]
  %v21 = vld [vmem:[%s1 + $0x38] sm:$0xff]
  %v22 = vld [vmem:[%s1 + $0x40] sm:$0xff]
  %v23 = vld [vmem:[%s1 + $0x48] sm:$0xff]
  %v24 = vld [vmem:[%s1 + $0x50] sm:$0xff]
  %v25 = vld [vmem:[%s1 + $0x58] sm:$0xff]
  %v26 = vld [vmem:[%s1 + $0x60] sm:$0xff]
  %v27 = vld [vmem:[%s1 + $0x68] sm:$0xff]
  %v28 = vld [vmem:[%s1 + $0x70] sm:$0xff]
  %v29 = vld [vmem:[%s1 + $0x78] sm:$0xff]
  %v30 = vld [vmem:[%s1 + $0x80] sm:$0xff]
  %v31 = vld [vmem:[%s1 + $0x88] sm:$0xff]
  %v32 = vld [vmem:[%s1 + $0x90] sm:$0x3f]
  %v33 = vld [vmem:[%s2] sm:$0x1]
  %v34 = vld [vmem:[%s0] sm:$0xff]
  %v35 = vld [vmem:[%s0 + $0x8] sm:$0xff]
  %v36 = vld [vmem:[%s0 + $0x10] sm:$0xff]
  %v37 = vld [vmem:[%s0 + $0x18] sm:$0xff]
  %v38 = vld [vmem:[%s0 + $0x20] sm:$0xff]
  %v39 = vld [vmem:[%s0 + $0x28] sm:$0xff]
  %v40 = vld [vmem:[%s0 + $0x30] sm:$0xff]
  %v41 = vld [vmem:[%s0 + $0x38] sm:$0xff]
  %v42 = vld [vmem:[%s0 + $0x40] sm:$0xff]
  %v43 = vld [vmem:[%s0 + $0x48] sm:$0xff]
  %v44 = vld [vmem:[%s0 + $0x50] sm:$0xff]
  %v45 = vld [vmem:[%s0 + $0x58] sm:$0xff]
  %v46 = vld [vmem:[%s0 + $0x60] sm:$0x3]
  %v47 = vld [vmem:[%s0 + $0x68] sm:$0x3]
  %v49 = vlaneseq
  %v50 = vshrl.u32 %v49, 7
  %v51 = vsub.s32 0, %v50
  %v52 = vrot.slane %v33, %v51
  %vm54 = vcmask 179200
  %v56 = vsel %vm54, %v35, 0
  %v59 = vsel %vm54, %v37, 0
  %v62 = vsel %vm54, %v39, 0
  %v65 = vsel %vm54, %v41, 0
  %v68 = vsel %vm54, %v43, 0
  %v71 = vsel %vm54, %v45, 0
  %v74 = vsel %vm54, %v47, 0
  %vm76 = vcmask 1045504
  %v78 = vsel %vm76, %v32, 0
  %80 = vmatprep.subr.mxu0 0.0
  %81 = vmatpush1.msra.mxu0 %v14
  %82 = vmatprep.subr.mxu0 0.0
  %83 = vmatpush1.msra.mxu0 %v15
  %84 = vmatprep.subr.mxu0 0.0
  %85 = vmatpush1.msra.mxu0 %v16
  %86 = vmatprep.subr.mxu0 0.0
  %87 = vmatpush1.msra.mxu0 %v17
  %88 = vmatprep.subr.mxu0 0.0
  %89 = vmatpush1.msra.mxu0 %v18
  %90 = vmatprep.subr.mxu0 0.0
  %91 = vmatpush1.msra.mxu0 %v19
  %92 = vmatprep.subr.mxu0 0.0
  %93 = vmatpush1.msra.mxu0 %v20
  %94 = vmatprep.subr.mxu0 0.0
  %95 = vmatpush1.msra.mxu0 %v21
  %96 = vmatprep.subr.mxu0 0.0
  %97 = vmatpush1.msra.mxu0 %v22
  %98 = vmatprep.subr.mxu0 0.0
  %99 = vmatpush1.msra.mxu0 %v23
  %100 = vmatprep.subr.mxu0 0.0
  %101 = vmatpush1.msra.mxu0 %v24
  %102 = vmatprep.subr.mxu0 0.0
  %103 = vmatpush1.msra.mxu0 %v25
  %104 = vmatprep.subr.mxu0 0.0
  %105 = vmatpush1.msra.mxu0 %v26
  %106 = vmatprep.subr.mxu0 0.0
  %107 = vmatpush1.msra.mxu0 %v27
  %108 = vmatprep.subr.mxu0 0.0
  %109 = vmatpush1.msra.mxu0 %v28
  %110 = vmatprep.subr.mxu0 0.0
  %111 = vmatpush1.msra.mxu0 %v29
  %112 = vmatprep.subr.mxu0 0.0
  %113 = vmatpush1.msra.mxu0 %v30
  %114 = vmatprep.subr.mxu0 0.0
  %115 = vmatpush1.msra.mxu0 %v31
  %116 = vmatprep.subr.mxu0 0.0
  %117 = vmatpush1.msra.mxu0 %v78
  %118 = vmatprep.subr.mxu0 0.0
  %119 = vmatpush1.msra.mxu0 0.0
  %120 = vmatprep.subr.mxu0 0.0
  %121 = vmatpush1.msra.mxu0 0.0
  %122 = vmatprep.subr.mxu0 0.0
  %123 = vmatpush1.msra.mxu0 0.0
  %124 = vmatprep.subr.mxu0 0.0
  %125 = vmatpush1.msra.mxu0 0.0
  %126 = vmatprep.subr.mxu0 0.0
  %127 = vmatpush1.msra.mxu0 0.0
  %128 = vmatprep.subr.mxu0 0.0
  %129 = vmatpush1.msra.mxu0 0.0
  %130 = vmatprep.subr.mxu0 0.0
  %131 = vmatpush1.msra.mxu0 0.0
  %132 = vmatprep.subr.mxu0 0.0
  %133 = vmatpush1.msra.mxu0 0.0
  %134 = vmatprep.subr.mxu0 0.0
  %135 = vmatpush1.msra.mxu0 0.0
  %136 = vmatprep.subr.mxu0 0.0
  %137 = vmatpush1.msra.mxu0 0.0
  %138 = vmatprep.subr.mxu0 0.0
  %139 = vmatpush1.msra.mxu0 0.0
  %140 = vmatprep.subr.mxu0 0.0
  %141 = vmatpush1.msra.mxu0 0.0
  %142 = vmatprep.subr.mxu0 0.0
  %143 = vmatpush1.msra.mxu0 0.0
  %144 = vmatprep.mubr.f32.mxu0 %v56
  %145 = vmatmul.mubr.f32.gmra.mrb[0].mxu0 %v34
  %v146 = vpop.f32.mrb[0].mxu0
  %v147 = vadd.f32 %v52, %v146
  %v148 = vpop.f32.mrb[0].mxu0
  %149 = vmatprep.mubr.f32.mxu0 %v59
  %150 = vmatmul.mubr.f32.gmra.mrb[0].mxu0 %v36
  %v151 = vpop.f32.mrb[0].mxu0
  %v152 = vadd.f32 %v52, %v151
  %v153 = vpop.f32.mrb[0].mxu0
  %154 = vmatprep.mubr.f32.mxu0 %v62
  %155 = vmatmul.mubr.f32.gmra.mrb[0].mxu0 %v38
  %v156 = vpop.f32.mrb[0].mxu0
  %v157 = vadd.f32 %v52, %v156
  %v158 = vpop.f32.mrb[0].mxu0
  %159 = vmatprep.mubr.f32.mxu0 %v65
  %160 = vmatmul.mubr.f32.gmra.mrb[0].mxu0 %v40
  %v161 = vpop.f32.mrb[0].mxu0
  %v162 = vadd.f32 %v52, %v161
  %v163 = vpop.f32.mrb[0].mxu0
  %164 = vmatprep.mubr.f32.mxu0 %v68
  %165 = vmatmul.mubr.f32.gmra.mrb[0].mxu0 %v42
  %v166 = vpop.f32.mrb[0].mxu0
  %v167 = vadd.f32 %v52, %v166
  %v168 = vpop.f32.mrb[0].mxu0
  %169 = vmatprep.mubr.f32.mxu0 %v71
  %170 = vmatmul.mubr.f32.gmra.mrb[0].mxu0 %v44
  %v171 = vpop.f32.mrb[0].mxu0
  %v172 = vadd.f32 %v52, %v171
  %v173 = vpop.f32.mrb[0].mxu0
  %174 = vmatprep.mubr.f32.mxu0 %v74
  %175 = vmatmul.mubr.f32.gmra.mrb[0].mxu0 %v46
  %v176 = vpop.f32.mrb[0].mxu0
  %v177 = vadd.f32 %v52, %v176
  %v178 = vpop.f32.mrb[0].mxu0
  %179 = vdwg.mxu0
  %s180 = scalar_lea.vmem %s0, 112
  %v181 = vld [vmem:[%s180] sm:$0xff]
  %v182 = vld [vmem:[%s180 + $0x8] sm:$0xff]
  %v183 = vld [vmem:[%s180 + $0x10] sm:$0xff]
  %v184 = vld [vmem:[%s180 + $0x18] sm:$0xff]
  %v185 = vld [vmem:[%s180 + $0x20] sm:$0xff]
  %v186 = vld [vmem:[%s180 + $0x28] sm:$0xff]
  %v187 = vld [vmem:[%s180 + $0x30] sm:$0xff]
  %v188 = vld [vmem:[%s180 + $0x38] sm:$0xff]
  %v189 = vld [vmem:[%s180 + $0x40] sm:$0xff]
  %v190 = vld [vmem:[%s180 + $0x48] sm:$0xff]
  %v191 = vld [vmem:[%s180 + $0x50] sm:$0xff]
  %v192 = vld [vmem:[%s180 + $0x58] sm:$0xff]
  %v193 = vld [vmem:[%s180 + $0x60] sm:$0x3]
  %v194 = vld [vmem:[%s180 + $0x68] sm:$0x3]
  %v196 = vsel %vm54, %v182, 0
  %v199 = vsel %vm54, %v184, 0
  %v202 = vsel %vm54, %v186, 0
  %v205 = vsel %vm54, %v188, 0
  %v208 = vsel %vm54, %v190, 0
  %v211 = vsel %vm54, %v192, 0
  %v214 = vsel %vm54, %v194, 0
  %216 = vmatprep.subr.mxu0 0.0
  %217 = vmatpush1.msra.mxu0 %v14
  %218 = vmatprep.subr.mxu0 0.0
  %219 = vmatpush1.msra.mxu0 %v15
  %220 = vmatprep.subr.mxu0 0.0
  %221 = vmatpush1.msra.mxu0 %v16
  %222 = vmatprep.subr.mxu0 0.0
  %223 = vmatpush1.msra.mxu0 %v17
  %224 = vmatprep.subr.mxu0 0.0
  %225 = vmatpush1.msra.mxu0 %v18
  %226 = vmatprep.subr.mxu0 0.0
  %227 = vmatpush1.msra.mxu0 %v19
  %228 = vmatprep.subr.mxu0 0.0
  %229 = vmatpush1.msra.mxu0 %v20
  %230 = vmatprep.subr.mxu0 0.0
  %231 = vmatpush1.msra.mxu0 %v21
  %232 = vmatprep.subr.mxu0 0.0
  %233 = vmatpush1.msra.mxu0 %v22
  %234 = vmatprep.subr.mxu0 0.0
  %235 = vmatpush1.msra.mxu0 %v23
  %236 = vmatprep.subr.mxu0 0.0
  %237 = vmatpush1.msra.mxu0 %v24
  %238 = vmatprep.subr.mxu0 0.0
  %239 = vmatpush1.msra.mxu0 %v25
  %240 = vmatprep.subr.mxu0 0.0
  %241 = vmatpush1.msra.mxu0 %v26
  %242 = vmatprep.subr.mxu0 0.0
  %243 = vmatpush1.msra.mxu0 %v27
  %244 = vmatprep.subr.mxu0 0.0
  %245 = vmatpush1.msra.mxu0 %v28
  %246 = vmatprep.subr.mxu0 0.0
  %247 = vmatpush1.msra.mxu0 %v29
  %248 = vmatprep.subr.mxu0 0.0
  %249 = vmatpush1.msra.mxu0 %v30
  %250 = vmatprep.subr.mxu0 0.0
  %251 = vmatpush1.msra.mxu0 %v31
  %252 = vmatprep.subr.mxu0 0.0
  %253 = vmatpush1.msra.mxu0 %v78
  %254 = vmatprep.subr.mxu0 0.0
  %255 = vmatpush1.msra.mxu0 0.0
  %256 = vmatprep.subr.mxu0 0.0
  %257 = vmatpush1.msra.mxu0 0.0
  %258 = vmatprep.subr.mxu0 0.0
  %259 = vmatpush1.msra.mxu0 0.0
  %260 = vmatprep.subr.mxu0 0.0
  %261 = vmatpush1.msra.mxu0 0.0
  %262 = vmatprep.subr.mxu0 0.0
  %263 = vmatpush1.msra.mxu0 0.0
  %264 = vmatprep.subr.mxu0 0.0
  %265 = vmatpush1.msra.mxu0 0.0
  %266 = vmatprep.subr.mxu0 0.0
  %267 = vmatpush1.msra.mxu0 0.0
  %268 = vmatprep.subr.mxu0 0.0
  %269 = vmatpush1.msra.mxu0 0.0
  %270 = vmatprep.subr.mxu0 0.0
  %271 = vmatpush1.msra.mxu0 0.0
  %272 = vmatprep.subr.mxu0 0.0
  %273 = vmatpush1.msra.mxu0 0.0
  %274 = vmatprep.subr.mxu0 0.0
  %275 = vmatpush1.msra.mxu0 0.0
  %276 = vmatprep.subr.mxu0 0.0
  %277 = vmatpush1.msra.mxu0 0.0
  %278 = vmatprep.subr.mxu0 0.0
  %279 = vmatpush1.msra.mxu0 0.0
  %280 = vmatprep.mubr.f32.mxu0 %v196
  %281 = vmatmul.mubr.f32.gmra.mrb[0].mxu0 %v181
  %v282 = vpop.f32.mrb[0].mxu0
  %v283 = vadd.f32 %v52, %v282
  %v284 = vpop.f32.mrb[0].mxu0
  %285 = vmatprep.mubr.f32.mxu0 %v199
  %286 = vmatmul.mubr.f32.gmra.mrb[0].mxu0 %v183
  %v287 = vpop.f32.mrb[0].mxu0
  %v288 = vadd.f32 %v52, %v287
  %v289 = vpop.f32.mrb[0].mxu0
  %290 = vmatprep.mubr.f32.mxu0 %v202
  %291 = vmatmul.mubr.f32.gmra.mrb[0].mxu0 %v185
  %v292 = vpop.f32.mrb[0].mxu0
  %v293 = vadd.f32 %v52, %v292
  %v294 = vpop.f32.mrb[0].mxu0
  %295 = vmatprep.mubr.f32.mxu0 %v205
  %296 = vmatmul.mubr.f32.gmra.mrb[0].mxu0 %v187
  %v297 = vpop.f32.mrb[0].mxu0
  %v298 = vadd.f32 %v52, %v297
  %v299 = vpop.f32.mrb[0].mxu0
  %300 = vmatprep.mubr.f32.mxu0 %v208
  %301 = vmatmul.mubr.f32.gmra.mrb[0].mxu0 %v189
  %v302 = vpop.f32.mrb[0].mxu0
  %v303 = vadd.f32 %v52, %v302
  %v304 = vpop.f32.mrb[0].mxu0
  %305 = vmatprep.mubr.f32.mxu0 %v211
  %306 = vmatmul.mubr.f32.gmra.mrb[0].mxu0 %v191
  %v307 = vpop.f32.mrb[0].mxu0
  %v308 = vadd.f32 %v52, %v307
  %v309 = vpop.f32.mrb[0].mxu0
  %310 = vmatprep.mubr.f32.mxu0 %v214
  %311 = vmatmul.mubr.f32.gmra.mrb[0].mxu0 %v193
  %v312 = vpop.f32.mrb[0].mxu0
  %v313 = vadd.f32 %v52, %v312
  %v314 = vpop.f32.mrb[0].mxu0
  %315 = vdwg.mxu0
  %v316 = vmax.f32 %v147, %v283
  %v317 = vmax.f32 %v152, %v288
  %v318 = vmax.f32 %v157, %v293
  %v319 = vmax.f32 %v162, %v298
  %v320 = vmax.f32 %v167, %v303
  %v321 = vmax.f32 %v172, %v308
  %v322 = vmax.f32 %v177, %v313
  %s323 = scalar_lea.vmem %s0, 224
  %v324 = vld [vmem:[%s323] sm:$0xff]
  %v325 = vld [vmem:[%s323 + $0x8] sm:$0xff]
  %v326 = vld [vmem:[%s323 + $0x10] sm:$0xff]
  %v327 = vld [vmem:[%s323 + $0x18] sm:$0xff]
  %v328 = vld [vmem:[%s323 + $0x20] sm:$0xff]
  %v329 = vld [vmem:[%s323 + $0x28] sm:$0xff]
  %v330 = vld [vmem:[%s323 + $0x30] sm:$0xff]
  %v331 = vld [vmem:[%s323 + $0x38] sm:$0xff]
  %v332 = vld [vmem:[%s323 + $0x40] sm:$0xff]
  %v333 = vld [vmem:[%s323 + $0x48] sm:$0xff]
  %v334 = vld [vmem:[%s323 + $0x50] sm:$0xff]
  %v335 = vld [vmem:[%s323 + $0x58] sm:$0xff]
  %v336 = vld [vmem:[%s323 + $0x60] sm:$0x3]
  %v337 = vld [vmem:[%s323 + $0x68] sm:$0x3]
  %v339 = vsel %vm54, %v325, 0
  %v342 = vsel %vm54, %v327, 0
  %v345 = vsel %vm54, %v329, 0
  %v348 = vsel %vm54, %v331, 0
  %v351 = vsel %vm54, %v333, 0
  %v354 = vsel %vm54, %v335, 0
  %v357 = vsel %vm54, %v337, 0
  %359 = vmatprep.subr.mxu0 0.0
  %360 = vmatpush1.msra.mxu0 %v14
  %361 = vmatprep.subr.mxu0 0.0
  %362 = vmatpush1.msra.mxu0 %v15
  %363 = vmatprep.subr.mxu0 0.0
  %364 = vmatpush1.msra.mxu0 %v16
  %365 = vmatprep.subr.mxu0 0.0
  %366 = vmatpush1.msra.mxu0 %v17
  %367 = vmatprep.subr.mxu0 0.0
  %368 = vmatpush1.msra.mxu0 %v18
  %369 = vmatprep.subr.mxu0 0.0
  %370 = vmatpush1.msra.mxu0 %v19
  %371 = vmatprep.subr.mxu0 0.0
  %372 = vmatpush1.msra.mxu0 %v20
  %373 = vmatprep.subr.mxu0 0.0
  %374 = vmatpush1.msra.mxu0 %v21
  %375 = vmatprep.subr.mxu0 0.0
  %376 = vmatpush1.msra.mxu0 %v22
  %377 = vmatprep.subr.mxu0 0.0
  %378 = vmatpush1.msra.mxu0 %v23
  %379 = vmatprep.subr.mxu0 0.0
  %380 = vmatpush1.msra.mxu0 %v24
  %381 = vmatprep.subr.mxu0 0.0
  %382 = vmatpush1.msra.mxu0 %v25
  %383 = vmatprep.subr.mxu0 0.0
  %384 = vmatpush1.msra.mxu0 %v26
  %385 = vmatprep.subr.mxu0 0.0
  %386 = vmatpush1.msra.mxu0 %v27
  %387 = vmatprep.subr.mxu0 0.0
  %388 = vmatpush1.msra.mxu0 %v28
  %389 = vmatprep.subr.mxu0 0.0
  %390 = vmatpush1.msra.mxu0 %v29
  %391 = vmatprep.subr.mxu0 0.0
  %392 = vmatpush1.msra.mxu0 %v30
  %393 = vmatprep.subr.mxu0 0.0
  %394 = vmatpush1.msra.mxu0 %v31
  %395 = vmatprep.subr.mxu0 0.0
  %396 = vmatpush1.msra.mxu0 %v78
  %397 = vmatprep.subr.mxu0 0.0
  %398 = vmatpush1.msra.mxu0 0.0
  %399 = vmatprep.subr.mxu0 0.0
  %400 = vmatpush1.msra.mxu0 0.0
  %401 = vmatprep.subr.mxu0 0.0
  %402 = vmatpush1.msra.mxu0 0.0
  %403 = vmatprep.subr.mxu0 0.0
  %404 = vmatpush1.msra.mxu0 0.0
  %405 = vmatprep.subr.mxu0 0.0
  %406 = vmatpush1.msra.mxu0 0.0
  %407 = vmatprep.subr.mxu0 0.0
  %408 = vmatpush1.msra.mxu0 0.0
  %409 = vmatprep.subr.mxu0 0.0
  %410 = vmatpush1.msra.mxu0 0.0
  %411 = vmatprep.subr.mxu0 0.0
  %412 = vmatpush1.msra.mxu0 0.0
  %413 = vmatprep.subr.mxu0 0.0
  %414 = vmatpush1.msra.mxu0 0.0
  %415 = vmatprep.subr.mxu0 0.0
  %416 = vmatpush1.msra.mxu0 0.0
  %417 = vmatprep.subr.mxu0 0.0
  %418 = vmatpush1.msra.mxu0 0.0
  %419 = vmatprep.subr.mxu0 0.0
  %420 = vmatpush1.msra.mxu0 0.0
  %421 = vmatprep.subr.mxu0 0.0
  %422 = vmatpush1.msra.mxu0 0.0
  %423 = vmatprep.mubr.f32.mxu0 %v339
  %424 = vmatmul.mubr.f32.gmra.mrb[0].mxu0 %v324
  %v425 = vpop.f32.mrb[0].mxu0
  %v426 = vadd.f32 %v52, %v425
  %v427 = vpop.f32.mrb[0].mxu0
  %428 = vmatprep.mubr.f32.mxu0 %v342
  %429 = vmatmul.mubr.f32.gmra.mrb[0].mxu0 %v326
  %v430 = vpop.f32.mrb[0].mxu0
  %v431 = vadd.f32 %v52, %v430
  %v432 = vpop.f32.mrb[0].mxu0
  %433 = vmatprep.mubr.f32.mxu0 %v345
  %434 = vmatmul.mubr.f32.gmra.mrb[0].mxu0 %v328
  %v435 = vpop.f32.mrb[0].mxu0
  %v436 = vadd.f32 %v52, %v435
  %v437 = vpop.f32.mrb[0].mxu0
  %438 = vmatprep.mubr.f32.mxu0 %v348
  %439 = vmatmul.mubr.f32.gmra.mrb[0].mxu0 %v330
  %v440 = vpop.f32.mrb[0].mxu0
  %v441 = vadd.f32 %v52, %v440
  %v442 = vpop.f32.mrb[0].mxu0
  %443 = vmatprep.mubr.f32.mxu0 %v351
  %444 = vmatmul.mubr.f32.gmra.mrb[0].mxu0 %v332
  %v445 = vpop.f32.mrb[0].mxu0
  %v446 = vadd.f32 %v52, %v445
  %v447 = vpop.f32.mrb[0].mxu0
  %448 = vmatprep.mubr.f32.mxu0 %v354
  %449 = vmatmul.mubr.f32.gmra.mrb[0].mxu0 %v334
  %v450 = vpop.f32.mrb[0].mxu0
  %v451 = vadd.f32 %v52, %v450
  %v452 = vpop.f32.mrb[0].mxu0
  %453 = vmatprep.mubr.f32.mxu0 %v357
  %454 = vmatmul.mubr.f32.gmra.mrb[0].mxu0 %v336
  %v455 = vpop.f32.mrb[0].mxu0
  %v456 = vadd.f32 %v52, %v455
  %v457 = vpop.f32.mrb[0].mxu0
  %458 = vdwg.mxu0
  %s459 = scalar_lea.vmem %s0, 336
  %v460 = vld [vmem:[%s459] sm:$0xff]
  %v461 = vld [vmem:[%s459 + $0x8] sm:$0xff]
  %v462 = vld [vmem:[%s459 + $0x10] sm:$0xff]
  %v463 = vld [vmem:[%s459 + $0x18] sm:$0xff]
  %v464 = vld [vmem:[%s459 + $0x20] sm:$0xff]
  %v465 = vld [vmem:[%s459 + $0x28] sm:$0xff]
  %v466 = vld [vmem:[%s459 + $0x30] sm:$0xff]
  %v467 = vld [vmem:[%s459 + $0x38] sm:$0xff]
  %v468 = vld [vmem:[%s459 + $0x40] sm:$0xff]
  %v469 = vld [vmem:[%s459 + $0x48] sm:$0xff]
  %v470 = vld [vmem:[%s459 + $0x50] sm:$0xff]
  %v471 = vld [vmem:[%s459 + $0x58] sm:$0xff]
  %v472 = vld [vmem:[%s459 + $0x60] sm:$0x3]
  %v473 = vld [vmem:[%s459 + $0x68] sm:$0x3]
  %v475 = vsel %vm54, %v461, 0
  %v478 = vsel %vm54, %v463, 0
  %v481 = vsel %vm54, %v465, 0
  %v484 = vsel %vm54, %v467, 0
  %v487 = vsel %vm54, %v469, 0
  %v490 = vsel %vm54, %v471, 0
  %v493 = vsel %vm54, %v473, 0
  %495 = vmatprep.subr.mxu0 0.0
  %496 = vmatpush1.msra.mxu0 %v14
  %497 = vmatprep.subr.mxu0 0.0
  %498 = vmatpush1.msra.mxu0 %v15
  %499 = vmatprep.subr.mxu0 0.0
  %500 = vmatpush1.msra.mxu0 %v16
  %501 = vmatprep.subr.mxu0 0.0
  %502 = vmatpush1.msra.mxu0 %v17
  %503 = vmatprep.subr.mxu0 0.0
  %504 = vmatpush1.msra.mxu0 %v18
  %505 = vmatprep.subr.mxu0 0.0
  %506 = vmatpush1.msra.mxu0 %v19
  %507 = vmatprep.subr.mxu0 0.0
  %508 = vmatpush1.msra.mxu0 %v20
  %509 = vmatprep.subr.mxu0 0.0
  %510 = vmatpush1.msra.mxu0 %v21
  %511 = vmatprep.subr.mxu0 0.0
  %512 = vmatpush1.msra.mxu0 %v22
  %513 = vmatprep.subr.mxu0 0.0
  %514 = vmatpush1.msra.mxu0 %v23
  %515 = vmatprep.subr.mxu0 0.0
  %516 = vmatpush1.msra.mxu0 %v24
  %517 = vmatprep.subr.mxu0 0.0
  %518 = vmatpush1.msra.mxu0 %v25
  %519 = vmatprep.subr.mxu0 0.0
  %520 = vmatpush1.msra.mxu0 %v26
  %521 = vmatprep.subr.mxu0 0.0
  %522 = vmatpush1.msra.mxu0 %v27
  %523 = vmatprep.subr.mxu0 0.0
  %524 = vmatpush1.msra.mxu0 %v28
  %525 = vmatprep.subr.mxu0 0.0
  %526 = vmatpush1.msra.mxu0 %v29
  %527 = vmatprep.subr.mxu0 0.0
  %528 = vmatpush1.msra.mxu0 %v30
  %529 = vmatprep.subr.mxu0 0.0
  %530 = vmatpush1.msra.mxu0 %v31
  %531 = vmatprep.subr.mxu0 0.0
  %532 = vmatpush1.msra.mxu0 %v78
  %533 = vmatprep.subr.mxu0 0.0
  %534 = vmatpush1.msra.mxu0 0.0
  %535 = vmatprep.subr.mxu0 0.0
  %536 = vmatpush1.msra.mxu0 0.0
  %537 = vmatprep.subr.mxu0 0.0
  %538 = vmatpush1.msra.mxu0 0.0
  %539 = vmatprep.subr.mxu0 0.0
  %540 = vmatpush1.msra.mxu0 0.0
  %541 = vmatprep.subr.mxu0 0.0
  %542 = vmatpush1.msra.mxu0 0.0
  %543 = vmatprep.subr.mxu0 0.0
  %544 = vmatpush1.msra.mxu0 0.0
  %545 = vmatprep.subr.mxu0 0.0
  %546 = vmatpush1.msra.mxu0 0.0
  %547 = vmatprep.subr.mxu0 0.0
  %548 = vmatpush1.msra.mxu0 0.0
  %549 = vmatprep.subr.mxu0 0.0
  %550 = vmatpush1.msra.mxu0 0.0
  %551 = vmatprep.subr.mxu0 0.0
  %552 = vmatpush1.msra.mxu0 0.0
  %553 = vmatprep.subr.mxu0 0.0
  %554 = vmatpush1.msra.mxu0 0.0
  %555 = vmatprep.subr.mxu0 0.0
  %556 = vmatpush1.msra.mxu0 0.0
  %557 = vmatprep.subr.mxu0 0.0
  %558 = vmatpush1.msra.mxu0 0.0
  %559 = vmatprep.mubr.f32.mxu0 %v475
  %560 = vmatmul.mubr.f32.gmra.mrb[0].mxu0 %v460
  %v561 = vpop.f32.mrb[0].mxu0
  %v562 = vadd.f32 %v52, %v561
  %v563 = vpop.f32.mrb[0].mxu0
  %564 = vmatprep.mubr.f32.mxu0 %v478
  %565 = vmatmul.mubr.f32.gmra.mrb[0].mxu0 %v462
  %v566 = vpop.f32.mrb[0].mxu0
  %v567 = vadd.f32 %v52, %v566
  %v568 = vpop.f32.mrb[0].mxu0
  %569 = vmatprep.mubr.f32.mxu0 %v481
  %570 = vmatmul.mubr.f32.gmra.mrb[0].mxu0 %v464
  %v571 = vpop.f32.mrb[0].mxu0
  %v572 = vadd.f32 %v52, %v571
  %v573 = vpop.f32.mrb[0].mxu0
  %574 = vmatprep.mubr.f32.mxu0 %v484
  %575 = vmatmul.mubr.f32.gmra.mrb[0].mxu0 %v466
  %v576 = vpop.f32.mrb[0].mxu0
  %v577 = vadd.f32 %v52, %v576
  %v578 = vpop.f32.mrb[0].mxu0
  %579 = vmatprep.mubr.f32.mxu0 %v487
  %580 = vmatmul.mubr.f32.gmra.mrb[0].mxu0 %v468
  %v581 = vpop.f32.mrb[0].mxu0
  %v582 = vadd.f32 %v52, %v581
  %v583 = vpop.f32.mrb[0].mxu0
  %584 = vmatprep.mubr.f32.mxu0 %v490
  %585 = vmatmul.mubr.f32.gmra.mrb[0].mxu0 %v470
  %v586 = vpop.f32.mrb[0].mxu0
  %v587 = vadd.f32 %v52, %v586
  %v588 = vpop.f32.mrb[0].mxu0
  %589 = vmatprep.mubr.f32.mxu0 %v493
  %590 = vmatmul.mubr.f32.gmra.mrb[0].mxu0 %v472
  %v591 = vpop.f32.mrb[0].mxu0
  %v592 = vadd.f32 %v52, %v591
  %v593 = vpop.f32.mrb[0].mxu0
  %594 = vdwg.mxu0
  %v595 = vmax.f32 %v426, %v562
  %v596 = vmax.f32 %v431, %v567
  %v597 = vmax.f32 %v436, %v572
  %v598 = vmax.f32 %v441, %v577
  %v599 = vmax.f32 %v446, %v582
  %v600 = vmax.f32 %v451, %v587
  %v601 = vmax.f32 %v456, %v592
  %v602 = vmax.f32 %v316, %v595
  %v603 = vmax.f32 %v317, %v596
  %v604 = vmax.f32 %v318, %v597
  %v605 = vmax.f32 %v319, %v598
  %v606 = vmax.f32 %v320, %v599
  %v607 = vmax.f32 %v321, %v600
  %v608 = vmax.f32 %v322, %v601
  %v609 = vmax.f32 %v602, 0.0
  %v610 = vmax.f32 %v603, 0.0
  %v611 = vmax.f32 %v604, 0.0
  %v612 = vmax.f32 %v605, 0.0
  %v613 = vmax.f32 %v606, 0.0
  %v614 = vmax.f32 %v607, 0.0
  %v615 = vmax.f32 %v608, 0.0
  %vm616 = vcmask 130048
  %617 = vst.msk [vmem:[%s3] sm:$0xff] %vm616, %v609
  %618 = vst.msk [vmem:[%s3 + $0x8] sm:$0xff] %vm616, %v610
  %619 = vst.msk [vmem:[%s3 + $0x10] sm:$0xff] %vm616, %v611
  %620 = vst.msk [vmem:[%s3 + $0x18] sm:$0xff] %vm616, %v612
  %621 = vst.msk [vmem:[%s3 + $0x20] sm:$0xff] %vm616, %v613
  %622 = vst.msk [vmem:[%s3 + $0x28] sm:$0xff] %vm616, %v614
  %vm623 = vcmask 123904
  %624 = vst.msk [vmem:[%s3 + $0x30] sm:$0x3] %vm623, %v615
  // Predicated region
  $region14: #{lenet_forward.4} parent=0 // pred_check
    _
  $region15: #{lenet_forward.4} parent=0 // pred_check_branch
    %626 = sbr.rel (0) target = $region17
  $region16: #{lenet_forward.4} parent=0 // pred_region
    _
  $region17: #{lenet_forward.4} parent=0 // pred_fallthru
    _
  // Predicated region
  $region18: #{lenet_forward.4} parent=0 // pred_check
    _
  $region19: #{lenet_forward.4} parent=0 // pred_check_branch
    %628 = sbr.rel (0) target = $region21
  $region20: #{lenet_forward.4} parent=0 // pred_region
    _
  $region21: #{lenet_forward.4} parent=0 // pred_fallthru
    _

// kernel: lenet_forward.5
$region0: #{lenet_forward.5}
  #allocation0 [shape = 'u32[]', space=smem, size = 0x4, offset = 0x4, fixed_abs, tag = 'smem constant byte address 0x4 - core index']
  #allocation1 [shape = 'u32[144,128]{1,0:T(1,128)}', space=vmem, size = 0x12000, scoped, tag = 'internal scratch']
  %s0 = inlined_call_operand.vmem [shape: f32[2,400], index: 0, kind: input, shape index: {}]
  %s1 = inlined_call_operand.vmem [shape: f32[400,120], index: 1, kind: input, shape index: {}]
  %s2 = inlined_call_operand.vmem [shape: f32[1,120], index: 2, kind: input, shape index: {}]
  %s3 = inlined_call_operand.vmem [shape: f32[120,84], index: 3, kind: input, shape index: {}]
  %s4 = inlined_call_operand.vmem [shape: f32[1,84], index: 4, kind: input, shape index: {}]
  %s5 = inlined_call_operand.vmem [shape: f32[84,128], index: 5, kind: input, shape index: {}]
  %s6 = inlined_call_operand.vmem [shape: f32[1,128], index: 6, kind: input, shape index: {}]
  %s7 = inlined_call_operand.hbm [shape: f32[2,128], index: 7, kind: output, shape index: {}]
  %s8 = sld [smem:[#allocation0]]
  $region38: #{lenet_forward.5} parent=0
    _
  %s10 = ssub.s32 1, %s8
  %s11 = scalar_select 0, %s10, %s8
  $region1: #{lenet_forward.5} parent=0
    #allocation2 [shape = 'u8[1024]{0}', space=vmem, size = 0x400, scoped, tag = 'output window, operand 0, single buffered']
    #allocation3 [shape = 's32[1]{0}', space=sflag, size = 0x4, scoped, tag = 'scoped memory for lenet_forward.5']
    %12 = vsyncpa [#allocation3], 0
    // Predicated region
    $region2: #{lenet_forward.5} parent=1 // pred_check
      _
    $region3: #{lenet_forward.5} parent=1 // pred_check_branch
      %14 = sbr.rel (0) target = $region5
    $region4: #{lenet_forward.5} parent=1 // pred_region
      _
    $region5: #{lenet_forward.5} parent=1 // pred_fallthru
      _
    // Predicated region
    $region6: #{lenet_forward.5} parent=1 // pred_check
      _
    $region7: #{lenet_forward.5} parent=1 // pred_check_branch
      %16 = sbr.rel (0) target = $region9
    $region8: #{lenet_forward.5} parent=1 // pred_region
      _
    $region9: #{lenet_forward.5} parent=1 // pred_fallthru
      _
    // Predicated region
    $region10: #{lenet_forward.5} parent=1 // pred_check
      _
    $region11: #{lenet_forward.5} parent=1 // pred_check_branch
      %18 = sbr.rel (0) target = $region13
    $region12: #{lenet_forward.5} parent=1 // pred_region
      _
    $region13: #{lenet_forward.5} parent=1 // pred_fallthru
      _
    // Predicated region
    $region14: #{lenet_forward.5} parent=1 // pred_check
      _
    $region15: #{lenet_forward.5} parent=1 // pred_check_branch
      %20 = sbr.rel (0) target = $region17
    $region16: #{lenet_forward.5} parent=1 // pred_region
      _
    $region17: #{lenet_forward.5} parent=1 // pred_fallthru
      _
    // Predicated region
    $region18: #{lenet_forward.5} parent=1 // pred_check
      _
    $region19: #{lenet_forward.5} parent=1 // pred_check_branch
      %22 = sbr.rel (0) target = $region21
    $region20: #{lenet_forward.5} parent=1 // pred_region
      _
    $region21: #{lenet_forward.5} parent=1 // pred_fallthru
      _
    // Predicated region
    $region22: #{lenet_forward.5} parent=1 // pred_check
      _
    $region23: #{lenet_forward.5} parent=1 // pred_check_branch
      %24 = sbr.rel (0) target = $region25
    $region24: #{lenet_forward.5} parent=1 // pred_region
      _
    $region25: #{lenet_forward.5} parent=1 // pred_fallthru
      _
    // Predicated region
    $region26: #{lenet_forward.5} parent=1 // pred_check
      _
    $region27: #{lenet_forward.5} parent=1 // pred_check_branch
      %26 = sbr.rel (0) target = $region29
    $region28: #{lenet_forward.5} parent=1 // pred_region
      _
    $region29: #{lenet_forward.5} parent=1 // pred_fallthru
      _
    %v27 = vld [vmem:[%s0] sm:$0xff]
    %v28 = vld [vmem:[%s1] sm:$0xff]
    %v29 = vld [vmem:[%s1 + $0x8] sm:$0xff]
    %v30 = vld [vmem:[%s1 + $0x10] sm:$0xff]
    %v31 = vld [vmem:[%s1 + $0x18] sm:$0xff]
    %v32 = vld [vmem:[%s1 + $0x20] sm:$0xff]
    %v33 = vld [vmem:[%s1 + $0x28] sm:$0xff]
    %v34 = vld [vmem:[%s1 + $0x30] sm:$0xff]
    %v35 = vld [vmem:[%s1 + $0x38] sm:$0xff]
    %v36 = vld [vmem:[%s1 + $0x40] sm:$0xff]
    %v37 = vld [vmem:[%s1 + $0x48] sm:$0xff]
    %v38 = vld [vmem:[%s1 + $0x50] sm:$0xff]
    %v39 = vld [vmem:[%s1 + $0x58] sm:$0xff]
    %v40 = vld [vmem:[%s1 + $0x60] sm:$0xff]
    %v41 = vld [vmem:[%s1 + $0x68] sm:$0xff]
    %v42 = vld [vmem:[%s1 + $0x70] sm:$0xff]
    %v43 = vld [vmem:[%s1 + $0x78] sm:$0xff]
    %v44 = vld [vmem:[%s1 + $0x80] sm:$0xff]
    %v45 = vld [vmem:[%s1 + $0x88] sm:$0xff]
    %v46 = vld [vmem:[%s1 + $0x90] sm:$0xff]
    %v47 = vld [vmem:[%s1 + $0x98] sm:$0xff]
    %v48 = vld [vmem:[%s1 + $0xa0] sm:$0xff]
    %v49 = vld [vmem:[%s1 + $0xa8] sm:$0xff]
    %v50 = vld [vmem:[%s1 + $0xb0] sm:$0xff]
    %v51 = vld [vmem:[%s1 + $0xb8] sm:$0xff]
    %v52 = vld [vmem:[%s1 + $0xc0] sm:$0xff]
    %v53 = vld [vmem:[%s1 + $0xc8] sm:$0xff]
    %v54 = vld [vmem:[%s1 + $0xd0] sm:$0xff]
    %v55 = vld [vmem:[%s1 + $0xd8] sm:$0xff]
    %v56 = vld [vmem:[%s1 + $0xe0] sm:$0xff]
    %v57 = vld [vmem:[%s1 + $0xe8] sm:$0xff]
    %v58 = vld [vmem:[%s1 + $0xf0] sm:$0xff]
    %v59 = vld [vmem:[%s1 + $0xf8] sm:$0xff]
    %v60 = vld [vmem:[%s1 + $0x100] sm:$0xff]
    %v61 = vld [vmem:[%s1 + $0x108] sm:$0xff]
    %v62 = vld [vmem:[%s1 + $0x110] sm:$0xff]
    %v63 = vld [vmem:[%s1 + $0x118] sm:$0xff]
    %v64 = vld [vmem:[%s1 + $0x120] sm:$0xff]
    %v65 = vld [vmem:[%s1 + $0x128] sm:$0xff]
    %v66 = vld [vmem:[%s1 + $0x130] sm:$0xff]
    %v67 = vld [vmem:[%s1 + $0x138] sm:$0xff]
    %v68 = vld [vmem:[%s1 + $0x140] sm:$0xff]
    %v69 = vld [vmem:[%s1 + $0x148] sm:$0xff]
    %v70 = vld [vmem:[%s1 + $0x150] sm:$0xff]
    %v71 = vld [vmem:[%s1 + $0x158] sm:$0xff]
    %v72 = vld [vmem:[%s1 + $0x160] sm:$0xff]
    %v73 = vld [vmem:[%s1 + $0x168] sm:$0xff]
    %v74 = vld [vmem:[%s1 + $0x170] sm:$0xff]
    %v75 = vld [vmem:[%s1 + $0x178] sm:$0xff]
    %v76 = vld [vmem:[%s1 + $0x180] sm:$0xff]
    %v77 = vld [vmem:[%s1 + $0x188] sm:$0xff]
    %v78 = vld [vmem:[%s2] sm:$0x1]
    %v80 = vlaneseq
    %v81 = vshrl.u32 %v80, 7
    %v82 = vsub.s32 0, %v81
    %v83 = vrot.slane %v78, %v82
    %v86 = vcombine.high %v27, %v27
    %v88 = vunpack.c.l.s4 1983009808
    %v89 = vunpack.c.0.s8 %v88
    %v90 = vlaneseq
    %v91 = vshrl.u32 %v90, 7
    %v92 = vsub.s32 %v89, %v91
    %v93 = vrot.slane %v27, %v92
    %v95 = vunpack.c.l.s4 1983009808
    %v96 = vunpack.c.0.s8 %v95
    %v97 = vlaneseq
    %v98 = vshrl.u32 %v97, 7
    %v99 = vsub.s32 %v96, %v98
    %v100 = vrot.slane %v86, %v99
    %v101 = vcombine.high %v93, %v93
    %v102 = vcombine.high %v100, %v100
    %vm106 = vcmask 130048
    %v107 = vsel %vm106, %v102, 0
    %109 = vmatprep.subr.mxu0 0.0
    %110 = vmatpush1.msra.mxu0 %v28
    %111 = vmatprep.subr.mxu0 0.0
    %112 = vmatpush1.msra.mxu0 %v29
    %113 = vmatprep.subr.mxu0 0.0
    %114 = vmatpush1.msra.mxu0 %v30
    %115 = vmatprep.subr.mxu0 0.0
    %116 = vmatpush1.msra.mxu0 %v31
    %117 = vmatprep.subr.mxu0 0.0
    %118 = vmatpush1.msra.mxu0 %v32
    %119 = vmatprep.subr.mxu0 0.0
    %120 = vmatpush1.msra.mxu0 %v33
    %121 = vmatprep.subr.mxu0 0.0
    %122 = vmatpush1.msra.mxu0 %v34
    %123 = vmatprep.subr.mxu0 0.0
    %124 = vmatpush1.msra.mxu0 %v35
    %125 = vmatprep.subr.mxu0 0.0
    %126 = vmatpush1.msra.mxu0 %v36
    %127 = vmatprep.subr.mxu0 0.0
    %128 = vmatpush1.msra.mxu0 %v37
    %129 = vmatprep.subr.mxu0 0.0
    %130 = vmatpush1.msra.mxu0 %v38
    %131 = vmatprep.subr.mxu0 0.0
    %132 = vmatpush1.msra.mxu0 %v39
    %133 = vmatprep.subr.mxu0 0.0
    %134 = vmatpush1.msra.mxu0 %v40
    %135 = vmatprep.subr.mxu0 0.0
    %136 = vmatpush1.msra.mxu0 %v41
    %137 = vmatprep.subr.mxu0 0.0
    %138 = vmatpush1.msra.mxu0 %v42
    %139 = vmatprep.subr.mxu0 0.0
    %140 = vmatpush1.msra.mxu0 %v43
    %141 = vmatprep.subr.mxu0 0.0
    %142 = vmatpush1.msra.mxu0 %v44
    %143 = vmatprep.subr.mxu0 0.0
    %144 = vmatpush1.msra.mxu0 %v45
    %145 = vmatprep.subr.mxu0 0.0
    %146 = vmatpush1.msra.mxu0 %v46
    %147 = vmatprep.subr.mxu0 0.0
    %148 = vmatpush1.msra.mxu0 %v47
    %149 = vmatprep.subr.mxu0 0.0
    %150 = vmatpush1.msra.mxu0 %v48
    %151 = vmatprep.subr.mxu0 0.0
    %152 = vmatpush1.msra.mxu0 %v49
    %153 = vmatprep.subr.mxu0 0.0
    %154 = vmatpush1.msra.mxu0 %v50
    %155 = vmatprep.subr.mxu0 0.0
    %156 = vmatpush1.msra.mxu0 %v51
    %157 = vmatprep.subr.mxu0 0.0
    %158 = vmatpush1.msra.mxu0 %v52
    %159 = vmatprep.subr.mxu0 0.0
    %160 = vmatpush1.msra.mxu0 %v53
    %161 = vmatprep.subr.mxu0 0.0
    %162 = vmatpush1.msra.mxu0 %v54
    %163 = vmatprep.subr.mxu0 0.0
    %164 = vmatpush1.msra.mxu0 %v55
    %165 = vmatprep.subr.mxu0 0.0
    %166 = vmatpush1.msra.mxu0 %v56
    %167 = vmatprep.subr.mxu0 0.0
    %168 = vmatpush1.msra.mxu0 %v57
    %169 = vmatprep.subr.mxu0 0.0
    %170 = vmatpush1.msra.mxu0 %v58
    %171 = vmatprep.subr.mxu0 0.0
    %172 = vmatpush1.msra.mxu0 %v59
    %173 = vmatprep.mubr.f32.mxu0 %v101
    %174 = vmatmul.mubr.f32.gmra.mrb[0].mxu0 %v93
    %v175 = vpop.f32.mrb[0].mxu0
    %v176 = vadd.f32 %v83, %v175
    %v177 = vpop.f32.mrb[0].mxu0
    %178 = vdwg.mxu0
    %179 = vmatprep.subr.mxu0 0.0
    %180 = vmatpush1.msra.mxu0 %v60
    %181 = vmatprep.subr.mxu0 0.0
    %182 = vmatpush1.msra.mxu0 %v61
    %183 = vmatprep.subr.mxu0 0.0
    %184 = vmatpush1.msra.mxu0 %v62
    %185 = vmatprep.subr.mxu0 0.0
    %186 = vmatpush1.msra.mxu0 %v63
    %187 = vmatprep.subr.mxu0 0.0
    %188 = vmatpush1.msra.mxu0 %v64
    %189 = vmatprep.subr.mxu0 0.0
    %190 = vmatpush1.msra.mxu0 %v65
    %191 = vmatprep.subr.mxu0 0.0
    %192 = vmatpush1.msra.mxu0 %v66
    %193 = vmatprep.subr.mxu0 0.0
    %194 = vmatpush1.msra.mxu0 %v67
    %195 = vmatprep.subr.mxu0 0.0
    %196 = vmatpush1.msra.mxu0 %v68
    %197 = vmatprep.subr.mxu0 0.0
    %198 = vmatpush1.msra.mxu0 %v69
    %199 = vmatprep.subr.mxu0 0.0
    %200 = vmatpush1.msra.mxu0 %v70
    %201 = vmatprep.subr.mxu0 0.0
    %202 = vmatpush1.msra.mxu0 %v71
    %203 = vmatprep.subr.mxu0 0.0
    %204 = vmatpush1.msra.mxu0 %v72
    %205 = vmatprep.subr.mxu0 0.0
    %206 = vmatpush1.msra.mxu0 %v73
    %207 = vmatprep.subr.mxu0 0.0
    %208 = vmatpush1.msra.mxu0 %v74
    %209 = vmatprep.subr.mxu0 0.0
    %210 = vmatpush1.msra.mxu0 %v75
    %211 = vmatprep.subr.mxu0 0.0
    %212 = vmatpush1.msra.mxu0 %v76
    %213 = vmatprep.subr.mxu0 0.0
    %214 = vmatpush1.msra.mxu0 %v77
    %215 = vmatprep.subr.mxu0 0.0
    %216 = vmatpush1.msra.mxu0 0.0
    %217 = vmatprep.subr.mxu0 0.0
    %218 = vmatpush1.msra.mxu0 0.0
    %219 = vmatprep.subr.mxu0 0.0
    %220 = vmatpush1.msra.mxu0 0.0
    %221 = vmatprep.subr.mxu0 0.0
    %222 = vmatpush1.msra.mxu0 0.0
    %223 = vmatprep.subr.mxu0 0.0
    %224 = vmatpush1.msra.mxu0 0.0
    %225 = vmatprep.subr.mxu0 0.0
    %226 = vmatpush1.msra.mxu0 0.0
    %227 = vmatprep.subr.mxu0 0.0
    %228 = vmatpush1.msra.mxu0 0.0
    %229 = vmatprep.subr.mxu0 0.0
    %230 = vmatpush1.msra.mxu0 0.0
    %231 = vmatprep.subr.mxu0 0.0
    %232 = vmatpush1.msra.mxu0 0.0
    %233 = vmatprep.subr.mxu0 0.0
    %234 = vmatpush1.msra.mxu0 0.0
    %235 = vmatprep.subr.mxu0 0.0
    %236 = vmatpush1.msra.mxu0 0.0
    %237 = vmatprep.subr.mxu0 0.0
    %238 = vmatpush1.msra.mxu0 0.0
    %239 = vmatprep.subr.mxu0 0.0
    %240 = vmatpush1.msra.mxu0 0.0
    %241 = vmatprep.subr.mxu0 0.0
    %242 = vmatpush1.msra.mxu0 0.0
    %243 = vmatprep.mubr.f32.mxu0 %v107
    %244 = vmatmul.mubr.f32.gmra.mrb[0].mxu0 %v100
    %v245 = vpop.f32.mrb[0].mxu0
    %v246 = vadd.f32 %v176, %v245
    %v247 = vpop.f32.mrb[0].mxu0
    %248 = vdwg.mxu0
    %v249 = vmax.f32 %v246, 0.0
    %v250 = vld [vmem:[%s3] sm:$0xff]
    %v251 = vld [vmem:[%s3 + $0x8] sm:$0xff]
    %v252 = vld [vmem:[%s3 + $0x10] sm:$0xff]
    %v253 = vld [vmem:[%s3 + $0x18] sm:$0xff]
    %v254 = vld [vmem:[%s3 + $0x20] sm:$0xff]
    %v255 = vld [vmem:[%s3 + $0x28] sm:$0xff]
    %v256 = vld [vmem:[%s3 + $0x30] sm:$0xff]
    %v257 = vld [vmem:[%s3 + $0x38] sm:$0xff]
    %v258 = vld [vmem:[%s3 + $0x40] sm:$0xff]
    %v259 = vld [vmem:[%s3 + $0x48] sm:$0xff]
    %v260 = vld [vmem:[%s3 + $0x50] sm:$0xff]
    %v261 = vld [vmem:[%s3 + $0x58] sm:$0xff]
    %v262 = vld [vmem:[%s3 + $0x60] sm:$0xff]
    %v263 = vld [vmem:[%s3 + $0x68] sm:$0xff]
    %v264 = vld [vmem:[%s3 + $0x70] sm:$0xff]
    %v265 = vld [vmem:[%s4] sm:$0x1]
    %v267 = vlaneseq
    %v268 = vshrl.u32 %v267, 7
    %v269 = vsub.s32 0, %v268
    %v270 = vrot.slane %v265, %v269
    %vm272 = vcmask 982016
    %v274 = vsel %vm272, %v249, 0
    %276 = vmatprep.subr.mxu0 0.0
    %277 = vmatpush1.msra.mxu0 %v250
    %278 = vmatprep.subr.mxu0 0.0
    %279 = vmatpush1.msra.mxu0 %v251
    %280 = vmatprep.subr.mxu0 0.0
    %281 = vmatpush1.msra.mxu0 %v252
    %282 = vmatprep.subr.mxu0 0.0
    %283 = vmatpush1.msra.mxu0 %v253
    %284 = vmatprep.subr.mxu0 0.0
    %285 = vmatpush1.msra.mxu0 %v254
    %286 = vmatprep.subr.mxu0 0.0
    %287 = vmatpush1.msra.mxu0 %v255
    %288 = vmatprep.subr.mxu0 0.0
    %289 = vmatpush1.msra.mxu0 %v256
    %290 = vmatprep.subr.mxu0 0.0
    %291 = vmatpush1.msra.mxu0 %v257
    %292 = vmatprep.subr.mxu0 0.0
    %293 = vmatpush1.msra.mxu0 %v258
    %294 = vmatprep.subr.mxu0 0.0
    %295 = vmatpush1.msra.mxu0 %v259
    %296 = vmatprep.subr.mxu0 0.0
    %297 = vmatpush1.msra.mxu0 %v260
    %298 = vmatprep.subr.mxu0 0.0
    %299 = vmatpush1.msra.mxu0 %v261
    %300 = vmatprep.subr.mxu0 0.0
    %301 = vmatpush1.msra.mxu0 %v262
    %302 = vmatprep.subr.mxu0 0.0
    %303 = vmatpush1.msra.mxu0 %v263
    %304 = vmatprep.subr.mxu0 0.0
    %305 = vmatpush1.msra.mxu0 %v264
    %306 = vmatprep.subr.mxu0 0.0
    %307 = vmatpush1.msra.mxu0 0.0
    %308 = vmatprep.subr.mxu0 0.0
    %309 = vmatpush1.msra.mxu0 0.0
    %310 = vmatprep.subr.mxu0 0.0
    %311 = vmatpush1.msra.mxu0 0.0
    %312 = vmatprep.subr.mxu0 0.0
    %313 = vmatpush1.msra.mxu0 0.0
    %314 = vmatprep.subr.mxu0 0.0
    %315 = vmatpush1.msra.mxu0 0.0
    %316 = vmatprep.subr.mxu0 0.0
    %317 = vmatpush1.msra.mxu0 0.0
    %318 = vmatprep.subr.mxu0 0.0
    %319 = vmatpush1.msra.mxu0 0.0
    %320 = vmatprep.subr.mxu0 0.0
    %321 = vmatpush1.msra.mxu0 0.0
    %322 = vmatprep.subr.mxu0 0.0
    %323 = vmatpush1.msra.mxu0 0.0
    %324 = vmatprep.subr.mxu0 0.0
    %325 = vmatpush1.msra.mxu0 0.0
    %326 = vmatprep.subr.mxu0 0.0
    %327 = vmatpush1.msra.mxu0 0.0
    %328 = vmatprep.subr.mxu0 0.0
    %329 = vmatpush1.msra.mxu0 0.0
    %330 = vmatprep.subr.mxu0 0.0
    %331 = vmatpush1.msra.mxu0 0.0
    %332 = vmatprep.subr.mxu0 0.0
    %333 = vmatpush1.msra.mxu0 0.0
    %334 = vmatprep.subr.mxu0 0.0
    %335 = vmatpush1.msra.mxu0 0.0
    %336 = vmatprep.subr.mxu0 0.0
    %337 = vmatpush1.msra.mxu0 0.0
    %338 = vmatprep.subr.mxu0 0.0
    %339 = vmatpush1.msra.mxu0 0.0
    %340 = vmatprep.mubr.f32.mxu0 0.0
    %341 = vmatmul.mubr.f32.gmra.mrb[0].mxu0 %v274
    %v342 = vpop.f32.mrb[0].mxu0
    %v343 = vadd.f32 %v270, %v342
    %v344 = vpop.f32.mrb[0].mxu0
    %345 = vdwg.mxu0
    %v346 = vmax.f32 %v343, 0.0
    %v347 = vld [vmem:[%s5] sm:$0xff]
    %v348 = vld [vmem:[%s5 + $0x8] sm:$0xff]
    %v349 = vld [vmem:[%s5 + $0x10] sm:$0xff]
    %v350 = vld [vmem:[%s5 + $0x18] sm:$0xff]
    %v351 = vld [vmem:[%s5 + $0x20] sm:$0xff]
    %v352 = vld [vmem:[%s5 + $0x28] sm:$0xff]
    %v353 = vld [vmem:[%s5 + $0x30] sm:$0xff]
    %v354 = vld [vmem:[%s5 + $0x38] sm:$0xff]
    %v355 = vld [vmem:[%s5 + $0x40] sm:$0xff]
    %v356 = vld [vmem:[%s5 + $0x48] sm:$0xff]
    %v357 = vld [vmem:[%s5 + $0x50] sm:$0xf]
    %v358 = vld [vmem:[%s6] sm:$0x1]
    %v360 = vlaneseq
    %v361 = vshrl.u32 %v360, 7
    %v362 = vsub.s32 0, %v361
    %v363 = vrot.slane %v358, %v362
    %vm365 = vcmask 687104
    %v367 = vsel %vm365, %v346, 0
    %vm369 = vcmask 1043456
    %v371 = vsel %vm369, %v357, 0
    %373 = vmatprep.subr.mxu0 0.0
    %374 = vmatpush1.msra.mxu0 %v347
    %375 = vmatprep.subr.mxu0 0.0
    %376 = vmatpush1.msra.mxu0 %v348
    %377 = vmatprep.subr.mxu0 0.0
    %378 = vmatpush1.msra.mxu0 %v349
    %379 = vmatprep.subr.mxu0 0.0
    %380 = vmatpush1.msra.mxu0 %v350
    %381 = vmatprep.subr.mxu0 0.0
    %382 = vmatpush1.msra.mxu0 %v351
    %383 = vmatprep.subr.mxu0 0.0
    %384 = vmatpush1.msra.mxu0 %v352
    %385 = vmatprep.subr.mxu0 0.0
    %386 = vmatpush1.msra.mxu0 %v353
    %387 = vmatprep.subr.mxu0 0.0
    %388 = vmatpush1.msra.mxu0 %v354
    %389 = vmatprep.subr.mxu0 0.0
    %390 = vmatpush1.msra.mxu0 %v355
    %391 = vmatprep.subr.mxu0 0.0
    %392 = vmatpush1.msra.mxu0 %v356
    %393 = vmatprep.subr.mxu0 0.0
    %394 = vmatpush1.msra.mxu0 %v371
    %395 = vmatprep.subr.mxu0 0.0
    %396 = vmatpush1.msra.mxu0 0.0
    %397 = vmatprep.subr.mxu0 0.0
    %398 = vmatpush1.msra.mxu0 0.0
    %399 = vmatprep.subr.mxu0 0.0
    %400 = vmatpush1.msra.mxu0 0.0
    %401 = vmatprep.subr.mxu0 0.0
    %402 = vmatpush1.msra.mxu0 0.0
    %403 = vmatprep.subr.mxu0 0.0
    %404 = vmatpush1.msra.mxu0 0.0
    %405 = vmatprep.subr.mxu0 0.0
    %406 = vmatpush1.msra.mxu0 0.0
    %407 = vmatprep.subr.mxu0 0.0
    %408 = vmatpush1.msra.mxu0 0.0
    %409 = vmatprep.subr.mxu0 0.0
    %410 = vmatpush1.msra.mxu0 0.0
    %411 = vmatprep.subr.mxu0 0.0
    %412 = vmatpush1.msra.mxu0 0.0
    %413 = vmatprep.subr.mxu0 0.0
    %414 = vmatpush1.msra.mxu0 0.0
    %415 = vmatprep.subr.mxu0 0.0
    %416 = vmatpush1.msra.mxu0 0.0
    %417 = vmatprep.subr.mxu0 0.0
    %418 = vmatpush1.msra.mxu0 0.0
    %419 = vmatprep.subr.mxu0 0.0
    %420 = vmatpush1.msra.mxu0 0.0
    %421 = vmatprep.subr.mxu0 0.0
    %422 = vmatpush1.msra.mxu0 0.0
    %423 = vmatprep.subr.mxu0 0.0
    %424 = vmatpush1.msra.mxu0 0.0
    %425 = vmatprep.subr.mxu0 0.0
    %426 = vmatpush1.msra.mxu0 0.0
    %427 = vmatprep.subr.mxu0 0.0
    %428 = vmatpush1.msra.mxu0 0.0
    %429 = vmatprep.subr.mxu0 0.0
    %430 = vmatpush1.msra.mxu0 0.0
    %431 = vmatprep.subr.mxu0 0.0
    %432 = vmatpush1.msra.mxu0 0.0
    %433 = vmatprep.subr.mxu0 0.0
    %434 = vmatpush1.msra.mxu0 0.0
    %435 = vmatprep.subr.mxu0 0.0
    %436 = vmatpush1.msra.mxu0 0.0
    %437 = vmatprep.mubr.f32.mxu0 0.0
    %438 = vmatmul.mubr.f32.gmra.mrb[0].mxu0 %v367
    %v439 = vpop.f32.mrb[0].mxu0
    %v440 = vadd.f32 %v363, %v439
    %v441 = vpop.f32.mrb[0].mxu0
    %442 = vdwg.mxu0
    %443 = vst [vmem:[#allocation2] sm:$0x3] %v440
    // Predicated region
    $region30: #{lenet_forward.5} parent=1 // pred_check
      _
    $region31: #{lenet_forward.5} parent=1 // pred_check_branch
      %445 = sbr.rel (0) target = $region33
    $region32: #{lenet_forward.5} parent=1 // pred_region
      %s447 = ssub.s32 32, 32
      %448 = vsyncadd [#allocation3], %s447
      %s450 = sshll.u32 [#allocation2], 4
      %s451 = int_to_ptr.vmem [resolvable:$true] %s450
      %453 = dma.vmem_to_hbm [thread:$0]  %s451, 32, %s7, [#allocation3]
    $region33: #{lenet_forward.5} parent=1 // pred_fallthru
      _
    // Predicated region
    $region34: #{lenet_forward.5} parent=1 // pred_check
      _
    $region35: #{lenet_forward.5} parent=1 // pred_check_branch
      %455 = sbr.rel (0) target = $region37
    $region36: #{lenet_forward.5} parent=1 // pred_region
      %456 = dma.done [#allocation3], 32
    $region37: #{lenet_forward.5} parent=1 // pred_fallthru
      _
    %457 = vsyncpa [#allocation3], 1

</llo_original>
